<compile_context>
chip_gen: v7x
topology: tpu7x:2x2x1
jax: 0.10.0
libtpu: 0.0.40
codegen_flags: <defaults>
</compile_context>

<pallas_src>
import numpy as np

import jax
import jax.numpy as jnp
from jax import lax
from jax.experimental import pallas as pl
from jax.experimental.pallas import tpu as pltpu


def _make_resblock_kernel(H, W, Cin, Cout):
    Hp, Wp = H + 2, W + 2
    S = Hp * Wp                 # flattened padded spatial extent
    M = Wp + 1                  # max |tap offset| = one padded row + one column
    # 3x3 tap offsets in the flattened padded frame, order (dy, dx)
    OFFS = tuple((dy - 1) * Wp + (dx - 1) for dy in range(3) for dx in range(3))

    def conv3x3(xs, w_ref, n_out, out_len):
        """9-tap conv as lane-shifted VPU multiply-adds.

        xs      : list of Ci per-channel buffers, each (Nb, out_len + 2*M);
                  the output frame starts at lane offset M of the input frame.
        w_ref   : SMEM ref, flat (9*Ci*n_out,) f32, order (tap, ci, co),
                  BN scale already folded in.
        returns : list of n_out f32 accumulators, each (Nb, out_len).
        """
        n_in = len(xs)
        nb = xs[0].shape[0]
        acc = [jnp.zeros((nb, out_len), jnp.float32) for _ in range(n_out)]
        for t, off in enumerate(OFFS):
            lo = M + off                                  # static, in [0, 2*M]
            for ci in range(n_in):
                tap = xs[ci][:, lo:lo + out_len].astype(jnp.float32)
                for co in range(n_out):
                    w = w_ref[(t * n_in + ci) * n_out + co]   # SMEM scalar
                    acc[co] = acc[co] + tap * w
        return acc

    def kernel(x_ref, mask_ref, w1_ref, b1_ref, w2_ref, b2_ref, out_ref):
        # x_ref   : (Cin, Nb, S + 4M) bf16, zero lane-margins of 2M each side
        # mask_ref: (1, S + 2M) f32, 1.0 at interior pixels, 0.0 elsewhere
        # w*_ref  : SMEM (9*C*C,) f32 conv weights with BN scale folded in
        # b*_ref  : SMEM (C,) f32 folded BN shifts
        # out_ref : (Cout, Nb, S) f32  (padded-frame flat layout, border = 0)
        xw = x_ref[...]                                   # (Cin, Nb, S + 4M)
        xs = [xw[ci] for ci in range(Cin)]
        mask_h = mask_ref[...]                            # (1, S + 2M)
        mask_o = mask_h[:, M:M + S]                       # (1, S)

        # conv1 (+ folded BN1 scale) + shift + ReLU, computed over the
        # margin-extended frame (length S + 2M); zero the pad border so that
        # conv2 sees true zero-padding semantics.
        a1 = conv3x3(xs, w1_ref, Cout, S + 2 * M)
        hs = [jnp.maximum(a1[co] + b1_ref[co], 0.0) * mask_h
              for co in range(Cout)]

        # conv2 (+ folded BN2 scale) + shift + identity skip + ReLU over the
        # base frame (length S).
        a2 = conv3x3(hs, w2_ref, Cout, S)
        for co in range(Cout):
            ident = xs[co][:, 2 * M:2 * M + S].astype(jnp.float32)
            y = jnp.maximum(a2[co] + b2_ref[co] + ident, 0.0) * mask_o
            out_ref[co] = y                               # lane-dense store

    return kernel


def residual_block(x_nchw, w1, s1, b1, w2, s2, b2, *,
                   vmem_limit_bytes=32 * 1024 * 1024):
    """Pallas residual block (inference).

    x_nchw : (N, C, H, W) float32 (PyTorch layout)
    w1, w2 : (3, 3, Cin, Cout) HWIO conv weights (bias-free, as in the module)
    s1, b1, s2, b2 : (Cout,) folded BatchNorm scale / shift (eval mode)
    """
    N, Cin, H, W = x_nchw.shape
    Cout = w1.shape[-1]
    assert Cin == Cout, "identity skip path requires in_channels == out_channels"

    Hp, Wp = H + 2, W + 2
    S = Hp * Wp
    M = Wp + 1

    # Batch block per grid step: whole batch if small, else 8-image blocks.
    if N <= 8:
        nb = N
    else:
        assert N % 8 == 0, "batch must be a multiple of 8 for blocked batching"
        nb = 8

    f32 = jnp.float32
    s1 = jnp.asarray(s1, f32).reshape(Cout)
    b1v = jnp.asarray(b1, f32).reshape(Cout)
    s2 = jnp.asarray(s2, f32).reshape(Cout)
    b2v = jnp.asarray(b2, f32).reshape(Cout)

    # Fold BN scale into the conv weights (host side, f32):
    #   bn(conv(x)) = conv(x) * s + b = conv_{w*s}(x) + b
    w1f = (jnp.asarray(w1, f32) * s1[None, None, None, :]).reshape(-1)
    w2f = (jnp.asarray(w2, f32) * s2[None, None, None, :]).reshape(-1)

    # Channel-major, flattened-padded-spatial, margin-extended bf16 activations.
    # For a chain of residual blocks this layout would be kept end-to-end; here
    # it is built once at the NCHW edge (tiny, layout-only XLA ops).
    xp = jnp.pad(x_nchw, ((0, 0), (0, 0), (1, 1), (1, 1)))        # (N,C,Hp,Wp)
    xf = jnp.transpose(xp, (1, 0, 2, 3)).reshape(Cin, N, S)       # (C,N,S)
    xb = jnp.pad(xf, ((0, 0), (0, 0), (2 * M, 2 * M))).astype(jnp.bfloat16)

    # Interior-pixel mask over the margin-extended intermediate frame.
    m2d = np.zeros((Hp, Wp), np.float32)
    m2d[1:H + 1, 1:W + 1] = 1.0
    mask_np = np.zeros((1, S + 2 * M), np.float32)
    mask_np[0, M:M + S] = m2d.reshape(-1)
    mask = jnp.asarray(mask_np)

    kernel = _make_resblock_kernel(H, W, Cin, Cout)

    def smem_spec():
        return pl.BlockSpec(memory_space=pltpu.MemorySpace.SMEM)

    out = pl.pallas_call(
        kernel,
        out_shape=jax.ShapeDtypeStruct((Cout, N, S), f32),
        grid_spec=pltpu.PrefetchScalarGridSpec(
            num_scalar_prefetch=0,
            grid=(N // nb,),
            in_specs=[
                pl.BlockSpec((Cin, nb, S + 4 * M), lambda b: (0, b, 0)),
                pl.BlockSpec((1, S + 2 * M), lambda b: (0, 0)),
                smem_spec(),   # w1 (folded)
                smem_spec(),   # b1
                smem_spec(),   # w2 (folded)
                smem_spec(),   # b2
            ],
            out_specs=pl.BlockSpec((Cout, nb, S), lambda b: (0, b, 0)),
        ),
        compiler_params=pltpu.CompilerParams(
            dimension_semantics=("parallel",),   # batch axis -> both TCs on v7x
            vmem_limit_bytes=vmem_limit_bytes,
        ),
    )(xb, mask, w1f, b1v, w2f, b2v)

    # (Cout, N, S) padded-frame flat -> NCHW interior
    out = out.reshape(Cout, N, Hp, Wp)[:, :, 1:H + 1, 1:W + 1]
    return jnp.transpose(out, (1, 0, 2, 3))


def _reference_block(x_nchw, w1, s1, b1, w2, s2, b2):
    """Pure-JAX reference (lax conv, full f32) for correctness checks."""
    x = jnp.transpose(x_nchw, (0, 2, 3, 1))
    dn = ("NHWC", "HWIO", "NHWC")
    h = lax.conv_general_dilated(x, w1, (1, 1), "SAME", dimension_numbers=dn,
                                 precision=lax.Precision.HIGHEST)
    h = jnp.maximum(h * s1 + b1, 0.0)
    y = lax.conv_general_dilated(h, w2, (1, 1), "SAME", dimension_numbers=dn,
                                 precision=lax.Precision.HIGHEST)
    y = jnp.maximum(y * s2 + b2 + x, 0.0)
    return jnp.transpose(y, (0, 3, 1, 2))


if __name__ == "__main__":
    # Small shapes: batch=2, in_channels=out_channels=4, spatial=16x16, stride=1
    N, C, H, W = 2, 4, 16, 16
    eps = 1e-5

    key = jax.random.PRNGKey(0)
    kx, kw1, kw2, kg1, kb1, kg2, kb2 = jax.random.split(key, 7)

    x = jax.random.normal(kx, (N, C, H, W), jnp.float32)          # NCHW input

    # Conv weights (HWIO), bias=False as in the PyTorch module
    w1 = jax.random.normal(kw1, (3, 3, C, C), jnp.float32) * 0.1
    w2 = jax.random.normal(kw2, (3, 3, C, C), jnp.float32) * 0.1

    # BatchNorm (eval mode): running_mean=0, running_var=1, affine gamma/beta
    gamma1 = 1.0 + 0.1 * jax.random.normal(kg1, (C,), jnp.float32)
    beta1 = 0.1 * jax.random.normal(kb1, (C,), jnp.float32)
    gamma2 = 1.0 + 0.1 * jax.random.normal(kg2, (C,), jnp.float32)
    beta2 = 0.1 * jax.random.normal(kb2, (C,), jnp.float32)
    run_mean = jnp.zeros((C,), jnp.float32)
    run_var = jnp.ones((C,), jnp.float32)

    inv1 = gamma1 / jnp.sqrt(run_var + eps)
    inv2 = gamma2 / jnp.sqrt(run_var + eps)
    s1 = inv1
    b1 = beta1 - run_mean * inv1
    s2 = inv2
    b2 = beta2 - run_mean * inv2

    out = jax.block_until_ready(residual_block(x, w1, s1, b1, w2, s2, b2))
    assert out.shape == (N, C, H, W)

    # Tight check: same math on the bf16-quantized input the kernel consumes
    # (kernel accumulates in f32; only summation order / BN folding differ).
    x_q = x.astype(jnp.bfloat16).astype(jnp.float32)
    ref_q = jax.block_until_ready(_reference_block(x_q, w1, s1, b1, w2, s2, b2))
    assert jnp.allclose(out, ref_q, atol=5e-4, rtol=5e-4), \
        "mismatch vs bf16-input reference"

    # Loose sanity check vs full-f32 module semantics: the only deviation is
    # the deliberate bf16 quantization of the activations at the kernel edge.
    ref = jax.block_until_ready(_reference_block(x, w1, s1, b1, w2, s2, b2))
    assert jnp.allclose(out, ref, atol=5e-2, rtol=5e-2), \
        "mismatch vs f32 reference"

    print("KERNEL_OK")
</pallas_src>

<mosaic_0001>
module attributes {stable_mosaic.version = 11 : i64} {
  func.func @kernel(%arg0: i32, %arg1: memref<4x2x400xbf16, #tpu.memory_space<vmem>>, %arg2: memref<1x362xf32, #tpu.memory_space<vmem>>, %arg3: memref<144xf32, #tpu.memory_space<smem>>, %arg4: memref<4xf32, #tpu.memory_space<smem>>, %arg5: memref<144xf32, #tpu.memory_space<smem>>, %arg6: memref<4xf32, #tpu.memory_space<smem>>, %arg7: memref<4x2x324xf32, #tpu.memory_space<vmem>>) attributes {dimension_semantics = [#tpu.dimension_semantics<parallel>], iteration_bounds = array<i64: 1>, scalar_prefetch = 0 : i64, scratch_operands = 0 : i64, tpu.core_type = #tpu.core_type<tc>, window_params = [{transform_indices = @transform_0, window_bounds = array<i64: 4, 2, 400>}, {pipeline_mode = #tpu.pipeline_mode<synchronous>, transform_indices = @transform_1, window_bounds = array<i64: 1, 362>}, {transform_indices = @transform_2, window_bounds = array<i64: 144>}, {transform_indices = @transform_3, window_bounds = array<i64: 4>}, {transform_indices = @transform_4, window_bounds = array<i64: 144>}, {transform_indices = @transform_5, window_bounds = array<i64: 4>}, {transform_indices = @transform_6, window_bounds = array<i64: 4, 2, 324>}]} {
    %c0 = arith.constant 0 : index
    %c0_0 = arith.constant 0 : index
    %c0_1 = arith.constant 0 : index
    %0 = vector.load %arg1[%c0, %c0_0, %c0_1] : memref<4x2x400xbf16, #tpu.memory_space<vmem>>, vector<4x2x400xbf16>
    %1 = vector.extract_strided_slice %0 {offsets = [0, 0, 0], sizes = [1, 2, 400], strides = [1, 1, 1]} : vector<4x2x400xbf16> to vector<1x2x400xbf16>
    %2 = vector.shape_cast %1 : vector<1x2x400xbf16> to vector<2x400xbf16>
    %3 = vector.extract_strided_slice %0 {offsets = [1, 0, 0], sizes = [1, 2, 400], strides = [1, 1, 1]} : vector<4x2x400xbf16> to vector<1x2x400xbf16>
    %4 = vector.shape_cast %3 : vector<1x2x400xbf16> to vector<2x400xbf16>
    %5 = vector.extract_strided_slice %0 {offsets = [2, 0, 0], sizes = [1, 2, 400], strides = [1, 1, 1]} : vector<4x2x400xbf16> to vector<1x2x400xbf16>
    %6 = vector.shape_cast %5 : vector<1x2x400xbf16> to vector<2x400xbf16>
    %7 = vector.extract_strided_slice %0 {offsets = [3, 0, 0], sizes = [1, 2, 400], strides = [1, 1, 1]} : vector<4x2x400xbf16> to vector<1x2x400xbf16>
    %8 = vector.shape_cast %7 : vector<1x2x400xbf16> to vector<2x400xbf16>
    %c0_2 = arith.constant 0 : index
    %c0_3 = arith.constant 0 : index
    %9 = vector.load %arg2[%c0_2, %c0_3] : memref<1x362xf32, #tpu.memory_space<vmem>>, vector<1x362xf32>
    %10 = vector.extract_strided_slice %9 {offsets = [0, 19], sizes = [1, 324], strides = [1, 1]} : vector<1x362xf32> to vector<1x324xf32>
    %cst = arith.constant 0.000000e+00 : f32
    %11 = vector.broadcast %cst : f32 to vector<2x362xf32>
    %cst_4 = arith.constant 0.000000e+00 : f32
    %12 = vector.broadcast %cst_4 : f32 to vector<2x362xf32>
    %cst_5 = arith.constant 0.000000e+00 : f32
    %13 = vector.broadcast %cst_5 : f32 to vector<2x362xf32>
    %cst_6 = arith.constant 0.000000e+00 : f32
    %14 = vector.broadcast %cst_6 : f32 to vector<2x362xf32>
    %15 = vector.extract_strided_slice %2 {offsets = [0, 0], sizes = [2, 362], strides = [1, 1]} : vector<2x400xbf16> to vector<2x362xbf16>
    %16 = arith.extf %15 : vector<2x362xbf16> to vector<2x362xf32>
    %c0_7 = arith.constant 0 : index
    %17 = memref.load %arg3[%c0_7] : memref<144xf32, #tpu.memory_space<smem>>
    %18 = vector.broadcast %17 : f32 to vector<2x362xf32>
    %19 = arith.mulf %16, %18 : vector<2x362xf32>
    %20 = arith.addf %11, %19 : vector<2x362xf32>
    %c1 = arith.constant 1 : index
    %21 = memref.load %arg3[%c1] : memref<144xf32, #tpu.memory_space<smem>>
    %22 = vector.broadcast %21 : f32 to vector<2x362xf32>
    %23 = arith.mulf %16, %22 : vector<2x362xf32>
    %24 = arith.addf %12, %23 : vector<2x362xf32>
    %c2 = arith.constant 2 : index
    %25 = memref.load %arg3[%c2] : memref<144xf32, #tpu.memory_space<smem>>
    %26 = vector.broadcast %25 : f32 to vector<2x362xf32>
    %27 = arith.mulf %16, %26 : vector<2x362xf32>
    %28 = arith.addf %13, %27 : vector<2x362xf32>
    %c3 = arith.constant 3 : index
    %29 = memref.load %arg3[%c3] : memref<144xf32, #tpu.memory_space<smem>>
    %30 = vector.broadcast %29 : f32 to vector<2x362xf32>
    %31 = arith.mulf %16, %30 : vector<2x362xf32>
    %32 = arith.addf %14, %31 : vector<2x362xf32>
    %33 = vector.extract_strided_slice %4 {offsets = [0, 0], sizes = [2, 362], strides = [1, 1]} : vector<2x400xbf16> to vector<2x362xbf16>
    %34 = arith.extf %33 : vector<2x362xbf16> to vector<2x362xf32>
    %c4 = arith.constant 4 : index
    %35 = memref.load %arg3[%c4] : memref<144xf32, #tpu.memory_space<smem>>
    %36 = vector.broadcast %35 : f32 to vector<2x362xf32>
    %37 = arith.mulf %34, %36 : vector<2x362xf32>
    %38 = arith.addf %20, %37 : vector<2x362xf32>
    %c5 = arith.constant 5 : index
    %39 = memref.load %arg3[%c5] : memref<144xf32, #tpu.memory_space<smem>>
    %40 = vector.broadcast %39 : f32 to vector<2x362xf32>
    %41 = arith.mulf %34, %40 : vector<2x362xf32>
    %42 = arith.addf %24, %41 : vector<2x362xf32>
    %c6 = arith.constant 6 : index
    %43 = memref.load %arg3[%c6] : memref<144xf32, #tpu.memory_space<smem>>
    %44 = vector.broadcast %43 : f32 to vector<2x362xf32>
    %45 = arith.mulf %34, %44 : vector<2x362xf32>
    %46 = arith.addf %28, %45 : vector<2x362xf32>
    %c7 = arith.constant 7 : index
    %47 = memref.load %arg3[%c7] : memref<144xf32, #tpu.memory_space<smem>>
    %48 = vector.broadcast %47 : f32 to vector<2x362xf32>
    %49 = arith.mulf %34, %48 : vector<2x362xf32>
    %50 = arith.addf %32, %49 : vector<2x362xf32>
    %51 = vector.extract_strided_slice %6 {offsets = [0, 0], sizes = [2, 362], strides = [1, 1]} : vector<2x400xbf16> to vector<2x362xbf16>
    %52 = arith.extf %51 : vector<2x362xbf16> to vector<2x362xf32>
    %c8 = arith.constant 8 : index
    %53 = memref.load %arg3[%c8] : memref<144xf32, #tpu.memory_space<smem>>
    %54 = vector.broadcast %53 : f32 to vector<2x362xf32>
    %55 = arith.mulf %52, %54 : vector<2x362xf32>
    %56 = arith.addf %38, %55 : vector<2x362xf32>
    %c9 = arith.constant 9 : index
    %57 = memref.load %arg3[%c9] : memref<144xf32, #tpu.memory_space<smem>>
    %58 = vector.broadcast %57 : f32 to vector<2x362xf32>
    %59 = arith.mulf %52, %58 : vector<2x362xf32>
    %60 = arith.addf %42, %59 : vector<2x362xf32>
    %c10 = arith.constant 10 : index
    %61 = memref.load %arg3[%c10] : memref<144xf32, #tpu.memory_space<smem>>
    %62 = vector.broadcast %61 : f32 to vector<2x362xf32>
    %63 = arith.mulf %52, %62 : vector<2x362xf32>
    %64 = arith.addf %46, %63 : vector<2x362xf32>
    %c11 = arith.constant 11 : index
    %65 = memref.load %arg3[%c11] : memref<144xf32, #tpu.memory_space<smem>>
    %66 = vector.broadcast %65 : f32 to vector<2x362xf32>
    %67 = arith.mulf %52, %66 : vector<2x362xf32>
    %68 = arith.addf %50, %67 : vector<2x362xf32>
    %69 = vector.extract_strided_slice %8 {offsets = [0, 0], sizes = [2, 362], strides = [1, 1]} : vector<2x400xbf16> to vector<2x362xbf16>
    %70 = arith.extf %69 : vector<2x362xbf16> to vector<2x362xf32>
    %c12 = arith.constant 12 : index
    %71 = memref.load %arg3[%c12] : memref<144xf32, #tpu.memory_space<smem>>
    %72 = vector.broadcast %71 : f32 to vector<2x362xf32>
    %73 = arith.mulf %70, %72 : vector<2x362xf32>
    %74 = arith.addf %56, %73 : vector<2x362xf32>
    %c13 = arith.constant 13 : index
    %75 = memref.load %arg3[%c13] : memref<144xf32, #tpu.memory_space<smem>>
    %76 = vector.broadcast %75 : f32 to vector<2x362xf32>
    %77 = arith.mulf %70, %76 : vector<2x362xf32>
    %78 = arith.addf %60, %77 : vector<2x362xf32>
    %c14 = arith.constant 14 : index
    %79 = memref.load %arg3[%c14] : memref<144xf32, #tpu.memory_space<smem>>
    %80 = vector.broadcast %79 : f32 to vector<2x362xf32>
    %81 = arith.mulf %70, %80 : vector<2x362xf32>
    %82 = arith.addf %64, %81 : vector<2x362xf32>
    %c15 = arith.constant 15 : index
    %83 = memref.load %arg3[%c15] : memref<144xf32, #tpu.memory_space<smem>>
    %84 = vector.broadcast %83 : f32 to vector<2x362xf32>
    %85 = arith.mulf %70, %84 : vector<2x362xf32>
    %86 = arith.addf %68, %85 : vector<2x362xf32>
    %87 = vector.extract_strided_slice %2 {offsets = [0, 1], sizes = [2, 362], strides = [1, 1]} : vector<2x400xbf16> to vector<2x362xbf16>
    %88 = arith.extf %87 : vector<2x362xbf16> to vector<2x362xf32>
    %c16 = arith.constant 16 : index
    %89 = memref.load %arg3[%c16] : memref<144xf32, #tpu.memory_space<smem>>
    %90 = vector.broadcast %89 : f32 to vector<2x362xf32>
    %91 = arith.mulf %88, %90 : vector<2x362xf32>
    %92 = arith.addf %74, %91 : vector<2x362xf32>
    %c17 = arith.constant 17 : index
    %93 = memref.load %arg3[%c17] : memref<144xf32, #tpu.memory_space<smem>>
    %94 = vector.broadcast %93 : f32 to vector<2x362xf32>
    %95 = arith.mulf %88, %94 : vector<2x362xf32>
    %96 = arith.addf %78, %95 : vector<2x362xf32>
    %c18 = arith.constant 18 : index
    %97 = memref.load %arg3[%c18] : memref<144xf32, #tpu.memory_space<smem>>
    %98 = vector.broadcast %97 : f32 to vector<2x362xf32>
    %99 = arith.mulf %88, %98 : vector<2x362xf32>
    %100 = arith.addf %82, %99 : vector<2x362xf32>
    %c19 = arith.constant 19 : index
    %101 = memref.load %arg3[%c19] : memref<144xf32, #tpu.memory_space<smem>>
    %102 = vector.broadcast %101 : f32 to vector<2x362xf32>
    %103 = arith.mulf %88, %102 : vector<2x362xf32>
    %104 = arith.addf %86, %103 : vector<2x362xf32>
    %105 = vector.extract_strided_slice %4 {offsets = [0, 1], sizes = [2, 362], strides = [1, 1]} : vector<2x400xbf16> to vector<2x362xbf16>
    %106 = arith.extf %105 : vector<2x362xbf16> to vector<2x362xf32>
    %c20 = arith.constant 20 : index
    %107 = memref.load %arg3[%c20] : memref<144xf32, #tpu.memory_space<smem>>
    %108 = vector.broadcast %107 : f32 to vector<2x362xf32>
    %109 = arith.mulf %106, %108 : vector<2x362xf32>
    %110 = arith.addf %92, %109 : vector<2x362xf32>
    %c21 = arith.constant 21 : index
    %111 = memref.load %arg3[%c21] : memref<144xf32, #tpu.memory_space<smem>>
    %112 = vector.broadcast %111 : f32 to vector<2x362xf32>
    %113 = arith.mulf %106, %112 : vector<2x362xf32>
    %114 = arith.addf %96, %113 : vector<2x362xf32>
    %c22 = arith.constant 22 : index
    %115 = memref.load %arg3[%c22] : memref<144xf32, #tpu.memory_space<smem>>
    %116 = vector.broadcast %115 : f32 to vector<2x362xf32>
    %117 = arith.mulf %106, %116 : vector<2x362xf32>
    %118 = arith.addf %100, %117 : vector<2x362xf32>
    %c23 = arith.constant 23 : index
    %119 = memref.load %arg3[%c23] : memref<144xf32, #tpu.memory_space<smem>>
    %120 = vector.broadcast %119 : f32 to vector<2x362xf32>
    %121 = arith.mulf %106, %120 : vector<2x362xf32>
    %122 = arith.addf %104, %121 : vector<2x362xf32>
    %123 = vector.extract_strided_slice %6 {offsets = [0, 1], sizes = [2, 362], strides = [1, 1]} : vector<2x400xbf16> to vector<2x362xbf16>
    %124 = arith.extf %123 : vector<2x362xbf16> to vector<2x362xf32>
    %c24 = arith.constant 24 : index
    %125 = memref.load %arg3[%c24] : memref<144xf32, #tpu.memory_space<smem>>
    %126 = vector.broadcast %125 : f32 to vector<2x362xf32>
    %127 = arith.mulf %124, %126 : vector<2x362xf32>
    %128 = arith.addf %110, %127 : vector<2x362xf32>
    %c25 = arith.constant 25 : index
    %129 = memref.load %arg3[%c25] : memref<144xf32, #tpu.memory_space<smem>>
    %130 = vector.broadcast %129 : f32 to vector<2x362xf32>
    %131 = arith.mulf %124, %130 : vector<2x362xf32>
    %132 = arith.addf %114, %131 : vector<2x362xf32>
    %c26 = arith.constant 26 : index
    %133 = memref.load %arg3[%c26] : memref<144xf32, #tpu.memory_space<smem>>
    %134 = vector.broadcast %133 : f32 to vector<2x362xf32>
    %135 = arith.mulf %124, %134 : vector<2x362xf32>
    %136 = arith.addf %118, %135 : vector<2x362xf32>
    %c27 = arith.constant 27 : index
    %137 = memref.load %arg3[%c27] : memref<144xf32, #tpu.memory_space<smem>>
    %138 = vector.broadcast %137 : f32 to vector<2x362xf32>
    %139 = arith.mulf %124, %138 : vector<2x362xf32>
    %140 = arith.addf %122, %139 : vector<2x362xf32>
    %141 = vector.extract_strided_slice %8 {offsets = [0, 1], sizes = [2, 362], strides = [1, 1]} : vector<2x400xbf16> to vector<2x362xbf16>
    %142 = arith.extf %141 : vector<2x362xbf16> to vector<2x362xf32>
    %c28 = arith.constant 28 : index
    %143 = memref.load %arg3[%c28] : memref<144xf32, #tpu.memory_space<smem>>
    %144 = vector.broadcast %143 : f32 to vector<2x362xf32>
    %145 = arith.mulf %142, %144 : vector<2x362xf32>
    %146 = arith.addf %128, %145 : vector<2x362xf32>
    %c29 = arith.constant 29 : index
    %147 = memref.load %arg3[%c29] : memref<144xf32, #tpu.memory_space<smem>>
    %148 = vector.broadcast %147 : f32 to vector<2x362xf32>
    %149 = arith.mulf %142, %148 : vector<2x362xf32>
    %150 = arith.addf %132, %149 : vector<2x362xf32>
    %c30 = arith.constant 30 : index
    %151 = memref.load %arg3[%c30] : memref<144xf32, #tpu.memory_space<smem>>
    %152 = vector.broadcast %151 : f32 to vector<2x362xf32>
    %153 = arith.mulf %142, %152 : vector<2x362xf32>
    %154 = arith.addf %136, %153 : vector<2x362xf32>
    %c31 = arith.constant 31 : index
    %155 = memref.load %arg3[%c31] : memref<144xf32, #tpu.memory_space<smem>>
    %156 = vector.broadcast %155 : f32 to vector<2x362xf32>
    %157 = arith.mulf %142, %156 : vector<2x362xf32>
    %158 = arith.addf %140, %157 : vector<2x362xf32>
    %159 = vector.extract_strided_slice %2 {offsets = [0, 2], sizes = [2, 362], strides = [1, 1]} : vector<2x400xbf16> to vector<2x362xbf16>
    %160 = arith.extf %159 : vector<2x362xbf16> to vector<2x362xf32>
    %c32 = arith.constant 32 : index
    %161 = memref.load %arg3[%c32] : memref<144xf32, #tpu.memory_space<smem>>
    %162 = vector.broadcast %161 : f32 to vector<2x362xf32>
    %163 = arith.mulf %160, %162 : vector<2x362xf32>
    %164 = arith.addf %146, %163 : vector<2x362xf32>
    %c33 = arith.constant 33 : index
    %165 = memref.load %arg3[%c33] : memref<144xf32, #tpu.memory_space<smem>>
    %166 = vector.broadcast %165 : f32 to vector<2x362xf32>
    %167 = arith.mulf %160, %166 : vector<2x362xf32>
    %168 = arith.addf %150, %167 : vector<2x362xf32>
    %c34 = arith.constant 34 : index
    %169 = memref.load %arg3[%c34] : memref<144xf32, #tpu.memory_space<smem>>
    %170 = vector.broadcast %169 : f32 to vector<2x362xf32>
    %171 = arith.mulf %160, %170 : vector<2x362xf32>
    %172 = arith.addf %154, %171 : vector<2x362xf32>
    %c35 = arith.constant 35 : index
    %173 = memref.load %arg3[%c35] : memref<144xf32, #tpu.memory_space<smem>>
    %174 = vector.broadcast %173 : f32 to vector<2x362xf32>
    %175 = arith.mulf %160, %174 : vector<2x362xf32>
    %176 = arith.addf %158, %175 : vector<2x362xf32>
    %177 = vector.extract_strided_slice %4 {offsets = [0, 2], sizes = [2, 362], strides = [1, 1]} : vector<2x400xbf16> to vector<2x362xbf16>
    %178 = arith.extf %177 : vector<2x362xbf16> to vector<2x362xf32>
    %c36 = arith.constant 36 : index
    %179 = memref.load %arg3[%c36] : memref<144xf32, #tpu.memory_space<smem>>
    %180 = vector.broadcast %179 : f32 to vector<2x362xf32>
    %181 = arith.mulf %178, %180 : vector<2x362xf32>
    %182 = arith.addf %164, %181 : vector<2x362xf32>
    %c37 = arith.constant 37 : index
    %183 = memref.load %arg3[%c37] : memref<144xf32, #tpu.memory_space<smem>>
    %184 = vector.broadcast %183 : f32 to vector<2x362xf32>
    %185 = arith.mulf %178, %184 : vector<2x362xf32>
    %186 = arith.addf %168, %185 : vector<2x362xf32>
    %c38 = arith.constant 38 : index
    %187 = memref.load %arg3[%c38] : memref<144xf32, #tpu.memory_space<smem>>
    %188 = vector.broadcast %187 : f32 to vector<2x362xf32>
    %189 = arith.mulf %178, %188 : vector<2x362xf32>
    %190 = arith.addf %172, %189 : vector<2x362xf32>
    %c39 = arith.constant 39 : index
    %191 = memref.load %arg3[%c39] : memref<144xf32, #tpu.memory_space<smem>>
    %192 = vector.broadcast %191 : f32 to vector<2x362xf32>
    %193 = arith.mulf %178, %192 : vector<2x362xf32>
    %194 = arith.addf %176, %193 : vector<2x362xf32>
    %195 = vector.extract_strided_slice %6 {offsets = [0, 2], sizes = [2, 362], strides = [1, 1]} : vector<2x400xbf16> to vector<2x362xbf16>
    %196 = arith.extf %195 : vector<2x362xbf16> to vector<2x362xf32>
    %c40 = arith.constant 40 : index
    %197 = memref.load %arg3[%c40] : memref<144xf32, #tpu.memory_space<smem>>
    %198 = vector.broadcast %197 : f32 to vector<2x362xf32>
    %199 = arith.mulf %196, %198 : vector<2x362xf32>
    %200 = arith.addf %182, %199 : vector<2x362xf32>
    %c41 = arith.constant 41 : index
    %201 = memref.load %arg3[%c41] : memref<144xf32, #tpu.memory_space<smem>>
    %202 = vector.broadcast %201 : f32 to vector<2x362xf32>
    %203 = arith.mulf %196, %202 : vector<2x362xf32>
    %204 = arith.addf %186, %203 : vector<2x362xf32>
    %c42 = arith.constant 42 : index
    %205 = memref.load %arg3[%c42] : memref<144xf32, #tpu.memory_space<smem>>
    %206 = vector.broadcast %205 : f32 to vector<2x362xf32>
    %207 = arith.mulf %196, %206 : vector<2x362xf32>
    %208 = arith.addf %190, %207 : vector<2x362xf32>
    %c43 = arith.constant 43 : index
    %209 = memref.load %arg3[%c43] : memref<144xf32, #tpu.memory_space<smem>>
    %210 = vector.broadcast %209 : f32 to vector<2x362xf32>
    %211 = arith.mulf %196, %210 : vector<2x362xf32>
    %212 = arith.addf %194, %211 : vector<2x362xf32>
    %213 = vector.extract_strided_slice %8 {offsets = [0, 2], sizes = [2, 362], strides = [1, 1]} : vector<2x400xbf16> to vector<2x362xbf16>
    %214 = arith.extf %213 : vector<2x362xbf16> to vector<2x362xf32>
    %c44 = arith.constant 44 : index
    %215 = memref.load %arg3[%c44] : memref<144xf32, #tpu.memory_space<smem>>
    %216 = vector.broadcast %215 : f32 to vector<2x362xf32>
    %217 = arith.mulf %214, %216 : vector<2x362xf32>
    %218 = arith.addf %200, %217 : vector<2x362xf32>
    %c45 = arith.constant 45 : index
    %219 = memref.load %arg3[%c45] : memref<144xf32, #tpu.memory_space<smem>>
    %220 = vector.broadcast %219 : f32 to vector<2x362xf32>
    %221 = arith.mulf %214, %220 : vector<2x362xf32>
    %222 = arith.addf %204, %221 : vector<2x362xf32>
    %c46 = arith.constant 46 : index
    %223 = memref.load %arg3[%c46] : memref<144xf32, #tpu.memory_space<smem>>
    %224 = vector.broadcast %223 : f32 to vector<2x362xf32>
    %225 = arith.mulf %214, %224 : vector<2x362xf32>
    %226 = arith.addf %208, %225 : vector<2x362xf32>
    %c47 = arith.constant 47 : index
    %227 = memref.load %arg3[%c47] : memref<144xf32, #tpu.memory_space<smem>>
    %228 = vector.broadcast %227 : f32 to vector<2x362xf32>
    %229 = arith.mulf %214, %228 : vector<2x362xf32>
    %230 = arith.addf %212, %229 : vector<2x362xf32>
    %231 = vector.extract_strided_slice %2 {offsets = [0, 18], sizes = [2, 362], strides = [1, 1]} : vector<2x400xbf16> to vector<2x362xbf16>
    %232 = arith.extf %231 : vector<2x362xbf16> to vector<2x362xf32>
    %c48 = arith.constant 48 : index
    %233 = memref.load %arg3[%c48] : memref<144xf32, #tpu.memory_space<smem>>
    %234 = vector.broadcast %233 : f32 to vector<2x362xf32>
    %235 = arith.mulf %232, %234 : vector<2x362xf32>
    %236 = arith.addf %218, %235 : vector<2x362xf32>
    %c49 = arith.constant 49 : index
    %237 = memref.load %arg3[%c49] : memref<144xf32, #tpu.memory_space<smem>>
    %238 = vector.broadcast %237 : f32 to vector<2x362xf32>
    %239 = arith.mulf %232, %238 : vector<2x362xf32>
    %240 = arith.addf %222, %239 : vector<2x362xf32>
    %c50 = arith.constant 50 : index
    %241 = memref.load %arg3[%c50] : memref<144xf32, #tpu.memory_space<smem>>
    %242 = vector.broadcast %241 : f32 to vector<2x362xf32>
    %243 = arith.mulf %232, %242 : vector<2x362xf32>
    %244 = arith.addf %226, %243 : vector<2x362xf32>
    %c51 = arith.constant 51 : index
    %245 = memref.load %arg3[%c51] : memref<144xf32, #tpu.memory_space<smem>>
    %246 = vector.broadcast %245 : f32 to vector<2x362xf32>
    %247 = arith.mulf %232, %246 : vector<2x362xf32>
    %248 = arith.addf %230, %247 : vector<2x362xf32>
    %249 = vector.extract_strided_slice %4 {offsets = [0, 18], sizes = [2, 362], strides = [1, 1]} : vector<2x400xbf16> to vector<2x362xbf16>
    %250 = arith.extf %249 : vector<2x362xbf16> to vector<2x362xf32>
    %c52 = arith.constant 52 : index
    %251 = memref.load %arg3[%c52] : memref<144xf32, #tpu.memory_space<smem>>
    %252 = vector.broadcast %251 : f32 to vector<2x362xf32>
    %253 = arith.mulf %250, %252 : vector<2x362xf32>
    %254 = arith.addf %236, %253 : vector<2x362xf32>
    %c53 = arith.constant 53 : index
    %255 = memref.load %arg3[%c53] : memref<144xf32, #tpu.memory_space<smem>>
    %256 = vector.broadcast %255 : f32 to vector<2x362xf32>
    %257 = arith.mulf %250, %256 : vector<2x362xf32>
    %258 = arith.addf %240, %257 : vector<2x362xf32>
    %c54 = arith.constant 54 : index
    %259 = memref.load %arg3[%c54] : memref<144xf32, #tpu.memory_space<smem>>
    %260 = vector.broadcast %259 : f32 to vector<2x362xf32>
    %261 = arith.mulf %250, %260 : vector<2x362xf32>
    %262 = arith.addf %244, %261 : vector<2x362xf32>
    %c55 = arith.constant 55 : index
    %263 = memref.load %arg3[%c55] : memref<144xf32, #tpu.memory_space<smem>>
    %264 = vector.broadcast %263 : f32 to vector<2x362xf32>
    %265 = arith.mulf %250, %264 : vector<2x362xf32>
    %266 = arith.addf %248, %265 : vector<2x362xf32>
    %267 = vector.extract_strided_slice %6 {offsets = [0, 18], sizes = [2, 362], strides = [1, 1]} : vector<2x400xbf16> to vector<2x362xbf16>
    %268 = arith.extf %267 : vector<2x362xbf16> to vector<2x362xf32>
    %c56 = arith.constant 56 : index
    %269 = memref.load %arg3[%c56] : memref<144xf32, #tpu.memory_space<smem>>
    %270 = vector.broadcast %269 : f32 to vector<2x362xf32>
    %271 = arith.mulf %268, %270 : vector<2x362xf32>
    %272 = arith.addf %254, %271 : vector<2x362xf32>
    %c57 = arith.constant 57 : index
    %273 = memref.load %arg3[%c57] : memref<144xf32, #tpu.memory_space<smem>>
    %274 = vector.broadcast %273 : f32 to vector<2x362xf32>
    %275 = arith.mulf %268, %274 : vector<2x362xf32>
    %276 = arith.addf %258, %275 : vector<2x362xf32>
    %c58 = arith.constant 58 : index
    %277 = memref.load %arg3[%c58] : memref<144xf32, #tpu.memory_space<smem>>
    %278 = vector.broadcast %277 : f32 to vector<2x362xf32>
    %279 = arith.mulf %268, %278 : vector<2x362xf32>
    %280 = arith.addf %262, %279 : vector<2x362xf32>
    %c59 = arith.constant 59 : index
    %281 = memref.load %arg3[%c59] : memref<144xf32, #tpu.memory_space<smem>>
    %282 = vector.broadcast %281 : f32 to vector<2x362xf32>
    %283 = arith.mulf %268, %282 : vector<2x362xf32>
    %284 = arith.addf %266, %283 : vector<2x362xf32>
    %285 = vector.extract_strided_slice %8 {offsets = [0, 18], sizes = [2, 362], strides = [1, 1]} : vector<2x400xbf16> to vector<2x362xbf16>
    %286 = arith.extf %285 : vector<2x362xbf16> to vector<2x362xf32>
    %c60 = arith.constant 60 : index
    %287 = memref.load %arg3[%c60] : memref<144xf32, #tpu.memory_space<smem>>
    %288 = vector.broadcast %287 : f32 to vector<2x362xf32>
    %289 = arith.mulf %286, %288 : vector<2x362xf32>
    %290 = arith.addf %272, %289 : vector<2x362xf32>
    %c61 = arith.constant 61 : index
    %291 = memref.load %arg3[%c61] : memref<144xf32, #tpu.memory_space<smem>>
    %292 = vector.broadcast %291 : f32 to vector<2x362xf32>
    %293 = arith.mulf %286, %292 : vector<2x362xf32>
    %294 = arith.addf %276, %293 : vector<2x362xf32>
    %c62 = arith.constant 62 : index
    %295 = memref.load %arg3[%c62] : memref<144xf32, #tpu.memory_space<smem>>
    %296 = vector.broadcast %295 : f32 to vector<2x362xf32>
    %297 = arith.mulf %286, %296 : vector<2x362xf32>
    %298 = arith.addf %280, %297 : vector<2x362xf32>
    %c63 = arith.constant 63 : index
    %299 = memref.load %arg3[%c63] : memref<144xf32, #tpu.memory_space<smem>>
    %300 = vector.broadcast %299 : f32 to vector<2x362xf32>
    %301 = arith.mulf %286, %300 : vector<2x362xf32>
    %302 = arith.addf %284, %301 : vector<2x362xf32>
    %303 = vector.extract_strided_slice %2 {offsets = [0, 19], sizes = [2, 362], strides = [1, 1]} : vector<2x400xbf16> to vector<2x362xbf16>
    %304 = arith.extf %303 : vector<2x362xbf16> to vector<2x362xf32>
    %c64 = arith.constant 64 : index
    %305 = memref.load %arg3[%c64] : memref<144xf32, #tpu.memory_space<smem>>
    %306 = vector.broadcast %305 : f32 to vector<2x362xf32>
    %307 = arith.mulf %304, %306 : vector<2x362xf32>
    %308 = arith.addf %290, %307 : vector<2x362xf32>
    %c65 = arith.constant 65 : index
    %309 = memref.load %arg3[%c65] : memref<144xf32, #tpu.memory_space<smem>>
    %310 = vector.broadcast %309 : f32 to vector<2x362xf32>
    %311 = arith.mulf %304, %310 : vector<2x362xf32>
    %312 = arith.addf %294, %311 : vector<2x362xf32>
    %c66 = arith.constant 66 : index
    %313 = memref.load %arg3[%c66] : memref<144xf32, #tpu.memory_space<smem>>
    %314 = vector.broadcast %313 : f32 to vector<2x362xf32>
    %315 = arith.mulf %304, %314 : vector<2x362xf32>
    %316 = arith.addf %298, %315 : vector<2x362xf32>
    %c67 = arith.constant 67 : index
    %317 = memref.load %arg3[%c67] : memref<144xf32, #tpu.memory_space<smem>>
    %318 = vector.broadcast %317 : f32 to vector<2x362xf32>
    %319 = arith.mulf %304, %318 : vector<2x362xf32>
    %320 = arith.addf %302, %319 : vector<2x362xf32>
    %321 = vector.extract_strided_slice %4 {offsets = [0, 19], sizes = [2, 362], strides = [1, 1]} : vector<2x400xbf16> to vector<2x362xbf16>
    %322 = arith.extf %321 : vector<2x362xbf16> to vector<2x362xf32>
    %c68 = arith.constant 68 : index
    %323 = memref.load %arg3[%c68] : memref<144xf32, #tpu.memory_space<smem>>
    %324 = vector.broadcast %323 : f32 to vector<2x362xf32>
    %325 = arith.mulf %322, %324 : vector<2x362xf32>
    %326 = arith.addf %308, %325 : vector<2x362xf32>
    %c69 = arith.constant 69 : index
    %327 = memref.load %arg3[%c69] : memref<144xf32, #tpu.memory_space<smem>>
    %328 = vector.broadcast %327 : f32 to vector<2x362xf32>
    %329 = arith.mulf %322, %328 : vector<2x362xf32>
    %330 = arith.addf %312, %329 : vector<2x362xf32>
    %c70 = arith.constant 70 : index
    %331 = memref.load %arg3[%c70] : memref<144xf32, #tpu.memory_space<smem>>
    %332 = vector.broadcast %331 : f32 to vector<2x362xf32>
    %333 = arith.mulf %322, %332 : vector<2x362xf32>
    %334 = arith.addf %316, %333 : vector<2x362xf32>
    %c71 = arith.constant 71 : index
    %335 = memref.load %arg3[%c71] : memref<144xf32, #tpu.memory_space<smem>>
    %336 = vector.broadcast %335 : f32 to vector<2x362xf32>
    %337 = arith.mulf %322, %336 : vector<2x362xf32>
    %338 = arith.addf %320, %337 : vector<2x362xf32>
    %339 = vector.extract_strided_slice %6 {offsets = [0, 19], sizes = [2, 362], strides = [1, 1]} : vector<2x400xbf16> to vector<2x362xbf16>
    %340 = arith.extf %339 : vector<2x362xbf16> to vector<2x362xf32>
    %c72 = arith.constant 72 : index
    %341 = memref.load %arg3[%c72] : memref<144xf32, #tpu.memory_space<smem>>
    %342 = vector.broadcast %341 : f32 to vector<2x362xf32>
    %343 = arith.mulf %340, %342 : vector<2x362xf32>
    %344 = arith.addf %326, %343 : vector<2x362xf32>
    %c73 = arith.constant 73 : index
    %345 = memref.load %arg3[%c73] : memref<144xf32, #tpu.memory_space<smem>>
    %346 = vector.broadcast %345 : f32 to vector<2x362xf32>
    %347 = arith.mulf %340, %346 : vector<2x362xf32>
    %348 = arith.addf %330, %347 : vector<2x362xf32>
    %c74 = arith.constant 74 : index
    %349 = memref.load %arg3[%c74] : memref<144xf32, #tpu.memory_space<smem>>
    %350 = vector.broadcast %349 : f32 to vector<2x362xf32>
    %351 = arith.mulf %340, %350 : vector<2x362xf32>
    %352 = arith.addf %334, %351 : vector<2x362xf32>
    %c75 = arith.constant 75 : index
    %353 = memref.load %arg3[%c75] : memref<144xf32, #tpu.memory_space<smem>>
    %354 = vector.broadcast %353 : f32 to vector<2x362xf32>
    %355 = arith.mulf %340, %354 : vector<2x362xf32>
    %356 = arith.addf %338, %355 : vector<2x362xf32>
    %357 = vector.extract_strided_slice %8 {offsets = [0, 19], sizes = [2, 362], strides = [1, 1]} : vector<2x400xbf16> to vector<2x362xbf16>
    %358 = arith.extf %357 : vector<2x362xbf16> to vector<2x362xf32>
    %c76 = arith.constant 76 : index
    %359 = memref.load %arg3[%c76] : memref<144xf32, #tpu.memory_space<smem>>
    %360 = vector.broadcast %359 : f32 to vector<2x362xf32>
    %361 = arith.mulf %358, %360 : vector<2x362xf32>
    %362 = arith.addf %344, %361 : vector<2x362xf32>
    %c77 = arith.constant 77 : index
    %363 = memref.load %arg3[%c77] : memref<144xf32, #tpu.memory_space<smem>>
    %364 = vector.broadcast %363 : f32 to vector<2x362xf32>
    %365 = arith.mulf %358, %364 : vector<2x362xf32>
    %366 = arith.addf %348, %365 : vector<2x362xf32>
    %c78 = arith.constant 78 : index
    %367 = memref.load %arg3[%c78] : memref<144xf32, #tpu.memory_space<smem>>
    %368 = vector.broadcast %367 : f32 to vector<2x362xf32>
    %369 = arith.mulf %358, %368 : vector<2x362xf32>
    %370 = arith.addf %352, %369 : vector<2x362xf32>
    %c79 = arith.constant 79 : index
    %371 = memref.load %arg3[%c79] : memref<144xf32, #tpu.memory_space<smem>>
    %372 = vector.broadcast %371 : f32 to vector<2x362xf32>
    %373 = arith.mulf %358, %372 : vector<2x362xf32>
    %374 = arith.addf %356, %373 : vector<2x362xf32>
    %375 = vector.extract_strided_slice %2 {offsets = [0, 20], sizes = [2, 362], strides = [1, 1]} : vector<2x400xbf16> to vector<2x362xbf16>
    %376 = arith.extf %375 : vector<2x362xbf16> to vector<2x362xf32>
    %c80 = arith.constant 80 : index
    %377 = memref.load %arg3[%c80] : memref<144xf32, #tpu.memory_space<smem>>
    %378 = vector.broadcast %377 : f32 to vector<2x362xf32>
    %379 = arith.mulf %376, %378 : vector<2x362xf32>
    %380 = arith.addf %362, %379 : vector<2x362xf32>
    %c81 = arith.constant 81 : index
    %381 = memref.load %arg3[%c81] : memref<144xf32, #tpu.memory_space<smem>>
    %382 = vector.broadcast %381 : f32 to vector<2x362xf32>
    %383 = arith.mulf %376, %382 : vector<2x362xf32>
    %384 = arith.addf %366, %383 : vector<2x362xf32>
    %c82 = arith.constant 82 : index
    %385 = memref.load %arg3[%c82] : memref<144xf32, #tpu.memory_space<smem>>
    %386 = vector.broadcast %385 : f32 to vector<2x362xf32>
    %387 = arith.mulf %376, %386 : vector<2x362xf32>
    %388 = arith.addf %370, %387 : vector<2x362xf32>
    %c83 = arith.constant 83 : index
    %389 = memref.load %arg3[%c83] : memref<144xf32, #tpu.memory_space<smem>>
    %390 = vector.broadcast %389 : f32 to vector<2x362xf32>
    %391 = arith.mulf %376, %390 : vector<2x362xf32>
    %392 = arith.addf %374, %391 : vector<2x362xf32>
    %393 = vector.extract_strided_slice %4 {offsets = [0, 20], sizes = [2, 362], strides = [1, 1]} : vector<2x400xbf16> to vector<2x362xbf16>
    %394 = arith.extf %393 : vector<2x362xbf16> to vector<2x362xf32>
    %c84 = arith.constant 84 : index
    %395 = memref.load %arg3[%c84] : memref<144xf32, #tpu.memory_space<smem>>
    %396 = vector.broadcast %395 : f32 to vector<2x362xf32>
    %397 = arith.mulf %394, %396 : vector<2x362xf32>
    %398 = arith.addf %380, %397 : vector<2x362xf32>
    %c85 = arith.constant 85 : index
    %399 = memref.load %arg3[%c85] : memref<144xf32, #tpu.memory_space<smem>>
    %400 = vector.broadcast %399 : f32 to vector<2x362xf32>
    %401 = arith.mulf %394, %400 : vector<2x362xf32>
    %402 = arith.addf %384, %401 : vector<2x362xf32>
    %c86 = arith.constant 86 : index
    %403 = memref.load %arg3[%c86] : memref<144xf32, #tpu.memory_space<smem>>
    %404 = vector.broadcast %403 : f32 to vector<2x362xf32>
    %405 = arith.mulf %394, %404 : vector<2x362xf32>
    %406 = arith.addf %388, %405 : vector<2x362xf32>
    %c87 = arith.constant 87 : index
    %407 = memref.load %arg3[%c87] : memref<144xf32, #tpu.memory_space<smem>>
    %408 = vector.broadcast %407 : f32 to vector<2x362xf32>
    %409 = arith.mulf %394, %408 : vector<2x362xf32>
    %410 = arith.addf %392, %409 : vector<2x362xf32>
    %411 = vector.extract_strided_slice %6 {offsets = [0, 20], sizes = [2, 362], strides = [1, 1]} : vector<2x400xbf16> to vector<2x362xbf16>
    %412 = arith.extf %411 : vector<2x362xbf16> to vector<2x362xf32>
    %c88 = arith.constant 88 : index
    %413 = memref.load %arg3[%c88] : memref<144xf32, #tpu.memory_space<smem>>
    %414 = vector.broadcast %413 : f32 to vector<2x362xf32>
    %415 = arith.mulf %412, %414 : vector<2x362xf32>
    %416 = arith.addf %398, %415 : vector<2x362xf32>
    %c89 = arith.constant 89 : index
    %417 = memref.load %arg3[%c89] : memref<144xf32, #tpu.memory_space<smem>>
    %418 = vector.broadcast %417 : f32 to vector<2x362xf32>
    %419 = arith.mulf %412, %418 : vector<2x362xf32>
    %420 = arith.addf %402, %419 : vector<2x362xf32>
    %c90 = arith.constant 90 : index
    %421 = memref.load %arg3[%c90] : memref<144xf32, #tpu.memory_space<smem>>
    %422 = vector.broadcast %421 : f32 to vector<2x362xf32>
    %423 = arith.mulf %412, %422 : vector<2x362xf32>
    %424 = arith.addf %406, %423 : vector<2x362xf32>
    %c91 = arith.constant 91 : index
    %425 = memref.load %arg3[%c91] : memref<144xf32, #tpu.memory_space<smem>>
    %426 = vector.broadcast %425 : f32 to vector<2x362xf32>
    %427 = arith.mulf %412, %426 : vector<2x362xf32>
    %428 = arith.addf %410, %427 : vector<2x362xf32>
    %429 = vector.extract_strided_slice %8 {offsets = [0, 20], sizes = [2, 362], strides = [1, 1]} : vector<2x400xbf16> to vector<2x362xbf16>
    %430 = arith.extf %429 : vector<2x362xbf16> to vector<2x362xf32>
    %c92 = arith.constant 92 : index
    %431 = memref.load %arg3[%c92] : memref<144xf32, #tpu.memory_space<smem>>
    %432 = vector.broadcast %431 : f32 to vector<2x362xf32>
    %433 = arith.mulf %430, %432 : vector<2x362xf32>
    %434 = arith.addf %416, %433 : vector<2x362xf32>
    %c93 = arith.constant 93 : index
    %435 = memref.load %arg3[%c93] : memref<144xf32, #tpu.memory_space<smem>>
    %436 = vector.broadcast %435 : f32 to vector<2x362xf32>
    %437 = arith.mulf %430, %436 : vector<2x362xf32>
    %438 = arith.addf %420, %437 : vector<2x362xf32>
    %c94 = arith.constant 94 : index
    %439 = memref.load %arg3[%c94] : memref<144xf32, #tpu.memory_space<smem>>
    %440 = vector.broadcast %439 : f32 to vector<2x362xf32>
    %441 = arith.mulf %430, %440 : vector<2x362xf32>
    %442 = arith.addf %424, %441 : vector<2x362xf32>
    %c95 = arith.constant 95 : index
    %443 = memref.load %arg3[%c95] : memref<144xf32, #tpu.memory_space<smem>>
    %444 = vector.broadcast %443 : f32 to vector<2x362xf32>
    %445 = arith.mulf %430, %444 : vector<2x362xf32>
    %446 = arith.addf %428, %445 : vector<2x362xf32>
    %447 = vector.extract_strided_slice %2 {offsets = [0, 36], sizes = [2, 362], strides = [1, 1]} : vector<2x400xbf16> to vector<2x362xbf16>
    %448 = arith.extf %447 : vector<2x362xbf16> to vector<2x362xf32>
    %c96 = arith.constant 96 : index
    %449 = memref.load %arg3[%c96] : memref<144xf32, #tpu.memory_space<smem>>
    %450 = vector.broadcast %449 : f32 to vector<2x362xf32>
    %451 = arith.mulf %448, %450 : vector<2x362xf32>
    %452 = arith.addf %434, %451 : vector<2x362xf32>
    %c97 = arith.constant 97 : index
    %453 = memref.load %arg3[%c97] : memref<144xf32, #tpu.memory_space<smem>>
    %454 = vector.broadcast %453 : f32 to vector<2x362xf32>
    %455 = arith.mulf %448, %454 : vector<2x362xf32>
    %456 = arith.addf %438, %455 : vector<2x362xf32>
    %c98 = arith.constant 98 : index
    %457 = memref.load %arg3[%c98] : memref<144xf32, #tpu.memory_space<smem>>
    %458 = vector.broadcast %457 : f32 to vector<2x362xf32>
    %459 = arith.mulf %448, %458 : vector<2x362xf32>
    %460 = arith.addf %442, %459 : vector<2x362xf32>
    %c99 = arith.constant 99 : index
    %461 = memref.load %arg3[%c99] : memref<144xf32, #tpu.memory_space<smem>>
    %462 = vector.broadcast %461 : f32 to vector<2x362xf32>
    %463 = arith.mulf %448, %462 : vector<2x362xf32>
    %464 = arith.addf %446, %463 : vector<2x362xf32>
    %465 = vector.extract_strided_slice %4 {offsets = [0, 36], sizes = [2, 362], strides = [1, 1]} : vector<2x400xbf16> to vector<2x362xbf16>
    %466 = arith.extf %465 : vector<2x362xbf16> to vector<2x362xf32>
    %c100 = arith.constant 100 : index
    %467 = memref.load %arg3[%c100] : memref<144xf32, #tpu.memory_space<smem>>
    %468 = vector.broadcast %467 : f32 to vector<2x362xf32>
    %469 = arith.mulf %466, %468 : vector<2x362xf32>
    %470 = arith.addf %452, %469 : vector<2x362xf32>
    %c101 = arith.constant 101 : index
    %471 = memref.load %arg3[%c101] : memref<144xf32, #tpu.memory_space<smem>>
    %472 = vector.broadcast %471 : f32 to vector<2x362xf32>
    %473 = arith.mulf %466, %472 : vector<2x362xf32>
    %474 = arith.addf %456, %473 : vector<2x362xf32>
    %c102 = arith.constant 102 : index
    %475 = memref.load %arg3[%c102] : memref<144xf32, #tpu.memory_space<smem>>
    %476 = vector.broadcast %475 : f32 to vector<2x362xf32>
    %477 = arith.mulf %466, %476 : vector<2x362xf32>
    %478 = arith.addf %460, %477 : vector<2x362xf32>
    %c103 = arith.constant 103 : index
    %479 = memref.load %arg3[%c103] : memref<144xf32, #tpu.memory_space<smem>>
    %480 = vector.broadcast %479 : f32 to vector<2x362xf32>
    %481 = arith.mulf %466, %480 : vector<2x362xf32>
    %482 = arith.addf %464, %481 : vector<2x362xf32>
    %483 = vector.extract_strided_slice %6 {offsets = [0, 36], sizes = [2, 362], strides = [1, 1]} : vector<2x400xbf16> to vector<2x362xbf16>
    %484 = arith.extf %483 : vector<2x362xbf16> to vector<2x362xf32>
    %c104 = arith.constant 104 : index
    %485 = memref.load %arg3[%c104] : memref<144xf32, #tpu.memory_space<smem>>
    %486 = vector.broadcast %485 : f32 to vector<2x362xf32>
    %487 = arith.mulf %484, %486 : vector<2x362xf32>
    %488 = arith.addf %470, %487 : vector<2x362xf32>
    %c105 = arith.constant 105 : index
    %489 = memref.load %arg3[%c105] : memref<144xf32, #tpu.memory_space<smem>>
    %490 = vector.broadcast %489 : f32 to vector<2x362xf32>
    %491 = arith.mulf %484, %490 : vector<2x362xf32>
    %492 = arith.addf %474, %491 : vector<2x362xf32>
    %c106 = arith.constant 106 : index
    %493 = memref.load %arg3[%c106] : memref<144xf32, #tpu.memory_space<smem>>
    %494 = vector.broadcast %493 : f32 to vector<2x362xf32>
    %495 = arith.mulf %484, %494 : vector<2x362xf32>
    %496 = arith.addf %478, %495 : vector<2x362xf32>
    %c107 = arith.constant 107 : index
    %497 = memref.load %arg3[%c107] : memref<144xf32, #tpu.memory_space<smem>>
    %498 = vector.broadcast %497 : f32 to vector<2x362xf32>
    %499 = arith.mulf %484, %498 : vector<2x362xf32>
    %500 = arith.addf %482, %499 : vector<2x362xf32>
    %501 = vector.extract_strided_slice %8 {offsets = [0, 36], sizes = [2, 362], strides = [1, 1]} : vector<2x400xbf16> to vector<2x362xbf16>
    %502 = arith.extf %501 : vector<2x362xbf16> to vector<2x362xf32>
    %c108 = arith.constant 108 : index
    %503 = memref.load %arg3[%c108] : memref<144xf32, #tpu.memory_space<smem>>
    %504 = vector.broadcast %503 : f32 to vector<2x362xf32>
    %505 = arith.mulf %502, %504 : vector<2x362xf32>
    %506 = arith.addf %488, %505 : vector<2x362xf32>
    %c109 = arith.constant 109 : index
    %507 = memref.load %arg3[%c109] : memref<144xf32, #tpu.memory_space<smem>>
    %508 = vector.broadcast %507 : f32 to vector<2x362xf32>
    %509 = arith.mulf %502, %508 : vector<2x362xf32>
    %510 = arith.addf %492, %509 : vector<2x362xf32>
    %c110 = arith.constant 110 : index
    %511 = memref.load %arg3[%c110] : memref<144xf32, #tpu.memory_space<smem>>
    %512 = vector.broadcast %511 : f32 to vector<2x362xf32>
    %513 = arith.mulf %502, %512 : vector<2x362xf32>
    %514 = arith.addf %496, %513 : vector<2x362xf32>
    %c111 = arith.constant 111 : index
    %515 = memref.load %arg3[%c111] : memref<144xf32, #tpu.memory_space<smem>>
    %516 = vector.broadcast %515 : f32 to vector<2x362xf32>
    %517 = arith.mulf %502, %516 : vector<2x362xf32>
    %518 = arith.addf %500, %517 : vector<2x362xf32>
    %519 = vector.extract_strided_slice %2 {offsets = [0, 37], sizes = [2, 362], strides = [1, 1]} : vector<2x400xbf16> to vector<2x362xbf16>
    %520 = arith.extf %519 : vector<2x362xbf16> to vector<2x362xf32>
    %c112 = arith.constant 112 : index
    %521 = memref.load %arg3[%c112] : memref<144xf32, #tpu.memory_space<smem>>
    %522 = vector.broadcast %521 : f32 to vector<2x362xf32>
    %523 = arith.mulf %520, %522 : vector<2x362xf32>
    %524 = arith.addf %506, %523 : vector<2x362xf32>
    %c113 = arith.constant 113 : index
    %525 = memref.load %arg3[%c113] : memref<144xf32, #tpu.memory_space<smem>>
    %526 = vector.broadcast %525 : f32 to vector<2x362xf32>
    %527 = arith.mulf %520, %526 : vector<2x362xf32>
    %528 = arith.addf %510, %527 : vector<2x362xf32>
    %c114 = arith.constant 114 : index
    %529 = memref.load %arg3[%c114] : memref<144xf32, #tpu.memory_space<smem>>
    %530 = vector.broadcast %529 : f32 to vector<2x362xf32>
    %531 = arith.mulf %520, %530 : vector<2x362xf32>
    %532 = arith.addf %514, %531 : vector<2x362xf32>
    %c115 = arith.constant 115 : index
    %533 = memref.load %arg3[%c115] : memref<144xf32, #tpu.memory_space<smem>>
    %534 = vector.broadcast %533 : f32 to vector<2x362xf32>
    %535 = arith.mulf %520, %534 : vector<2x362xf32>
    %536 = arith.addf %518, %535 : vector<2x362xf32>
    %537 = vector.extract_strided_slice %4 {offsets = [0, 37], sizes = [2, 362], strides = [1, 1]} : vector<2x400xbf16> to vector<2x362xbf16>
    %538 = arith.extf %537 : vector<2x362xbf16> to vector<2x362xf32>
    %c116 = arith.constant 116 : index
    %539 = memref.load %arg3[%c116] : memref<144xf32, #tpu.memory_space<smem>>
    %540 = vector.broadcast %539 : f32 to vector<2x362xf32>
    %541 = arith.mulf %538, %540 : vector<2x362xf32>
    %542 = arith.addf %524, %541 : vector<2x362xf32>
    %c117 = arith.constant 117 : index
    %543 = memref.load %arg3[%c117] : memref<144xf32, #tpu.memory_space<smem>>
    %544 = vector.broadcast %543 : f32 to vector<2x362xf32>
    %545 = arith.mulf %538, %544 : vector<2x362xf32>
    %546 = arith.addf %528, %545 : vector<2x362xf32>
    %c118 = arith.constant 118 : index
    %547 = memref.load %arg3[%c118] : memref<144xf32, #tpu.memory_space<smem>>
    %548 = vector.broadcast %547 : f32 to vector<2x362xf32>
    %549 = arith.mulf %538, %548 : vector<2x362xf32>
    %550 = arith.addf %532, %549 : vector<2x362xf32>
    %c119 = arith.constant 119 : index
    %551 = memref.load %arg3[%c119] : memref<144xf32, #tpu.memory_space<smem>>
    %552 = vector.broadcast %551 : f32 to vector<2x362xf32>
    %553 = arith.mulf %538, %552 : vector<2x362xf32>
    %554 = arith.addf %536, %553 : vector<2x362xf32>
    %555 = vector.extract_strided_slice %6 {offsets = [0, 37], sizes = [2, 362], strides = [1, 1]} : vector<2x400xbf16> to vector<2x362xbf16>
    %556 = arith.extf %555 : vector<2x362xbf16> to vector<2x362xf32>
    %c120 = arith.constant 120 : index
    %557 = memref.load %arg3[%c120] : memref<144xf32, #tpu.memory_space<smem>>
    %558 = vector.broadcast %557 : f32 to vector<2x362xf32>
    %559 = arith.mulf %556, %558 : vector<2x362xf32>
    %560 = arith.addf %542, %559 : vector<2x362xf32>
    %c121 = arith.constant 121 : index
    %561 = memref.load %arg3[%c121] : memref<144xf32, #tpu.memory_space<smem>>
    %562 = vector.broadcast %561 : f32 to vector<2x362xf32>
    %563 = arith.mulf %556, %562 : vector<2x362xf32>
    %564 = arith.addf %546, %563 : vector<2x362xf32>
    %c122 = arith.constant 122 : index
    %565 = memref.load %arg3[%c122] : memref<144xf32, #tpu.memory_space<smem>>
    %566 = vector.broadcast %565 : f32 to vector<2x362xf32>
    %567 = arith.mulf %556, %566 : vector<2x362xf32>
    %568 = arith.addf %550, %567 : vector<2x362xf32>
    %c123 = arith.constant 123 : index
    %569 = memref.load %arg3[%c123] : memref<144xf32, #tpu.memory_space<smem>>
    %570 = vector.broadcast %569 : f32 to vector<2x362xf32>
    %571 = arith.mulf %556, %570 : vector<2x362xf32>
    %572 = arith.addf %554, %571 : vector<2x362xf32>
    %573 = vector.extract_strided_slice %8 {offsets = [0, 37], sizes = [2, 362], strides = [1, 1]} : vector<2x400xbf16> to vector<2x362xbf16>
    %574 = arith.extf %573 : vector<2x362xbf16> to vector<2x362xf32>
    %c124 = arith.constant 124 : index
    %575 = memref.load %arg3[%c124] : memref<144xf32, #tpu.memory_space<smem>>
    %576 = vector.broadcast %575 : f32 to vector<2x362xf32>
    %577 = arith.mulf %574, %576 : vector<2x362xf32>
    %578 = arith.addf %560, %577 : vector<2x362xf32>
    %c125 = arith.constant 125 : index
    %579 = memref.load %arg3[%c125] : memref<144xf32, #tpu.memory_space<smem>>
    %580 = vector.broadcast %579 : f32 to vector<2x362xf32>
    %581 = arith.mulf %574, %580 : vector<2x362xf32>
    %582 = arith.addf %564, %581 : vector<2x362xf32>
    %c126 = arith.constant 126 : index
    %583 = memref.load %arg3[%c126] : memref<144xf32, #tpu.memory_space<smem>>
    %584 = vector.broadcast %583 : f32 to vector<2x362xf32>
    %585 = arith.mulf %574, %584 : vector<2x362xf32>
    %586 = arith.addf %568, %585 : vector<2x362xf32>
    %c127 = arith.constant 127 : index
    %587 = memref.load %arg3[%c127] : memref<144xf32, #tpu.memory_space<smem>>
    %588 = vector.broadcast %587 : f32 to vector<2x362xf32>
    %589 = arith.mulf %574, %588 : vector<2x362xf32>
    %590 = arith.addf %572, %589 : vector<2x362xf32>
    %591 = vector.extract_strided_slice %2 {offsets = [0, 38], sizes = [2, 362], strides = [1, 1]} : vector<2x400xbf16> to vector<2x362xbf16>
    %592 = arith.extf %591 : vector<2x362xbf16> to vector<2x362xf32>
    %c128 = arith.constant 128 : index
    %593 = memref.load %arg3[%c128] : memref<144xf32, #tpu.memory_space<smem>>
    %594 = vector.broadcast %593 : f32 to vector<2x362xf32>
    %595 = arith.mulf %592, %594 : vector<2x362xf32>
    %596 = arith.addf %578, %595 : vector<2x362xf32>
    %c129 = arith.constant 129 : index
    %597 = memref.load %arg3[%c129] : memref<144xf32, #tpu.memory_space<smem>>
    %598 = vector.broadcast %597 : f32 to vector<2x362xf32>
    %599 = arith.mulf %592, %598 : vector<2x362xf32>
    %600 = arith.addf %582, %599 : vector<2x362xf32>
    %c130 = arith.constant 130 : index
    %601 = memref.load %arg3[%c130] : memref<144xf32, #tpu.memory_space<smem>>
    %602 = vector.broadcast %601 : f32 to vector<2x362xf32>
    %603 = arith.mulf %592, %602 : vector<2x362xf32>
    %604 = arith.addf %586, %603 : vector<2x362xf32>
    %c131 = arith.constant 131 : index
    %605 = memref.load %arg3[%c131] : memref<144xf32, #tpu.memory_space<smem>>
    %606 = vector.broadcast %605 : f32 to vector<2x362xf32>
    %607 = arith.mulf %592, %606 : vector<2x362xf32>
    %608 = arith.addf %590, %607 : vector<2x362xf32>
    %609 = vector.extract_strided_slice %4 {offsets = [0, 38], sizes = [2, 362], strides = [1, 1]} : vector<2x400xbf16> to vector<2x362xbf16>
    %610 = arith.extf %609 : vector<2x362xbf16> to vector<2x362xf32>
    %c132 = arith.constant 132 : index
    %611 = memref.load %arg3[%c132] : memref<144xf32, #tpu.memory_space<smem>>
    %612 = vector.broadcast %611 : f32 to vector<2x362xf32>
    %613 = arith.mulf %610, %612 : vector<2x362xf32>
    %614 = arith.addf %596, %613 : vector<2x362xf32>
    %c133 = arith.constant 133 : index
    %615 = memref.load %arg3[%c133] : memref<144xf32, #tpu.memory_space<smem>>
    %616 = vector.broadcast %615 : f32 to vector<2x362xf32>
    %617 = arith.mulf %610, %616 : vector<2x362xf32>
    %618 = arith.addf %600, %617 : vector<2x362xf32>
    %c134 = arith.constant 134 : index
    %619 = memref.load %arg3[%c134] : memref<144xf32, #tpu.memory_space<smem>>
    %620 = vector.broadcast %619 : f32 to vector<2x362xf32>
    %621 = arith.mulf %610, %620 : vector<2x362xf32>
    %622 = arith.addf %604, %621 : vector<2x362xf32>
    %c135 = arith.constant 135 : index
    %623 = memref.load %arg3[%c135] : memref<144xf32, #tpu.memory_space<smem>>
    %624 = vector.broadcast %623 : f32 to vector<2x362xf32>
    %625 = arith.mulf %610, %624 : vector<2x362xf32>
    %626 = arith.addf %608, %625 : vector<2x362xf32>
    %627 = vector.extract_strided_slice %6 {offsets = [0, 38], sizes = [2, 362], strides = [1, 1]} : vector<2x400xbf16> to vector<2x362xbf16>
    %628 = arith.extf %627 : vector<2x362xbf16> to vector<2x362xf32>
    %c136 = arith.constant 136 : index
    %629 = memref.load %arg3[%c136] : memref<144xf32, #tpu.memory_space<smem>>
    %630 = vector.broadcast %629 : f32 to vector<2x362xf32>
    %631 = arith.mulf %628, %630 : vector<2x362xf32>
    %632 = arith.addf %614, %631 : vector<2x362xf32>
    %c137 = arith.constant 137 : index
    %633 = memref.load %arg3[%c137] : memref<144xf32, #tpu.memory_space<smem>>
    %634 = vector.broadcast %633 : f32 to vector<2x362xf32>
    %635 = arith.mulf %628, %634 : vector<2x362xf32>
    %636 = arith.addf %618, %635 : vector<2x362xf32>
    %c138 = arith.constant 138 : index
    %637 = memref.load %arg3[%c138] : memref<144xf32, #tpu.memory_space<smem>>
    %638 = vector.broadcast %637 : f32 to vector<2x362xf32>
    %639 = arith.mulf %628, %638 : vector<2x362xf32>
    %640 = arith.addf %622, %639 : vector<2x362xf32>
    %c139 = arith.constant 139 : index
    %641 = memref.load %arg3[%c139] : memref<144xf32, #tpu.memory_space<smem>>
    %642 = vector.broadcast %641 : f32 to vector<2x362xf32>
    %643 = arith.mulf %628, %642 : vector<2x362xf32>
    %644 = arith.addf %626, %643 : vector<2x362xf32>
    %645 = vector.extract_strided_slice %8 {offsets = [0, 38], sizes = [2, 362], strides = [1, 1]} : vector<2x400xbf16> to vector<2x362xbf16>
    %646 = arith.extf %645 : vector<2x362xbf16> to vector<2x362xf32>
    %c140 = arith.constant 140 : index
    %647 = memref.load %arg3[%c140] : memref<144xf32, #tpu.memory_space<smem>>
    %648 = vector.broadcast %647 : f32 to vector<2x362xf32>
    %649 = arith.mulf %646, %648 : vector<2x362xf32>
    %650 = arith.addf %632, %649 : vector<2x362xf32>
    %c141 = arith.constant 141 : index
    %651 = memref.load %arg3[%c141] : memref<144xf32, #tpu.memory_space<smem>>
    %652 = vector.broadcast %651 : f32 to vector<2x362xf32>
    %653 = arith.mulf %646, %652 : vector<2x362xf32>
    %654 = arith.addf %636, %653 : vector<2x362xf32>
    %c142 = arith.constant 142 : index
    %655 = memref.load %arg3[%c142] : memref<144xf32, #tpu.memory_space<smem>>
    %656 = vector.broadcast %655 : f32 to vector<2x362xf32>
    %657 = arith.mulf %646, %656 : vector<2x362xf32>
    %658 = arith.addf %640, %657 : vector<2x362xf32>
    %c143 = arith.constant 143 : index
    %659 = memref.load %arg3[%c143] : memref<144xf32, #tpu.memory_space<smem>>
    %660 = vector.broadcast %659 : f32 to vector<2x362xf32>
    %661 = arith.mulf %646, %660 : vector<2x362xf32>
    %662 = arith.addf %644, %661 : vector<2x362xf32>
    %c0_8 = arith.constant 0 : index
    %663 = memref.load %arg4[%c0_8] : memref<4xf32, #tpu.memory_space<smem>>
    %664 = vector.broadcast %663 : f32 to vector<2x362xf32>
    %665 = arith.addf %650, %664 : vector<2x362xf32>
    %cst_9 = arith.constant 0.000000e+00 : f32
    %666 = vector.broadcast %cst_9 : f32 to vector<2x362xf32>
    %667 = arith.maximumf %665, %666 : vector<2x362xf32>
    %668 = vector.broadcast %9 : vector<1x362xf32> to vector<2x362xf32>
    %669 = arith.mulf %667, %668 : vector<2x362xf32>
    %c1_10 = arith.constant 1 : index
    %670 = memref.load %arg4[%c1_10] : memref<4xf32, #tpu.memory_space<smem>>
    %671 = vector.broadcast %670 : f32 to vector<2x362xf32>
    %672 = arith.addf %654, %671 : vector<2x362xf32>
    %cst_11 = arith.constant 0.000000e+00 : f32
    %673 = vector.broadcast %cst_11 : f32 to vector<2x362xf32>
    %674 = arith.maximumf %672, %673 : vector<2x362xf32>
    %675 = vector.broadcast %9 : vector<1x362xf32> to vector<2x362xf32>
    %676 = arith.mulf %674, %675 : vector<2x362xf32>
    %c2_12 = arith.constant 2 : index
    %677 = memref.load %arg4[%c2_12] : memref<4xf32, #tpu.memory_space<smem>>
    %678 = vector.broadcast %677 : f32 to vector<2x362xf32>
    %679 = arith.addf %658, %678 : vector<2x362xf32>
    %cst_13 = arith.constant 0.000000e+00 : f32
    %680 = vector.broadcast %cst_13 : f32 to vector<2x362xf32>
    %681 = arith.maximumf %679, %680 : vector<2x362xf32>
    %682 = vector.broadcast %9 : vector<1x362xf32> to vector<2x362xf32>
    %683 = arith.mulf %681, %682 : vector<2x362xf32>
    %c3_14 = arith.constant 3 : index
    %684 = memref.load %arg4[%c3_14] : memref<4xf32, #tpu.memory_space<smem>>
    %685 = vector.broadcast %684 : f32 to vector<2x362xf32>
    %686 = arith.addf %662, %685 : vector<2x362xf32>
    %cst_15 = arith.constant 0.000000e+00 : f32
    %687 = vector.broadcast %cst_15 : f32 to vector<2x362xf32>
    %688 = arith.maximumf %686, %687 : vector<2x362xf32>
    %689 = vector.broadcast %9 : vector<1x362xf32> to vector<2x362xf32>
    %690 = arith.mulf %688, %689 : vector<2x362xf32>
    %cst_16 = arith.constant 0.000000e+00 : f32
    %691 = vector.broadcast %cst_16 : f32 to vector<2x324xf32>
    %cst_17 = arith.constant 0.000000e+00 : f32
    %692 = vector.broadcast %cst_17 : f32 to vector<2x324xf32>
    %cst_18 = arith.constant 0.000000e+00 : f32
    %693 = vector.broadcast %cst_18 : f32 to vector<2x324xf32>
    %cst_19 = arith.constant 0.000000e+00 : f32
    %694 = vector.broadcast %cst_19 : f32 to vector<2x324xf32>
    %695 = vector.extract_strided_slice %669 {offsets = [0, 0], sizes = [2, 324], strides = [1, 1]} : vector<2x362xf32> to vector<2x324xf32>
    %c0_20 = arith.constant 0 : index
    %696 = memref.load %arg5[%c0_20] : memref<144xf32, #tpu.memory_space<smem>>
    %697 = vector.broadcast %696 : f32 to vector<2x324xf32>
    %698 = arith.mulf %695, %697 : vector<2x324xf32>
    %699 = arith.addf %691, %698 : vector<2x324xf32>
    %c1_21 = arith.constant 1 : index
    %700 = memref.load %arg5[%c1_21] : memref<144xf32, #tpu.memory_space<smem>>
    %701 = vector.broadcast %700 : f32 to vector<2x324xf32>
    %702 = arith.mulf %695, %701 : vector<2x324xf32>
    %703 = arith.addf %692, %702 : vector<2x324xf32>
    %c2_22 = arith.constant 2 : index
    %704 = memref.load %arg5[%c2_22] : memref<144xf32, #tpu.memory_space<smem>>
    %705 = vector.broadcast %704 : f32 to vector<2x324xf32>
    %706 = arith.mulf %695, %705 : vector<2x324xf32>
    %707 = arith.addf %693, %706 : vector<2x324xf32>
    %c3_23 = arith.constant 3 : index
    %708 = memref.load %arg5[%c3_23] : memref<144xf32, #tpu.memory_space<smem>>
    %709 = vector.broadcast %708 : f32 to vector<2x324xf32>
    %710 = arith.mulf %695, %709 : vector<2x324xf32>
    %711 = arith.addf %694, %710 : vector<2x324xf32>
    %712 = vector.extract_strided_slice %676 {offsets = [0, 0], sizes = [2, 324], strides = [1, 1]} : vector<2x362xf32> to vector<2x324xf32>
    %c4_24 = arith.constant 4 : index
    %713 = memref.load %arg5[%c4_24] : memref<144xf32, #tpu.memory_space<smem>>
    %714 = vector.broadcast %713 : f32 to vector<2x324xf32>
    %715 = arith.mulf %712, %714 : vector<2x324xf32>
    %716 = arith.addf %699, %715 : vector<2x324xf32>
    %c5_25 = arith.constant 5 : index
    %717 = memref.load %arg5[%c5_25] : memref<144xf32, #tpu.memory_space<smem>>
    %718 = vector.broadcast %717 : f32 to vector<2x324xf32>
    %719 = arith.mulf %712, %718 : vector<2x324xf32>
    %720 = arith.addf %703, %719 : vector<2x324xf32>
    %c6_26 = arith.constant 6 : index
    %721 = memref.load %arg5[%c6_26] : memref<144xf32, #tpu.memory_space<smem>>
    %722 = vector.broadcast %721 : f32 to vector<2x324xf32>
    %723 = arith.mulf %712, %722 : vector<2x324xf32>
    %724 = arith.addf %707, %723 : vector<2x324xf32>
    %c7_27 = arith.constant 7 : index
    %725 = memref.load %arg5[%c7_27] : memref<144xf32, #tpu.memory_space<smem>>
    %726 = vector.broadcast %725 : f32 to vector<2x324xf32>
    %727 = arith.mulf %712, %726 : vector<2x324xf32>
    %728 = arith.addf %711, %727 : vector<2x324xf32>
    %729 = vector.extract_strided_slice %683 {offsets = [0, 0], sizes = [2, 324], strides = [1, 1]} : vector<2x362xf32> to vector<2x324xf32>
    %c8_28 = arith.constant 8 : index
    %730 = memref.load %arg5[%c8_28] : memref<144xf32, #tpu.memory_space<smem>>
    %731 = vector.broadcast %730 : f32 to vector<2x324xf32>
    %732 = arith.mulf %729, %731 : vector<2x324xf32>
    %733 = arith.addf %716, %732 : vector<2x324xf32>
    %c9_29 = arith.constant 9 : index
    %734 = memref.load %arg5[%c9_29] : memref<144xf32, #tpu.memory_space<smem>>
    %735 = vector.broadcast %734 : f32 to vector<2x324xf32>
    %736 = arith.mulf %729, %735 : vector<2x324xf32>
    %737 = arith.addf %720, %736 : vector<2x324xf32>
    %c10_30 = arith.constant 10 : index
    %738 = memref.load %arg5[%c10_30] : memref<144xf32, #tpu.memory_space<smem>>
    %739 = vector.broadcast %738 : f32 to vector<2x324xf32>
    %740 = arith.mulf %729, %739 : vector<2x324xf32>
    %741 = arith.addf %724, %740 : vector<2x324xf32>
    %c11_31 = arith.constant 11 : index
    %742 = memref.load %arg5[%c11_31] : memref<144xf32, #tpu.memory_space<smem>>
    %743 = vector.broadcast %742 : f32 to vector<2x324xf32>
    %744 = arith.mulf %729, %743 : vector<2x324xf32>
    %745 = arith.addf %728, %744 : vector<2x324xf32>
    %746 = vector.extract_strided_slice %690 {offsets = [0, 0], sizes = [2, 324], strides = [1, 1]} : vector<2x362xf32> to vector<2x324xf32>
    %c12_32 = arith.constant 12 : index
    %747 = memref.load %arg5[%c12_32] : memref<144xf32, #tpu.memory_space<smem>>
    %748 = vector.broadcast %747 : f32 to vector<2x324xf32>
    %749 = arith.mulf %746, %748 : vector<2x324xf32>
    %750 = arith.addf %733, %749 : vector<2x324xf32>
    %c13_33 = arith.constant 13 : index
    %751 = memref.load %arg5[%c13_33] : memref<144xf32, #tpu.memory_space<smem>>
    %752 = vector.broadcast %751 : f32 to vector<2x324xf32>
    %753 = arith.mulf %746, %752 : vector<2x324xf32>
    %754 = arith.addf %737, %753 : vector<2x324xf32>
    %c14_34 = arith.constant 14 : index
    %755 = memref.load %arg5[%c14_34] : memref<144xf32, #tpu.memory_space<smem>>
    %756 = vector.broadcast %755 : f32 to vector<2x324xf32>
    %757 = arith.mulf %746, %756 : vector<2x324xf32>
    %758 = arith.addf %741, %757 : vector<2x324xf32>
    %c15_35 = arith.constant 15 : index
    %759 = memref.load %arg5[%c15_35] : memref<144xf32, #tpu.memory_space<smem>>
    %760 = vector.broadcast %759 : f32 to vector<2x324xf32>
    %761 = arith.mulf %746, %760 : vector<2x324xf32>
    %762 = arith.addf %745, %761 : vector<2x324xf32>
    %763 = vector.extract_strided_slice %669 {offsets = [0, 1], sizes = [2, 324], strides = [1, 1]} : vector<2x362xf32> to vector<2x324xf32>
    %c16_36 = arith.constant 16 : index
    %764 = memref.load %arg5[%c16_36] : memref<144xf32, #tpu.memory_space<smem>>
    %765 = vector.broadcast %764 : f32 to vector<2x324xf32>
    %766 = arith.mulf %763, %765 : vector<2x324xf32>
    %767 = arith.addf %750, %766 : vector<2x324xf32>
    %c17_37 = arith.constant 17 : index
    %768 = memref.load %arg5[%c17_37] : memref<144xf32, #tpu.memory_space<smem>>
    %769 = vector.broadcast %768 : f32 to vector<2x324xf32>
    %770 = arith.mulf %763, %769 : vector<2x324xf32>
    %771 = arith.addf %754, %770 : vector<2x324xf32>
    %c18_38 = arith.constant 18 : index
    %772 = memref.load %arg5[%c18_38] : memref<144xf32, #tpu.memory_space<smem>>
    %773 = vector.broadcast %772 : f32 to vector<2x324xf32>
    %774 = arith.mulf %763, %773 : vector<2x324xf32>
    %775 = arith.addf %758, %774 : vector<2x324xf32>
    %c19_39 = arith.constant 19 : index
    %776 = memref.load %arg5[%c19_39] : memref<144xf32, #tpu.memory_space<smem>>
    %777 = vector.broadcast %776 : f32 to vector<2x324xf32>
    %778 = arith.mulf %763, %777 : vector<2x324xf32>
    %779 = arith.addf %762, %778 : vector<2x324xf32>
    %780 = vector.extract_strided_slice %676 {offsets = [0, 1], sizes = [2, 324], strides = [1, 1]} : vector<2x362xf32> to vector<2x324xf32>
    %c20_40 = arith.constant 20 : index
    %781 = memref.load %arg5[%c20_40] : memref<144xf32, #tpu.memory_space<smem>>
    %782 = vector.broadcast %781 : f32 to vector<2x324xf32>
    %783 = arith.mulf %780, %782 : vector<2x324xf32>
    %784 = arith.addf %767, %783 : vector<2x324xf32>
    %c21_41 = arith.constant 21 : index
    %785 = memref.load %arg5[%c21_41] : memref<144xf32, #tpu.memory_space<smem>>
    %786 = vector.broadcast %785 : f32 to vector<2x324xf32>
    %787 = arith.mulf %780, %786 : vector<2x324xf32>
    %788 = arith.addf %771, %787 : vector<2x324xf32>
    %c22_42 = arith.constant 22 : index
    %789 = memref.load %arg5[%c22_42] : memref<144xf32, #tpu.memory_space<smem>>
    %790 = vector.broadcast %789 : f32 to vector<2x324xf32>
    %791 = arith.mulf %780, %790 : vector<2x324xf32>
    %792 = arith.addf %775, %791 : vector<2x324xf32>
    %c23_43 = arith.constant 23 : index
    %793 = memref.load %arg5[%c23_43] : memref<144xf32, #tpu.memory_space<smem>>
    %794 = vector.broadcast %793 : f32 to vector<2x324xf32>
    %795 = arith.mulf %780, %794 : vector<2x324xf32>
    %796 = arith.addf %779, %795 : vector<2x324xf32>
    %797 = vector.extract_strided_slice %683 {offsets = [0, 1], sizes = [2, 324], strides = [1, 1]} : vector<2x362xf32> to vector<2x324xf32>
    %c24_44 = arith.constant 24 : index
    %798 = memref.load %arg5[%c24_44] : memref<144xf32, #tpu.memory_space<smem>>
    %799 = vector.broadcast %798 : f32 to vector<2x324xf32>
    %800 = arith.mulf %797, %799 : vector<2x324xf32>
    %801 = arith.addf %784, %800 : vector<2x324xf32>
    %c25_45 = arith.constant 25 : index
    %802 = memref.load %arg5[%c25_45] : memref<144xf32, #tpu.memory_space<smem>>
    %803 = vector.broadcast %802 : f32 to vector<2x324xf32>
    %804 = arith.mulf %797, %803 : vector<2x324xf32>
    %805 = arith.addf %788, %804 : vector<2x324xf32>
    %c26_46 = arith.constant 26 : index
    %806 = memref.load %arg5[%c26_46] : memref<144xf32, #tpu.memory_space<smem>>
    %807 = vector.broadcast %806 : f32 to vector<2x324xf32>
    %808 = arith.mulf %797, %807 : vector<2x324xf32>
    %809 = arith.addf %792, %808 : vector<2x324xf32>
    %c27_47 = arith.constant 27 : index
    %810 = memref.load %arg5[%c27_47] : memref<144xf32, #tpu.memory_space<smem>>
    %811 = vector.broadcast %810 : f32 to vector<2x324xf32>
    %812 = arith.mulf %797, %811 : vector<2x324xf32>
    %813 = arith.addf %796, %812 : vector<2x324xf32>
    %814 = vector.extract_strided_slice %690 {offsets = [0, 1], sizes = [2, 324], strides = [1, 1]} : vector<2x362xf32> to vector<2x324xf32>
    %c28_48 = arith.constant 28 : index
    %815 = memref.load %arg5[%c28_48] : memref<144xf32, #tpu.memory_space<smem>>
    %816 = vector.broadcast %815 : f32 to vector<2x324xf32>
    %817 = arith.mulf %814, %816 : vector<2x324xf32>
    %818 = arith.addf %801, %817 : vector<2x324xf32>
    %c29_49 = arith.constant 29 : index
    %819 = memref.load %arg5[%c29_49] : memref<144xf32, #tpu.memory_space<smem>>
    %820 = vector.broadcast %819 : f32 to vector<2x324xf32>
    %821 = arith.mulf %814, %820 : vector<2x324xf32>
    %822 = arith.addf %805, %821 : vector<2x324xf32>
    %c30_50 = arith.constant 30 : index
    %823 = memref.load %arg5[%c30_50] : memref<144xf32, #tpu.memory_space<smem>>
    %824 = vector.broadcast %823 : f32 to vector<2x324xf32>
    %825 = arith.mulf %814, %824 : vector<2x324xf32>
    %826 = arith.addf %809, %825 : vector<2x324xf32>
    %c31_51 = arith.constant 31 : index
    %827 = memref.load %arg5[%c31_51] : memref<144xf32, #tpu.memory_space<smem>>
    %828 = vector.broadcast %827 : f32 to vector<2x324xf32>
    %829 = arith.mulf %814, %828 : vector<2x324xf32>
    %830 = arith.addf %813, %829 : vector<2x324xf32>
    %831 = vector.extract_strided_slice %669 {offsets = [0, 2], sizes = [2, 324], strides = [1, 1]} : vector<2x362xf32> to vector<2x324xf32>
    %c32_52 = arith.constant 32 : index
    %832 = memref.load %arg5[%c32_52] : memref<144xf32, #tpu.memory_space<smem>>
    %833 = vector.broadcast %832 : f32 to vector<2x324xf32>
    %834 = arith.mulf %831, %833 : vector<2x324xf32>
    %835 = arith.addf %818, %834 : vector<2x324xf32>
    %c33_53 = arith.constant 33 : index
    %836 = memref.load %arg5[%c33_53] : memref<144xf32, #tpu.memory_space<smem>>
    %837 = vector.broadcast %836 : f32 to vector<2x324xf32>
    %838 = arith.mulf %831, %837 : vector<2x324xf32>
    %839 = arith.addf %822, %838 : vector<2x324xf32>
    %c34_54 = arith.constant 34 : index
    %840 = memref.load %arg5[%c34_54] : memref<144xf32, #tpu.memory_space<smem>>
    %841 = vector.broadcast %840 : f32 to vector<2x324xf32>
    %842 = arith.mulf %831, %841 : vector<2x324xf32>
    %843 = arith.addf %826, %842 : vector<2x324xf32>
    %c35_55 = arith.constant 35 : index
    %844 = memref.load %arg5[%c35_55] : memref<144xf32, #tpu.memory_space<smem>>
    %845 = vector.broadcast %844 : f32 to vector<2x324xf32>
    %846 = arith.mulf %831, %845 : vector<2x324xf32>
    %847 = arith.addf %830, %846 : vector<2x324xf32>
    %848 = vector.extract_strided_slice %676 {offsets = [0, 2], sizes = [2, 324], strides = [1, 1]} : vector<2x362xf32> to vector<2x324xf32>
    %c36_56 = arith.constant 36 : index
    %849 = memref.load %arg5[%c36_56] : memref<144xf32, #tpu.memory_space<smem>>
    %850 = vector.broadcast %849 : f32 to vector<2x324xf32>
    %851 = arith.mulf %848, %850 : vector<2x324xf32>
    %852 = arith.addf %835, %851 : vector<2x324xf32>
    %c37_57 = arith.constant 37 : index
    %853 = memref.load %arg5[%c37_57] : memref<144xf32, #tpu.memory_space<smem>>
    %854 = vector.broadcast %853 : f32 to vector<2x324xf32>
    %855 = arith.mulf %848, %854 : vector<2x324xf32>
    %856 = arith.addf %839, %855 : vector<2x324xf32>
    %c38_58 = arith.constant 38 : index
    %857 = memref.load %arg5[%c38_58] : memref<144xf32, #tpu.memory_space<smem>>
    %858 = vector.broadcast %857 : f32 to vector<2x324xf32>
    %859 = arith.mulf %848, %858 : vector<2x324xf32>
    %860 = arith.addf %843, %859 : vector<2x324xf32>
    %c39_59 = arith.constant 39 : index
    %861 = memref.load %arg5[%c39_59] : memref<144xf32, #tpu.memory_space<smem>>
    %862 = vector.broadcast %861 : f32 to vector<2x324xf32>
    %863 = arith.mulf %848, %862 : vector<2x324xf32>
    %864 = arith.addf %847, %863 : vector<2x324xf32>
    %865 = vector.extract_strided_slice %683 {offsets = [0, 2], sizes = [2, 324], strides = [1, 1]} : vector<2x362xf32> to vector<2x324xf32>
    %c40_60 = arith.constant 40 : index
    %866 = memref.load %arg5[%c40_60] : memref<144xf32, #tpu.memory_space<smem>>
    %867 = vector.broadcast %866 : f32 to vector<2x324xf32>
    %868 = arith.mulf %865, %867 : vector<2x324xf32>
    %869 = arith.addf %852, %868 : vector<2x324xf32>
    %c41_61 = arith.constant 41 : index
    %870 = memref.load %arg5[%c41_61] : memref<144xf32, #tpu.memory_space<smem>>
    %871 = vector.broadcast %870 : f32 to vector<2x324xf32>
    %872 = arith.mulf %865, %871 : vector<2x324xf32>
    %873 = arith.addf %856, %872 : vector<2x324xf32>
    %c42_62 = arith.constant 42 : index
    %874 = memref.load %arg5[%c42_62] : memref<144xf32, #tpu.memory_space<smem>>
    %875 = vector.broadcast %874 : f32 to vector<2x324xf32>
    %876 = arith.mulf %865, %875 : vector<2x324xf32>
    %877 = arith.addf %860, %876 : vector<2x324xf32>
    %c43_63 = arith.constant 43 : index
    %878 = memref.load %arg5[%c43_63] : memref<144xf32, #tpu.memory_space<smem>>
    %879 = vector.broadcast %878 : f32 to vector<2x324xf32>
    %880 = arith.mulf %865, %879 : vector<2x324xf32>
    %881 = arith.addf %864, %880 : vector<2x324xf32>
    %882 = vector.extract_strided_slice %690 {offsets = [0, 2], sizes = [2, 324], strides = [1, 1]} : vector<2x362xf32> to vector<2x324xf32>
    %c44_64 = arith.constant 44 : index
    %883 = memref.load %arg5[%c44_64] : memref<144xf32, #tpu.memory_space<smem>>
    %884 = vector.broadcast %883 : f32 to vector<2x324xf32>
    %885 = arith.mulf %882, %884 : vector<2x324xf32>
    %886 = arith.addf %869, %885 : vector<2x324xf32>
    %c45_65 = arith.constant 45 : index
    %887 = memref.load %arg5[%c45_65] : memref<144xf32, #tpu.memory_space<smem>>
    %888 = vector.broadcast %887 : f32 to vector<2x324xf32>
    %889 = arith.mulf %882, %888 : vector<2x324xf32>
    %890 = arith.addf %873, %889 : vector<2x324xf32>
    %c46_66 = arith.constant 46 : index
    %891 = memref.load %arg5[%c46_66] : memref<144xf32, #tpu.memory_space<smem>>
    %892 = vector.broadcast %891 : f32 to vector<2x324xf32>
    %893 = arith.mulf %882, %892 : vector<2x324xf32>
    %894 = arith.addf %877, %893 : vector<2x324xf32>
    %c47_67 = arith.constant 47 : index
    %895 = memref.load %arg5[%c47_67] : memref<144xf32, #tpu.memory_space<smem>>
    %896 = vector.broadcast %895 : f32 to vector<2x324xf32>
    %897 = arith.mulf %882, %896 : vector<2x324xf32>
    %898 = arith.addf %881, %897 : vector<2x324xf32>
    %899 = vector.extract_strided_slice %669 {offsets = [0, 18], sizes = [2, 324], strides = [1, 1]} : vector<2x362xf32> to vector<2x324xf32>
    %c48_68 = arith.constant 48 : index
    %900 = memref.load %arg5[%c48_68] : memref<144xf32, #tpu.memory_space<smem>>
    %901 = vector.broadcast %900 : f32 to vector<2x324xf32>
    %902 = arith.mulf %899, %901 : vector<2x324xf32>
    %903 = arith.addf %886, %902 : vector<2x324xf32>
    %c49_69 = arith.constant 49 : index
    %904 = memref.load %arg5[%c49_69] : memref<144xf32, #tpu.memory_space<smem>>
    %905 = vector.broadcast %904 : f32 to vector<2x324xf32>
    %906 = arith.mulf %899, %905 : vector<2x324xf32>
    %907 = arith.addf %890, %906 : vector<2x324xf32>
    %c50_70 = arith.constant 50 : index
    %908 = memref.load %arg5[%c50_70] : memref<144xf32, #tpu.memory_space<smem>>
    %909 = vector.broadcast %908 : f32 to vector<2x324xf32>
    %910 = arith.mulf %899, %909 : vector<2x324xf32>
    %911 = arith.addf %894, %910 : vector<2x324xf32>
    %c51_71 = arith.constant 51 : index
    %912 = memref.load %arg5[%c51_71] : memref<144xf32, #tpu.memory_space<smem>>
    %913 = vector.broadcast %912 : f32 to vector<2x324xf32>
    %914 = arith.mulf %899, %913 : vector<2x324xf32>
    %915 = arith.addf %898, %914 : vector<2x324xf32>
    %916 = vector.extract_strided_slice %676 {offsets = [0, 18], sizes = [2, 324], strides = [1, 1]} : vector<2x362xf32> to vector<2x324xf32>
    %c52_72 = arith.constant 52 : index
    %917 = memref.load %arg5[%c52_72] : memref<144xf32, #tpu.memory_space<smem>>
    %918 = vector.broadcast %917 : f32 to vector<2x324xf32>
    %919 = arith.mulf %916, %918 : vector<2x324xf32>
    %920 = arith.addf %903, %919 : vector<2x324xf32>
    %c53_73 = arith.constant 53 : index
    %921 = memref.load %arg5[%c53_73] : memref<144xf32, #tpu.memory_space<smem>>
    %922 = vector.broadcast %921 : f32 to vector<2x324xf32>
    %923 = arith.mulf %916, %922 : vector<2x324xf32>
    %924 = arith.addf %907, %923 : vector<2x324xf32>
    %c54_74 = arith.constant 54 : index
    %925 = memref.load %arg5[%c54_74] : memref<144xf32, #tpu.memory_space<smem>>
    %926 = vector.broadcast %925 : f32 to vector<2x324xf32>
    %927 = arith.mulf %916, %926 : vector<2x324xf32>
    %928 = arith.addf %911, %927 : vector<2x324xf32>
    %c55_75 = arith.constant 55 : index
    %929 = memref.load %arg5[%c55_75] : memref<144xf32, #tpu.memory_space<smem>>
    %930 = vector.broadcast %929 : f32 to vector<2x324xf32>
    %931 = arith.mulf %916, %930 : vector<2x324xf32>
    %932 = arith.addf %915, %931 : vector<2x324xf32>
    %933 = vector.extract_strided_slice %683 {offsets = [0, 18], sizes = [2, 324], strides = [1, 1]} : vector<2x362xf32> to vector<2x324xf32>
    %c56_76 = arith.constant 56 : index
    %934 = memref.load %arg5[%c56_76] : memref<144xf32, #tpu.memory_space<smem>>
    %935 = vector.broadcast %934 : f32 to vector<2x324xf32>
    %936 = arith.mulf %933, %935 : vector<2x324xf32>
    %937 = arith.addf %920, %936 : vector<2x324xf32>
    %c57_77 = arith.constant 57 : index
    %938 = memref.load %arg5[%c57_77] : memref<144xf32, #tpu.memory_space<smem>>
    %939 = vector.broadcast %938 : f32 to vector<2x324xf32>
    %940 = arith.mulf %933, %939 : vector<2x324xf32>
    %941 = arith.addf %924, %940 : vector<2x324xf32>
    %c58_78 = arith.constant 58 : index
    %942 = memref.load %arg5[%c58_78] : memref<144xf32, #tpu.memory_space<smem>>
    %943 = vector.broadcast %942 : f32 to vector<2x324xf32>
    %944 = arith.mulf %933, %943 : vector<2x324xf32>
    %945 = arith.addf %928, %944 : vector<2x324xf32>
    %c59_79 = arith.constant 59 : index
    %946 = memref.load %arg5[%c59_79] : memref<144xf32, #tpu.memory_space<smem>>
    %947 = vector.broadcast %946 : f32 to vector<2x324xf32>
    %948 = arith.mulf %933, %947 : vector<2x324xf32>
    %949 = arith.addf %932, %948 : vector<2x324xf32>
    %950 = vector.extract_strided_slice %690 {offsets = [0, 18], sizes = [2, 324], strides = [1, 1]} : vector<2x362xf32> to vector<2x324xf32>
    %c60_80 = arith.constant 60 : index
    %951 = memref.load %arg5[%c60_80] : memref<144xf32, #tpu.memory_space<smem>>
    %952 = vector.broadcast %951 : f32 to vector<2x324xf32>
    %953 = arith.mulf %950, %952 : vector<2x324xf32>
    %954 = arith.addf %937, %953 : vector<2x324xf32>
    %c61_81 = arith.constant 61 : index
    %955 = memref.load %arg5[%c61_81] : memref<144xf32, #tpu.memory_space<smem>>
    %956 = vector.broadcast %955 : f32 to vector<2x324xf32>
    %957 = arith.mulf %950, %956 : vector<2x324xf32>
    %958 = arith.addf %941, %957 : vector<2x324xf32>
    %c62_82 = arith.constant 62 : index
    %959 = memref.load %arg5[%c62_82] : memref<144xf32, #tpu.memory_space<smem>>
    %960 = vector.broadcast %959 : f32 to vector<2x324xf32>
    %961 = arith.mulf %950, %960 : vector<2x324xf32>
    %962 = arith.addf %945, %961 : vector<2x324xf32>
    %c63_83 = arith.constant 63 : index
    %963 = memref.load %arg5[%c63_83] : memref<144xf32, #tpu.memory_space<smem>>
    %964 = vector.broadcast %963 : f32 to vector<2x324xf32>
    %965 = arith.mulf %950, %964 : vector<2x324xf32>
    %966 = arith.addf %949, %965 : vector<2x324xf32>
    %967 = vector.extract_strided_slice %669 {offsets = [0, 19], sizes = [2, 324], strides = [1, 1]} : vector<2x362xf32> to vector<2x324xf32>
    %c64_84 = arith.constant 64 : index
    %968 = memref.load %arg5[%c64_84] : memref<144xf32, #tpu.memory_space<smem>>
    %969 = vector.broadcast %968 : f32 to vector<2x324xf32>
    %970 = arith.mulf %967, %969 : vector<2x324xf32>
    %971 = arith.addf %954, %970 : vector<2x324xf32>
    %c65_85 = arith.constant 65 : index
    %972 = memref.load %arg5[%c65_85] : memref<144xf32, #tpu.memory_space<smem>>
    %973 = vector.broadcast %972 : f32 to vector<2x324xf32>
    %974 = arith.mulf %967, %973 : vector<2x324xf32>
    %975 = arith.addf %958, %974 : vector<2x324xf32>
    %c66_86 = arith.constant 66 : index
    %976 = memref.load %arg5[%c66_86] : memref<144xf32, #tpu.memory_space<smem>>
    %977 = vector.broadcast %976 : f32 to vector<2x324xf32>
    %978 = arith.mulf %967, %977 : vector<2x324xf32>
    %979 = arith.addf %962, %978 : vector<2x324xf32>
    %c67_87 = arith.constant 67 : index
    %980 = memref.load %arg5[%c67_87] : memref<144xf32, #tpu.memory_space<smem>>
    %981 = vector.broadcast %980 : f32 to vector<2x324xf32>
    %982 = arith.mulf %967, %981 : vector<2x324xf32>
    %983 = arith.addf %966, %982 : vector<2x324xf32>
    %984 = vector.extract_strided_slice %676 {offsets = [0, 19], sizes = [2, 324], strides = [1, 1]} : vector<2x362xf32> to vector<2x324xf32>
    %c68_88 = arith.constant 68 : index
    %985 = memref.load %arg5[%c68_88] : memref<144xf32, #tpu.memory_space<smem>>
    %986 = vector.broadcast %985 : f32 to vector<2x324xf32>
    %987 = arith.mulf %984, %986 : vector<2x324xf32>
    %988 = arith.addf %971, %987 : vector<2x324xf32>
    %c69_89 = arith.constant 69 : index
    %989 = memref.load %arg5[%c69_89] : memref<144xf32, #tpu.memory_space<smem>>
    %990 = vector.broadcast %989 : f32 to vector<2x324xf32>
    %991 = arith.mulf %984, %990 : vector<2x324xf32>
    %992 = arith.addf %975, %991 : vector<2x324xf32>
    %c70_90 = arith.constant 70 : index
    %993 = memref.load %arg5[%c70_90] : memref<144xf32, #tpu.memory_space<smem>>
    %994 = vector.broadcast %993 : f32 to vector<2x324xf32>
    %995 = arith.mulf %984, %994 : vector<2x324xf32>
    %996 = arith.addf %979, %995 : vector<2x324xf32>
    %c71_91 = arith.constant 71 : index
    %997 = memref.load %arg5[%c71_91] : memref<144xf32, #tpu.memory_space<smem>>
    %998 = vector.broadcast %997 : f32 to vector<2x324xf32>
    %999 = arith.mulf %984, %998 : vector<2x324xf32>
    %1000 = arith.addf %983, %999 : vector<2x324xf32>
    %1001 = vector.extract_strided_slice %683 {offsets = [0, 19], sizes = [2, 324], strides = [1, 1]} : vector<2x362xf32> to vector<2x324xf32>
    %c72_92 = arith.constant 72 : index
    %1002 = memref.load %arg5[%c72_92] : memref<144xf32, #tpu.memory_space<smem>>
    %1003 = vector.broadcast %1002 : f32 to vector<2x324xf32>
    %1004 = arith.mulf %1001, %1003 : vector<2x324xf32>
    %1005 = arith.addf %988, %1004 : vector<2x324xf32>
    %c73_93 = arith.constant 73 : index
    %1006 = memref.load %arg5[%c73_93] : memref<144xf32, #tpu.memory_space<smem>>
    %1007 = vector.broadcast %1006 : f32 to vector<2x324xf32>
    %1008 = arith.mulf %1001, %1007 : vector<2x324xf32>
    %1009 = arith.addf %992, %1008 : vector<2x324xf32>
    %c74_94 = arith.constant 74 : index
    %1010 = memref.load %arg5[%c74_94] : memref<144xf32, #tpu.memory_space<smem>>
    %1011 = vector.broadcast %1010 : f32 to vector<2x324xf32>
    %1012 = arith.mulf %1001, %1011 : vector<2x324xf32>
    %1013 = arith.addf %996, %1012 : vector<2x324xf32>
    %c75_95 = arith.constant 75 : index
    %1014 = memref.load %arg5[%c75_95] : memref<144xf32, #tpu.memory_space<smem>>
    %1015 = vector.broadcast %1014 : f32 to vector<2x324xf32>
    %1016 = arith.mulf %1001, %1015 : vector<2x324xf32>
    %1017 = arith.addf %1000, %1016 : vector<2x324xf32>
    %1018 = vector.extract_strided_slice %690 {offsets = [0, 19], sizes = [2, 324], strides = [1, 1]} : vector<2x362xf32> to vector<2x324xf32>
    %c76_96 = arith.constant 76 : index
    %1019 = memref.load %arg5[%c76_96] : memref<144xf32, #tpu.memory_space<smem>>
    %1020 = vector.broadcast %1019 : f32 to vector<2x324xf32>
    %1021 = arith.mulf %1018, %1020 : vector<2x324xf32>
    %1022 = arith.addf %1005, %1021 : vector<2x324xf32>
    %c77_97 = arith.constant 77 : index
    %1023 = memref.load %arg5[%c77_97] : memref<144xf32, #tpu.memory_space<smem>>
    %1024 = vector.broadcast %1023 : f32 to vector<2x324xf32>
    %1025 = arith.mulf %1018, %1024 : vector<2x324xf32>
    %1026 = arith.addf %1009, %1025 : vector<2x324xf32>
    %c78_98 = arith.constant 78 : index
    %1027 = memref.load %arg5[%c78_98] : memref<144xf32, #tpu.memory_space<smem>>
    %1028 = vector.broadcast %1027 : f32 to vector<2x324xf32>
    %1029 = arith.mulf %1018, %1028 : vector<2x324xf32>
    %1030 = arith.addf %1013, %1029 : vector<2x324xf32>
    %c79_99 = arith.constant 79 : index
    %1031 = memref.load %arg5[%c79_99] : memref<144xf32, #tpu.memory_space<smem>>
    %1032 = vector.broadcast %1031 : f32 to vector<2x324xf32>
    %1033 = arith.mulf %1018, %1032 : vector<2x324xf32>
    %1034 = arith.addf %1017, %1033 : vector<2x324xf32>
    %1035 = vector.extract_strided_slice %669 {offsets = [0, 20], sizes = [2, 324], strides = [1, 1]} : vector<2x362xf32> to vector<2x324xf32>
    %c80_100 = arith.constant 80 : index
    %1036 = memref.load %arg5[%c80_100] : memref<144xf32, #tpu.memory_space<smem>>
    %1037 = vector.broadcast %1036 : f32 to vector<2x324xf32>
    %1038 = arith.mulf %1035, %1037 : vector<2x324xf32>
    %1039 = arith.addf %1022, %1038 : vector<2x324xf32>
    %c81_101 = arith.constant 81 : index
    %1040 = memref.load %arg5[%c81_101] : memref<144xf32, #tpu.memory_space<smem>>
    %1041 = vector.broadcast %1040 : f32 to vector<2x324xf32>
    %1042 = arith.mulf %1035, %1041 : vector<2x324xf32>
    %1043 = arith.addf %1026, %1042 : vector<2x324xf32>
    %c82_102 = arith.constant 82 : index
    %1044 = memref.load %arg5[%c82_102] : memref<144xf32, #tpu.memory_space<smem>>
    %1045 = vector.broadcast %1044 : f32 to vector<2x324xf32>
    %1046 = arith.mulf %1035, %1045 : vector<2x324xf32>
    %1047 = arith.addf %1030, %1046 : vector<2x324xf32>
    %c83_103 = arith.constant 83 : index
    %1048 = memref.load %arg5[%c83_103] : memref<144xf32, #tpu.memory_space<smem>>
    %1049 = vector.broadcast %1048 : f32 to vector<2x324xf32>
    %1050 = arith.mulf %1035, %1049 : vector<2x324xf32>
    %1051 = arith.addf %1034, %1050 : vector<2x324xf32>
    %1052 = vector.extract_strided_slice %676 {offsets = [0, 20], sizes = [2, 324], strides = [1, 1]} : vector<2x362xf32> to vector<2x324xf32>
    %c84_104 = arith.constant 84 : index
    %1053 = memref.load %arg5[%c84_104] : memref<144xf32, #tpu.memory_space<smem>>
    %1054 = vector.broadcast %1053 : f32 to vector<2x324xf32>
    %1055 = arith.mulf %1052, %1054 : vector<2x324xf32>
    %1056 = arith.addf %1039, %1055 : vector<2x324xf32>
    %c85_105 = arith.constant 85 : index
    %1057 = memref.load %arg5[%c85_105] : memref<144xf32, #tpu.memory_space<smem>>
    %1058 = vector.broadcast %1057 : f32 to vector<2x324xf32>
    %1059 = arith.mulf %1052, %1058 : vector<2x324xf32>
    %1060 = arith.addf %1043, %1059 : vector<2x324xf32>
    %c86_106 = arith.constant 86 : index
    %1061 = memref.load %arg5[%c86_106] : memref<144xf32, #tpu.memory_space<smem>>
    %1062 = vector.broadcast %1061 : f32 to vector<2x324xf32>
    %1063 = arith.mulf %1052, %1062 : vector<2x324xf32>
    %1064 = arith.addf %1047, %1063 : vector<2x324xf32>
    %c87_107 = arith.constant 87 : index
    %1065 = memref.load %arg5[%c87_107] : memref<144xf32, #tpu.memory_space<smem>>
    %1066 = vector.broadcast %1065 : f32 to vector<2x324xf32>
    %1067 = arith.mulf %1052, %1066 : vector<2x324xf32>
    %1068 = arith.addf %1051, %1067 : vector<2x324xf32>
    %1069 = vector.extract_strided_slice %683 {offsets = [0, 20], sizes = [2, 324], strides = [1, 1]} : vector<2x362xf32> to vector<2x324xf32>
    %c88_108 = arith.constant 88 : index
    %1070 = memref.load %arg5[%c88_108] : memref<144xf32, #tpu.memory_space<smem>>
    %1071 = vector.broadcast %1070 : f32 to vector<2x324xf32>
    %1072 = arith.mulf %1069, %1071 : vector<2x324xf32>
    %1073 = arith.addf %1056, %1072 : vector<2x324xf32>
    %c89_109 = arith.constant 89 : index
    %1074 = memref.load %arg5[%c89_109] : memref<144xf32, #tpu.memory_space<smem>>
    %1075 = vector.broadcast %1074 : f32 to vector<2x324xf32>
    %1076 = arith.mulf %1069, %1075 : vector<2x324xf32>
    %1077 = arith.addf %1060, %1076 : vector<2x324xf32>
    %c90_110 = arith.constant 90 : index
    %1078 = memref.load %arg5[%c90_110] : memref<144xf32, #tpu.memory_space<smem>>
    %1079 = vector.broadcast %1078 : f32 to vector<2x324xf32>
    %1080 = arith.mulf %1069, %1079 : vector<2x324xf32>
    %1081 = arith.addf %1064, %1080 : vector<2x324xf32>
    %c91_111 = arith.constant 91 : index
    %1082 = memref.load %arg5[%c91_111] : memref<144xf32, #tpu.memory_space<smem>>
    %1083 = vector.broadcast %1082 : f32 to vector<2x324xf32>
    %1084 = arith.mulf %1069, %1083 : vector<2x324xf32>
    %1085 = arith.addf %1068, %1084 : vector<2x324xf32>
    %1086 = vector.extract_strided_slice %690 {offsets = [0, 20], sizes = [2, 324], strides = [1, 1]} : vector<2x362xf32> to vector<2x324xf32>
    %c92_112 = arith.constant 92 : index
    %1087 = memref.load %arg5[%c92_112] : memref<144xf32, #tpu.memory_space<smem>>
    %1088 = vector.broadcast %1087 : f32 to vector<2x324xf32>
    %1089 = arith.mulf %1086, %1088 : vector<2x324xf32>
    %1090 = arith.addf %1073, %1089 : vector<2x324xf32>
    %c93_113 = arith.constant 93 : index
    %1091 = memref.load %arg5[%c93_113] : memref<144xf32, #tpu.memory_space<smem>>
    %1092 = vector.broadcast %1091 : f32 to vector<2x324xf32>
    %1093 = arith.mulf %1086, %1092 : vector<2x324xf32>
    %1094 = arith.addf %1077, %1093 : vector<2x324xf32>
    %c94_114 = arith.constant 94 : index
    %1095 = memref.load %arg5[%c94_114] : memref<144xf32, #tpu.memory_space<smem>>
    %1096 = vector.broadcast %1095 : f32 to vector<2x324xf32>
    %1097 = arith.mulf %1086, %1096 : vector<2x324xf32>
    %1098 = arith.addf %1081, %1097 : vector<2x324xf32>
    %c95_115 = arith.constant 95 : index
    %1099 = memref.load %arg5[%c95_115] : memref<144xf32, #tpu.memory_space<smem>>
    %1100 = vector.broadcast %1099 : f32 to vector<2x324xf32>
    %1101 = arith.mulf %1086, %1100 : vector<2x324xf32>
    %1102 = arith.addf %1085, %1101 : vector<2x324xf32>
    %1103 = vector.extract_strided_slice %669 {offsets = [0, 36], sizes = [2, 324], strides = [1, 1]} : vector<2x362xf32> to vector<2x324xf32>
    %c96_116 = arith.constant 96 : index
    %1104 = memref.load %arg5[%c96_116] : memref<144xf32, #tpu.memory_space<smem>>
    %1105 = vector.broadcast %1104 : f32 to vector<2x324xf32>
    %1106 = arith.mulf %1103, %1105 : vector<2x324xf32>
    %1107 = arith.addf %1090, %1106 : vector<2x324xf32>
    %c97_117 = arith.constant 97 : index
    %1108 = memref.load %arg5[%c97_117] : memref<144xf32, #tpu.memory_space<smem>>
    %1109 = vector.broadcast %1108 : f32 to vector<2x324xf32>
    %1110 = arith.mulf %1103, %1109 : vector<2x324xf32>
    %1111 = arith.addf %1094, %1110 : vector<2x324xf32>
    %c98_118 = arith.constant 98 : index
    %1112 = memref.load %arg5[%c98_118] : memref<144xf32, #tpu.memory_space<smem>>
    %1113 = vector.broadcast %1112 : f32 to vector<2x324xf32>
    %1114 = arith.mulf %1103, %1113 : vector<2x324xf32>
    %1115 = arith.addf %1098, %1114 : vector<2x324xf32>
    %c99_119 = arith.constant 99 : index
    %1116 = memref.load %arg5[%c99_119] : memref<144xf32, #tpu.memory_space<smem>>
    %1117 = vector.broadcast %1116 : f32 to vector<2x324xf32>
    %1118 = arith.mulf %1103, %1117 : vector<2x324xf32>
    %1119 = arith.addf %1102, %1118 : vector<2x324xf32>
    %1120 = vector.extract_strided_slice %676 {offsets = [0, 36], sizes = [2, 324], strides = [1, 1]} : vector<2x362xf32> to vector<2x324xf32>
    %c100_120 = arith.constant 100 : index
    %1121 = memref.load %arg5[%c100_120] : memref<144xf32, #tpu.memory_space<smem>>
    %1122 = vector.broadcast %1121 : f32 to vector<2x324xf32>
    %1123 = arith.mulf %1120, %1122 : vector<2x324xf32>
    %1124 = arith.addf %1107, %1123 : vector<2x324xf32>
    %c101_121 = arith.constant 101 : index
    %1125 = memref.load %arg5[%c101_121] : memref<144xf32, #tpu.memory_space<smem>>
    %1126 = vector.broadcast %1125 : f32 to vector<2x324xf32>
    %1127 = arith.mulf %1120, %1126 : vector<2x324xf32>
    %1128 = arith.addf %1111, %1127 : vector<2x324xf32>
    %c102_122 = arith.constant 102 : index
    %1129 = memref.load %arg5[%c102_122] : memref<144xf32, #tpu.memory_space<smem>>
    %1130 = vector.broadcast %1129 : f32 to vector<2x324xf32>
    %1131 = arith.mulf %1120, %1130 : vector<2x324xf32>
    %1132 = arith.addf %1115, %1131 : vector<2x324xf32>
    %c103_123 = arith.constant 103 : index
    %1133 = memref.load %arg5[%c103_123] : memref<144xf32, #tpu.memory_space<smem>>
    %1134 = vector.broadcast %1133 : f32 to vector<2x324xf32>
    %1135 = arith.mulf %1120, %1134 : vector<2x324xf32>
    %1136 = arith.addf %1119, %1135 : vector<2x324xf32>
    %1137 = vector.extract_strided_slice %683 {offsets = [0, 36], sizes = [2, 324], strides = [1, 1]} : vector<2x362xf32> to vector<2x324xf32>
    %c104_124 = arith.constant 104 : index
    %1138 = memref.load %arg5[%c104_124] : memref<144xf32, #tpu.memory_space<smem>>
    %1139 = vector.broadcast %1138 : f32 to vector<2x324xf32>
    %1140 = arith.mulf %1137, %1139 : vector<2x324xf32>
    %1141 = arith.addf %1124, %1140 : vector<2x324xf32>
    %c105_125 = arith.constant 105 : index
    %1142 = memref.load %arg5[%c105_125] : memref<144xf32, #tpu.memory_space<smem>>
    %1143 = vector.broadcast %1142 : f32 to vector<2x324xf32>
    %1144 = arith.mulf %1137, %1143 : vector<2x324xf32>
    %1145 = arith.addf %1128, %1144 : vector<2x324xf32>
    %c106_126 = arith.constant 106 : index
    %1146 = memref.load %arg5[%c106_126] : memref<144xf32, #tpu.memory_space<smem>>
    %1147 = vector.broadcast %1146 : f32 to vector<2x324xf32>
    %1148 = arith.mulf %1137, %1147 : vector<2x324xf32>
    %1149 = arith.addf %1132, %1148 : vector<2x324xf32>
    %c107_127 = arith.constant 107 : index
    %1150 = memref.load %arg5[%c107_127] : memref<144xf32, #tpu.memory_space<smem>>
    %1151 = vector.broadcast %1150 : f32 to vector<2x324xf32>
    %1152 = arith.mulf %1137, %1151 : vector<2x324xf32>
    %1153 = arith.addf %1136, %1152 : vector<2x324xf32>
    %1154 = vector.extract_strided_slice %690 {offsets = [0, 36], sizes = [2, 324], strides = [1, 1]} : vector<2x362xf32> to vector<2x324xf32>
    %c108_128 = arith.constant 108 : index
    %1155 = memref.load %arg5[%c108_128] : memref<144xf32, #tpu.memory_space<smem>>
    %1156 = vector.broadcast %1155 : f32 to vector<2x324xf32>
    %1157 = arith.mulf %1154, %1156 : vector<2x324xf32>
    %1158 = arith.addf %1141, %1157 : vector<2x324xf32>
    %c109_129 = arith.constant 109 : index
    %1159 = memref.load %arg5[%c109_129] : memref<144xf32, #tpu.memory_space<smem>>
    %1160 = vector.broadcast %1159 : f32 to vector<2x324xf32>
    %1161 = arith.mulf %1154, %1160 : vector<2x324xf32>
    %1162 = arith.addf %1145, %1161 : vector<2x324xf32>
    %c110_130 = arith.constant 110 : index
    %1163 = memref.load %arg5[%c110_130] : memref<144xf32, #tpu.memory_space<smem>>
    %1164 = vector.broadcast %1163 : f32 to vector<2x324xf32>
    %1165 = arith.mulf %1154, %1164 : vector<2x324xf32>
    %1166 = arith.addf %1149, %1165 : vector<2x324xf32>
    %c111_131 = arith.constant 111 : index
    %1167 = memref.load %arg5[%c111_131] : memref<144xf32, #tpu.memory_space<smem>>
    %1168 = vector.broadcast %1167 : f32 to vector<2x324xf32>
    %1169 = arith.mulf %1154, %1168 : vector<2x324xf32>
    %1170 = arith.addf %1153, %1169 : vector<2x324xf32>
    %1171 = vector.extract_strided_slice %669 {offsets = [0, 37], sizes = [2, 324], strides = [1, 1]} : vector<2x362xf32> to vector<2x324xf32>
    %c112_132 = arith.constant 112 : index
    %1172 = memref.load %arg5[%c112_132] : memref<144xf32, #tpu.memory_space<smem>>
    %1173 = vector.broadcast %1172 : f32 to vector<2x324xf32>
    %1174 = arith.mulf %1171, %1173 : vector<2x324xf32>
    %1175 = arith.addf %1158, %1174 : vector<2x324xf32>
    %c113_133 = arith.constant 113 : index
    %1176 = memref.load %arg5[%c113_133] : memref<144xf32, #tpu.memory_space<smem>>
    %1177 = vector.broadcast %1176 : f32 to vector<2x324xf32>
    %1178 = arith.mulf %1171, %1177 : vector<2x324xf32>
    %1179 = arith.addf %1162, %1178 : vector<2x324xf32>
    %c114_134 = arith.constant 114 : index
    %1180 = memref.load %arg5[%c114_134] : memref<144xf32, #tpu.memory_space<smem>>
    %1181 = vector.broadcast %1180 : f32 to vector<2x324xf32>
    %1182 = arith.mulf %1171, %1181 : vector<2x324xf32>
    %1183 = arith.addf %1166, %1182 : vector<2x324xf32>
    %c115_135 = arith.constant 115 : index
    %1184 = memref.load %arg5[%c115_135] : memref<144xf32, #tpu.memory_space<smem>>
    %1185 = vector.broadcast %1184 : f32 to vector<2x324xf32>
    %1186 = arith.mulf %1171, %1185 : vector<2x324xf32>
    %1187 = arith.addf %1170, %1186 : vector<2x324xf32>
    %1188 = vector.extract_strided_slice %676 {offsets = [0, 37], sizes = [2, 324], strides = [1, 1]} : vector<2x362xf32> to vector<2x324xf32>
    %c116_136 = arith.constant 116 : index
    %1189 = memref.load %arg5[%c116_136] : memref<144xf32, #tpu.memory_space<smem>>
    %1190 = vector.broadcast %1189 : f32 to vector<2x324xf32>
    %1191 = arith.mulf %1188, %1190 : vector<2x324xf32>
    %1192 = arith.addf %1175, %1191 : vector<2x324xf32>
    %c117_137 = arith.constant 117 : index
    %1193 = memref.load %arg5[%c117_137] : memref<144xf32, #tpu.memory_space<smem>>
    %1194 = vector.broadcast %1193 : f32 to vector<2x324xf32>
    %1195 = arith.mulf %1188, %1194 : vector<2x324xf32>
    %1196 = arith.addf %1179, %1195 : vector<2x324xf32>
    %c118_138 = arith.constant 118 : index
    %1197 = memref.load %arg5[%c118_138] : memref<144xf32, #tpu.memory_space<smem>>
    %1198 = vector.broadcast %1197 : f32 to vector<2x324xf32>
    %1199 = arith.mulf %1188, %1198 : vector<2x324xf32>
    %1200 = arith.addf %1183, %1199 : vector<2x324xf32>
    %c119_139 = arith.constant 119 : index
    %1201 = memref.load %arg5[%c119_139] : memref<144xf32, #tpu.memory_space<smem>>
    %1202 = vector.broadcast %1201 : f32 to vector<2x324xf32>
    %1203 = arith.mulf %1188, %1202 : vector<2x324xf32>
    %1204 = arith.addf %1187, %1203 : vector<2x324xf32>
    %1205 = vector.extract_strided_slice %683 {offsets = [0, 37], sizes = [2, 324], strides = [1, 1]} : vector<2x362xf32> to vector<2x324xf32>
    %c120_140 = arith.constant 120 : index
    %1206 = memref.load %arg5[%c120_140] : memref<144xf32, #tpu.memory_space<smem>>
    %1207 = vector.broadcast %1206 : f32 to vector<2x324xf32>
    %1208 = arith.mulf %1205, %1207 : vector<2x324xf32>
    %1209 = arith.addf %1192, %1208 : vector<2x324xf32>
    %c121_141 = arith.constant 121 : index
    %1210 = memref.load %arg5[%c121_141] : memref<144xf32, #tpu.memory_space<smem>>
    %1211 = vector.broadcast %1210 : f32 to vector<2x324xf32>
    %1212 = arith.mulf %1205, %1211 : vector<2x324xf32>
    %1213 = arith.addf %1196, %1212 : vector<2x324xf32>
    %c122_142 = arith.constant 122 : index
    %1214 = memref.load %arg5[%c122_142] : memref<144xf32, #tpu.memory_space<smem>>
    %1215 = vector.broadcast %1214 : f32 to vector<2x324xf32>
    %1216 = arith.mulf %1205, %1215 : vector<2x324xf32>
    %1217 = arith.addf %1200, %1216 : vector<2x324xf32>
    %c123_143 = arith.constant 123 : index
    %1218 = memref.load %arg5[%c123_143] : memref<144xf32, #tpu.memory_space<smem>>
    %1219 = vector.broadcast %1218 : f32 to vector<2x324xf32>
    %1220 = arith.mulf %1205, %1219 : vector<2x324xf32>
    %1221 = arith.addf %1204, %1220 : vector<2x324xf32>
    %1222 = vector.extract_strided_slice %690 {offsets = [0, 37], sizes = [2, 324], strides = [1, 1]} : vector<2x362xf32> to vector<2x324xf32>
    %c124_144 = arith.constant 124 : index
    %1223 = memref.load %arg5[%c124_144] : memref<144xf32, #tpu.memory_space<smem>>
    %1224 = vector.broadcast %1223 : f32 to vector<2x324xf32>
    %1225 = arith.mulf %1222, %1224 : vector<2x324xf32>
    %1226 = arith.addf %1209, %1225 : vector<2x324xf32>
    %c125_145 = arith.constant 125 : index
    %1227 = memref.load %arg5[%c125_145] : memref<144xf32, #tpu.memory_space<smem>>
    %1228 = vector.broadcast %1227 : f32 to vector<2x324xf32>
    %1229 = arith.mulf %1222, %1228 : vector<2x324xf32>
    %1230 = arith.addf %1213, %1229 : vector<2x324xf32>
    %c126_146 = arith.constant 126 : index
    %1231 = memref.load %arg5[%c126_146] : memref<144xf32, #tpu.memory_space<smem>>
    %1232 = vector.broadcast %1231 : f32 to vector<2x324xf32>
    %1233 = arith.mulf %1222, %1232 : vector<2x324xf32>
    %1234 = arith.addf %1217, %1233 : vector<2x324xf32>
    %c127_147 = arith.constant 127 : index
    %1235 = memref.load %arg5[%c127_147] : memref<144xf32, #tpu.memory_space<smem>>
    %1236 = vector.broadcast %1235 : f32 to vector<2x324xf32>
    %1237 = arith.mulf %1222, %1236 : vector<2x324xf32>
    %1238 = arith.addf %1221, %1237 : vector<2x324xf32>
    %1239 = vector.extract_strided_slice %669 {offsets = [0, 38], sizes = [2, 324], strides = [1, 1]} : vector<2x362xf32> to vector<2x324xf32>
    %c128_148 = arith.constant 128 : index
    %1240 = memref.load %arg5[%c128_148] : memref<144xf32, #tpu.memory_space<smem>>
    %1241 = vector.broadcast %1240 : f32 to vector<2x324xf32>
    %1242 = arith.mulf %1239, %1241 : vector<2x324xf32>
    %1243 = arith.addf %1226, %1242 : vector<2x324xf32>
    %c129_149 = arith.constant 129 : index
    %1244 = memref.load %arg5[%c129_149] : memref<144xf32, #tpu.memory_space<smem>>
    %1245 = vector.broadcast %1244 : f32 to vector<2x324xf32>
    %1246 = arith.mulf %1239, %1245 : vector<2x324xf32>
    %1247 = arith.addf %1230, %1246 : vector<2x324xf32>
    %c130_150 = arith.constant 130 : index
    %1248 = memref.load %arg5[%c130_150] : memref<144xf32, #tpu.memory_space<smem>>
    %1249 = vector.broadcast %1248 : f32 to vector<2x324xf32>
    %1250 = arith.mulf %1239, %1249 : vector<2x324xf32>
    %1251 = arith.addf %1234, %1250 : vector<2x324xf32>
    %c131_151 = arith.constant 131 : index
    %1252 = memref.load %arg5[%c131_151] : memref<144xf32, #tpu.memory_space<smem>>
    %1253 = vector.broadcast %1252 : f32 to vector<2x324xf32>
    %1254 = arith.mulf %1239, %1253 : vector<2x324xf32>
    %1255 = arith.addf %1238, %1254 : vector<2x324xf32>
    %1256 = vector.extract_strided_slice %676 {offsets = [0, 38], sizes = [2, 324], strides = [1, 1]} : vector<2x362xf32> to vector<2x324xf32>
    %c132_152 = arith.constant 132 : index
    %1257 = memref.load %arg5[%c132_152] : memref<144xf32, #tpu.memory_space<smem>>
    %1258 = vector.broadcast %1257 : f32 to vector<2x324xf32>
    %1259 = arith.mulf %1256, %1258 : vector<2x324xf32>
    %1260 = arith.addf %1243, %1259 : vector<2x324xf32>
    %c133_153 = arith.constant 133 : index
    %1261 = memref.load %arg5[%c133_153] : memref<144xf32, #tpu.memory_space<smem>>
    %1262 = vector.broadcast %1261 : f32 to vector<2x324xf32>
    %1263 = arith.mulf %1256, %1262 : vector<2x324xf32>
    %1264 = arith.addf %1247, %1263 : vector<2x324xf32>
    %c134_154 = arith.constant 134 : index
    %1265 = memref.load %arg5[%c134_154] : memref<144xf32, #tpu.memory_space<smem>>
    %1266 = vector.broadcast %1265 : f32 to vector<2x324xf32>
    %1267 = arith.mulf %1256, %1266 : vector<2x324xf32>
    %1268 = arith.addf %1251, %1267 : vector<2x324xf32>
    %c135_155 = arith.constant 135 : index
    %1269 = memref.load %arg5[%c135_155] : memref<144xf32, #tpu.memory_space<smem>>
    %1270 = vector.broadcast %1269 : f32 to vector<2x324xf32>
    %1271 = arith.mulf %1256, %1270 : vector<2x324xf32>
    %1272 = arith.addf %1255, %1271 : vector<2x324xf32>
    %1273 = vector.extract_strided_slice %683 {offsets = [0, 38], sizes = [2, 324], strides = [1, 1]} : vector<2x362xf32> to vector<2x324xf32>
    %c136_156 = arith.constant 136 : index
    %1274 = memref.load %arg5[%c136_156] : memref<144xf32, #tpu.memory_space<smem>>
    %1275 = vector.broadcast %1274 : f32 to vector<2x324xf32>
    %1276 = arith.mulf %1273, %1275 : vector<2x324xf32>
    %1277 = arith.addf %1260, %1276 : vector<2x324xf32>
    %c137_157 = arith.constant 137 : index
    %1278 = memref.load %arg5[%c137_157] : memref<144xf32, #tpu.memory_space<smem>>
    %1279 = vector.broadcast %1278 : f32 to vector<2x324xf32>
    %1280 = arith.mulf %1273, %1279 : vector<2x324xf32>
    %1281 = arith.addf %1264, %1280 : vector<2x324xf32>
    %c138_158 = arith.constant 138 : index
    %1282 = memref.load %arg5[%c138_158] : memref<144xf32, #tpu.memory_space<smem>>
    %1283 = vector.broadcast %1282 : f32 to vector<2x324xf32>
    %1284 = arith.mulf %1273, %1283 : vector<2x324xf32>
    %1285 = arith.addf %1268, %1284 : vector<2x324xf32>
    %c139_159 = arith.constant 139 : index
    %1286 = memref.load %arg5[%c139_159] : memref<144xf32, #tpu.memory_space<smem>>
    %1287 = vector.broadcast %1286 : f32 to vector<2x324xf32>
    %1288 = arith.mulf %1273, %1287 : vector<2x324xf32>
    %1289 = arith.addf %1272, %1288 : vector<2x324xf32>
    %1290 = vector.extract_strided_slice %690 {offsets = [0, 38], sizes = [2, 324], strides = [1, 1]} : vector<2x362xf32> to vector<2x324xf32>
    %c140_160 = arith.constant 140 : index
    %1291 = memref.load %arg5[%c140_160] : memref<144xf32, #tpu.memory_space<smem>>
    %1292 = vector.broadcast %1291 : f32 to vector<2x324xf32>
    %1293 = arith.mulf %1290, %1292 : vector<2x324xf32>
    %1294 = arith.addf %1277, %1293 : vector<2x324xf32>
    %c141_161 = arith.constant 141 : index
    %1295 = memref.load %arg5[%c141_161] : memref<144xf32, #tpu.memory_space<smem>>
    %1296 = vector.broadcast %1295 : f32 to vector<2x324xf32>
    %1297 = arith.mulf %1290, %1296 : vector<2x324xf32>
    %1298 = arith.addf %1281, %1297 : vector<2x324xf32>
    %c142_162 = arith.constant 142 : index
    %1299 = memref.load %arg5[%c142_162] : memref<144xf32, #tpu.memory_space<smem>>
    %1300 = vector.broadcast %1299 : f32 to vector<2x324xf32>
    %1301 = arith.mulf %1290, %1300 : vector<2x324xf32>
    %1302 = arith.addf %1285, %1301 : vector<2x324xf32>
    %c143_163 = arith.constant 143 : index
    %1303 = memref.load %arg5[%c143_163] : memref<144xf32, #tpu.memory_space<smem>>
    %1304 = vector.broadcast %1303 : f32 to vector<2x324xf32>
    %1305 = arith.mulf %1290, %1304 : vector<2x324xf32>
    %1306 = arith.addf %1289, %1305 : vector<2x324xf32>
    %1307 = vector.extract_strided_slice %2 {offsets = [0, 38], sizes = [2, 324], strides = [1, 1]} : vector<2x400xbf16> to vector<2x324xbf16>
    %1308 = arith.extf %1307 : vector<2x324xbf16> to vector<2x324xf32>
    %c0_164 = arith.constant 0 : index
    %1309 = memref.load %arg6[%c0_164] : memref<4xf32, #tpu.memory_space<smem>>
    %1310 = vector.broadcast %1309 : f32 to vector<2x324xf32>
    %1311 = arith.addf %1294, %1310 : vector<2x324xf32>
    %1312 = arith.addf %1311, %1308 : vector<2x324xf32>
    %cst_165 = arith.constant 0.000000e+00 : f32
    %1313 = vector.broadcast %cst_165 : f32 to vector<2x324xf32>
    %1314 = arith.maximumf %1312, %1313 : vector<2x324xf32>
    %1315 = vector.broadcast %10 : vector<1x324xf32> to vector<2x324xf32>
    %1316 = arith.mulf %1314, %1315 : vector<2x324xf32>
    %c0_166 = arith.constant 0 : index
    %c0_167 = arith.constant 0 : index
    %c0_168 = arith.constant 0 : index
    %1317 = vector.load %arg7[%c0_166, %c0_167, %c0_168] : memref<4x2x324xf32, #tpu.memory_space<vmem>>, vector<1x2x324xf32>
    %1318 = vector.shape_cast %1317 : vector<1x2x324xf32> to vector<2x324xf32>
    %1319 = vector.shape_cast %1316 : vector<2x324xf32> to vector<1x2x324xf32>
    tpu.vector_store %arg7[%c0_166, %c0_167, %c0_168], %1319 {strides = array<i32>} : memref<4x2x324xf32, #tpu.memory_space<vmem>>, vector<1x2x324xf32>,
    %1320 = vector.extract_strided_slice %4 {offsets = [0, 38], sizes = [2, 324], strides = [1, 1]} : vector<2x400xbf16> to vector<2x324xbf16>
    %1321 = arith.extf %1320 : vector<2x324xbf16> to vector<2x324xf32>
    %c1_169 = arith.constant 1 : index
    %1322 = memref.load %arg6[%c1_169] : memref<4xf32, #tpu.memory_space<smem>>
    %1323 = vector.broadcast %1322 : f32 to vector<2x324xf32>
    %1324 = arith.addf %1298, %1323 : vector<2x324xf32>
    %1325 = arith.addf %1324, %1321 : vector<2x324xf32>
    %cst_170 = arith.constant 0.000000e+00 : f32
    %1326 = vector.broadcast %cst_170 : f32 to vector<2x324xf32>
    %1327 = arith.maximumf %1325, %1326 : vector<2x324xf32>
    %1328 = vector.broadcast %10 : vector<1x324xf32> to vector<2x324xf32>
    %1329 = arith.mulf %1327, %1328 : vector<2x324xf32>
    %c1_171 = arith.constant 1 : index
    %c0_172 = arith.constant 0 : index
    %c0_173 = arith.constant 0 : index
    %1330 = vector.load %arg7[%c1_171, %c0_172, %c0_173] : memref<4x2x324xf32, #tpu.memory_space<vmem>>, vector<1x2x324xf32>
    %1331 = vector.shape_cast %1330 : vector<1x2x324xf32> to vector<2x324xf32>
    %1332 = vector.shape_cast %1329 : vector<2x324xf32> to vector<1x2x324xf32>
    tpu.vector_store %arg7[%c1_171, %c0_172, %c0_173], %1332 {strides = array<i32>} : memref<4x2x324xf32, #tpu.memory_space<vmem>>, vector<1x2x324xf32>,
    %1333 = vector.extract_strided_slice %6 {offsets = [0, 38], sizes = [2, 324], strides = [1, 1]} : vector<2x400xbf16> to vector<2x324xbf16>
    %1334 = arith.extf %1333 : vector<2x324xbf16> to vector<2x324xf32>
    %c2_174 = arith.constant 2 : index
    %1335 = memref.load %arg6[%c2_174] : memref<4xf32, #tpu.memory_space<smem>>
    %1336 = vector.broadcast %1335 : f32 to vector<2x324xf32>
    %1337 = arith.addf %1302, %1336 : vector<2x324xf32>
    %1338 = arith.addf %1337, %1334 : vector<2x324xf32>
    %cst_175 = arith.constant 0.000000e+00 : f32
    %1339 = vector.broadcast %cst_175 : f32 to vector<2x324xf32>
    %1340 = arith.maximumf %1338, %1339 : vector<2x324xf32>
    %1341 = vector.broadcast %10 : vector<1x324xf32> to vector<2x324xf32>
    %1342 = arith.mulf %1340, %1341 : vector<2x324xf32>
    %c2_176 = arith.constant 2 : index
    %c0_177 = arith.constant 0 : index
    %c0_178 = arith.constant 0 : index
    %1343 = vector.load %arg7[%c2_176, %c0_177, %c0_178] : memref<4x2x324xf32, #tpu.memory_space<vmem>>, vector<1x2x324xf32>
    %1344 = vector.shape_cast %1343 : vector<1x2x324xf32> to vector<2x324xf32>
    %1345 = vector.shape_cast %1342 : vector<2x324xf32> to vector<1x2x324xf32>
    tpu.vector_store %arg7[%c2_176, %c0_177, %c0_178], %1345 {strides = array<i32>} : memref<4x2x324xf32, #tpu.memory_space<vmem>>, vector<1x2x324xf32>,
    %1346 = vector.extract_strided_slice %8 {offsets = [0, 38], sizes = [2, 324], strides = [1, 1]} : vector<2x400xbf16> to vector<2x324xbf16>
    %1347 = arith.extf %1346 : vector<2x324xbf16> to vector<2x324xf32>
    %c3_179 = arith.constant 3 : index
    %1348 = memref.load %arg6[%c3_179] : memref<4xf32, #tpu.memory_space<smem>>
    %1349 = vector.broadcast %1348 : f32 to vector<2x324xf32>
    %1350 = arith.addf %1306, %1349 : vector<2x324xf32>
    %1351 = arith.addf %1350, %1347 : vector<2x324xf32>
    %cst_180 = arith.constant 0.000000e+00 : f32
    %1352 = vector.broadcast %cst_180 : f32 to vector<2x324xf32>
    %1353 = arith.maximumf %1351, %1352 : vector<2x324xf32>
    %1354 = vector.broadcast %10 : vector<1x324xf32> to vector<2x324xf32>
    %1355 = arith.mulf %1353, %1354 : vector<2x324xf32>
    %c3_181 = arith.constant 3 : index
    %c0_182 = arith.constant 0 : index
    %c0_183 = arith.constant 0 : index
    %1356 = vector.load %arg7[%c3_181, %c0_182, %c0_183] : memref<4x2x324xf32, #tpu.memory_space<vmem>>, vector<1x2x324xf32>
    %1357 = vector.shape_cast %1356 : vector<1x2x324xf32> to vector<2x324xf32>
    %1358 = vector.shape_cast %1355 : vector<2x324xf32> to vector<1x2x324xf32>
    tpu.vector_store %arg7[%c3_181, %c0_182, %c0_183], %1358 {strides = array<i32>} : memref<4x2x324xf32, #tpu.memory_space<vmem>>, vector<1x2x324xf32>,
    return
  }
  func.func @transform_0(%arg0: i32) -> (i32, i32, i32) {
    %c0_i32 = arith.constant 0 : i32
    %c0_i32_0 = arith.constant 0 : i32
    %c0_i32_1 = arith.constant 0 : i32
    return %c0_i32, %arg0, %c0_i32_0 : i32, i32, i32
  }
  func.func @transform_1(%arg0: i32) -> (i32, i32) {
    %c0_i32 = arith.constant 0 : i32
    %c0_i32_0 = arith.constant 0 : i32
    %c0_i32_1 = arith.constant 0 : i32
    return %c0_i32, %c0_i32_0 : i32, i32
  }
  func.func @transform_2(%arg0: i32) -> i32 {
    %c0_i32 = arith.constant 0 : i32
    %c0_i32_0 = arith.constant 0 : i32
    return %c0_i32 : i32
  }
  func.func @transform_3(%arg0: i32) -> i32 {
    %c0_i32 = arith.constant 0 : i32
    %c0_i32_0 = arith.constant 0 : i32
    return %c0_i32 : i32
  }
  func.func @transform_4(%arg0: i32) -> i32 {
    %c0_i32 = arith.constant 0 : i32
    %c0_i32_0 = arith.constant 0 : i32
    return %c0_i32 : i32
  }
  func.func @transform_5(%arg0: i32) -> i32 {
    %c0_i32 = arith.constant 0 : i32
    %c0_i32_0 = arith.constant 0 : i32
    return %c0_i32 : i32
  }
  func.func @transform_6(%arg0: i32) -> (i32, i32, i32) {
    %c0_i32 = arith.constant 0 : i32
    %c0_i32_0 = arith.constant 0 : i32
    %c0_i32_1 = arith.constant 0 : i32
    return %c0_i32, %arg0, %c0_i32_0 : i32, i32, i32
  }
}

</mosaic_0001>

<llo_original>
// kernel: tpu_custom_call.1
$region0: #{tpu_custom_call.1}
  #allocation0 [shape = 'u32[]', space=smem, size = 0x4, offset = 0x4, fixed_abs, tag = 'smem constant byte address 0x4 - core index']
  #allocation1 [shape = 'u32[144,128]{1,0:T(1,128)}', space=vmem, size = 0x12000, scoped, tag = 'internal scratch']
  %s0 = inlined_call_operand.hbm [shape: bf16[4,2,400], index: 0, kind: input, shape index: {}]
  %s1 = inlined_call_operand.vmem [shape: f32[1,362], index: 1, kind: input, shape index: {}]
  %s2 = inlined_call_operand.vmem [shape: f32[144], index: 2, kind: input, shape index: {}]
  %s3 = inlined_call_operand.vmem [shape: f32[4], index: 3, kind: input, shape index: {}]
  %s4 = inlined_call_operand.vmem [shape: f32[144], index: 4, kind: input, shape index: {}]
  %s5 = inlined_call_operand.vmem [shape: f32[4], index: 5, kind: input, shape index: {}]
  %s6 = inlined_call_operand.hbm [shape: f32[4,2,324], index: 6, kind: output, shape index: {}]
  %s7 = sld [smem:[#allocation0]]
  $region54: #{tpu_custom_call.1} parent=0
    _
  %s9 = ssub.s32 1, %s7
  %s10 = scalar_select 0, %s9, %s7
  $region1: #{tpu_custom_call.1} parent=0
    #allocation2 [shape = 'u8[8192]{0}', space=vmem, size = 0x2000, scoped, tag = 'input window, operand 0, single buffered']
    #allocation3 [shape = 's32[1]{0}', space=sflag, size = 0x4, scoped, tag = 'scoped memory for tpu_custom_call.1']
    #allocation4 [shape = 's32[1]{0}', space=sflag, size = 0x4, scoped, tag = 'scoped memory for tpu_custom_call.1']
    #allocation5 [shape = 's32[1]{0}', space=sflag, size = 0x4, scoped, tag = 'scoped memory for tpu_custom_call.1']
    #allocation6 [shape = 'u8[1024]{0}', space=smem, size = 0x400, scoped, tag = 'input window, operand 2, single buffered']
    #allocation7 [shape = 'u8[512]{0}', space=smem, size = 0x200, scoped, tag = 'input window, operand 3, single buffered']
    #allocation8 [shape = 's32[1]{0}', space=sflag, size = 0x4, scoped, tag = 'scoped memory for tpu_custom_call.1']
    #allocation9 [shape = 'u8[1024]{0}', space=smem, size = 0x400, scoped, tag = 'input window, operand 4, single buffered']
    #allocation10 [shape = 'u8[512]{0}', space=smem, size = 0x200, scoped, tag = 'input window, operand 5, single buffered']
    #allocation11 [shape = 's32[1]{0}', space=sflag, size = 0x4, scoped, tag = 'scoped memory for tpu_custom_call.1']
    #allocation12 [shape = 'u8[12288]{0}', space=vmem, size = 0x3000, scoped, tag = 'output window, operand 0, single buffered']
    %11 = vsyncpa [#allocation3], 0
    %12 = vsyncpa [#allocation5], 0
    %13 = vsyncpa [#allocation8], 0
    %14 = vsyncpa [#allocation11], 0
    %15 = vsyncpa [#allocation4], 0
    // Predicated region
    $region2: #{tpu_custom_call.1} parent=1 // pred_check
      _
    $region3: #{tpu_custom_call.1} parent=1 // pred_check_branch
      %17 = sbr.rel (0) target = $region5
    $region4: #{tpu_custom_call.1} parent=1 // pred_region
      %s19 = ssub.s32 256, 256
      %20 = vsyncadd [#allocation3], %s19
      %s21 = sshll.u32 [#allocation2], 4
      %s22 = int_to_ptr.vmem [resolvable:$true] %s21
      %27 = dma.hbm_to_vmem [thread:$0]  %s0, 256, %s22, [#allocation3], 64, 64, 4
    $region5: #{tpu_custom_call.1} parent=1 // pred_fallthru
      _
    // Predicated region
    $region6: #{tpu_custom_call.1} parent=1 // pred_check
      _
    $region7: #{tpu_custom_call.1} parent=1 // pred_check_branch
      %29 = sbr.rel (0) target = $region9
    $region8: #{tpu_custom_call.1} parent=1 // pred_region
      _
    $region9: #{tpu_custom_call.1} parent=1 // pred_fallthru
      _
    // Predicated region
    $region10: #{tpu_custom_call.1} parent=1 // pred_check
      _
    $region11: #{tpu_custom_call.1} parent=1 // pred_check_branch
      %31 = sbr.rel (0) target = $region13
    $region12: #{tpu_custom_call.1} parent=1 // pred_region
      %s33 = ssub.s32 32, 32
      %34 = vsyncadd [#allocation5], %s33
      %s36 = sshll.u32 %s2, 4
      %s37 = int_to_ptr.vmem [resolvable:$true] %s36
      %39 = dma.vmem_to_smem %s37, 32, [#allocation6], [#allocation5]
    $region13: #{tpu_custom_call.1} parent=1 // pred_fallthru
      _
    // Predicated region
    $region14: #{tpu_custom_call.1} parent=1 // pred_check
      _
    $region15: #{tpu_custom_call.1} parent=1 // pred_check_branch
      %41 = sbr.rel (0) target = $region17
    $region16: #{tpu_custom_call.1} parent=1 // pred_region
      %s43 = ssub.s32 16, 16
      %44 = vsyncadd [#allocation8], %s43
      %s46 = sshll.u32 %s3, 4
      %s47 = int_to_ptr.vmem [resolvable:$true] %s46
      %49 = dma.vmem_to_smem %s47, 16, [#allocation7], [#allocation8]
    $region17: #{tpu_custom_call.1} parent=1 // pred_fallthru
      _
    // Predicated region
    $region18: #{tpu_custom_call.1} parent=1 // pred_check
      _
    $region19: #{tpu_custom_call.1} parent=1 // pred_check_branch
      %51 = sbr.rel (0) target = $region21
    $region20: #{tpu_custom_call.1} parent=1 // pred_region
      %s53 = ssub.s32 32, 32
      %54 = vsyncadd [#allocation8], %s53
      %s56 = sshll.u32 %s4, 4
      %s57 = int_to_ptr.vmem [resolvable:$true] %s56
      %59 = dma.vmem_to_smem %s57, 32, [#allocation9], [#allocation8]
    $region21: #{tpu_custom_call.1} parent=1 // pred_fallthru
      _
    // Predicated region
    $region22: #{tpu_custom_call.1} parent=1 // pred_check
      _
    $region23: #{tpu_custom_call.1} parent=1 // pred_check_branch
      %61 = sbr.rel (0) target = $region25
    $region24: #{tpu_custom_call.1} parent=1 // pred_region
      %s63 = ssub.s32 16, 16
      %64 = vsyncadd [#allocation11], %s63
      %s66 = sshll.u32 %s5, 4
      %s67 = int_to_ptr.vmem [resolvable:$true] %s66
      %69 = dma.vmem_to_smem %s67, 16, [#allocation10], [#allocation11]
    $region25: #{tpu_custom_call.1} parent=1 // pred_fallthru
      _
    // Predicated region
    $region26: #{tpu_custom_call.1} parent=1 // pred_check
      _
    $region27: #{tpu_custom_call.1} parent=1 // pred_check_branch
      %71 = sbr.rel (0) target = $region29
    $region28: #{tpu_custom_call.1} parent=1 // pred_region
      %72 = dma.done [#allocation3], 256
    $region29: #{tpu_custom_call.1} parent=1 // pred_fallthru
      _
    // Predicated region
    $region30: #{tpu_custom_call.1} parent=1 // pred_check
      _
    $region31: #{tpu_custom_call.1} parent=1 // pred_check_branch
      %74 = sbr.rel (0) target = $region33
    $region32: #{tpu_custom_call.1} parent=1 // pred_region
      %75 = dma.done [#allocation5], 32
    $region33: #{tpu_custom_call.1} parent=1 // pred_fallthru
      _
    // Predicated region
    $region34: #{tpu_custom_call.1} parent=1 // pred_check
      _
    $region35: #{tpu_custom_call.1} parent=1 // pred_check_branch
      %77 = sbr.rel (0) target = $region37
    $region36: #{tpu_custom_call.1} parent=1 // pred_region
      %78 = dma.done [#allocation8], 16
    $region37: #{tpu_custom_call.1} parent=1 // pred_fallthru
      _
    // Predicated region
    $region38: #{tpu_custom_call.1} parent=1 // pred_check
      _
    $region39: #{tpu_custom_call.1} parent=1 // pred_check_branch
      %80 = sbr.rel (0) target = $region41
    $region40: #{tpu_custom_call.1} parent=1 // pred_region
      %81 = dma.done [#allocation8], 32
    $region41: #{tpu_custom_call.1} parent=1 // pred_fallthru
      _
    // Predicated region
    $region42: #{tpu_custom_call.1} parent=1 // pred_check
      _
    $region43: #{tpu_custom_call.1} parent=1 // pred_check_branch
      %83 = sbr.rel (0) target = $region45
    $region44: #{tpu_custom_call.1} parent=1 // pred_region
      %84 = dma.done [#allocation11], 16
    $region45: #{tpu_custom_call.1} parent=1 // pred_fallthru
      _
    %85 = sfence
    %v86 = vld [vmem:[#allocation2] sm:$0xf]
    %v87 = vld [vmem:[#allocation2 + $0x4] sm:$0xf]
    %v88 = vld [vmem:[#allocation2 + $0x8] sm:$0xf]
    %v89 = vld [vmem:[#allocation2 + $0xc] sm:$0xf]
    %v90 = vld [vmem:[%s1] sm:$0x7]
    %v91 = vunpack.c.l.bf16 %v86
    %s92 = sld [smem:[#allocation6]]
    %v93 = vstv %s92
    %v94 = vmul.f32 %v91, %v93
    %v95 = vadd.f32 %v94, 0.0
    %s96 = sld [smem:[#allocation6 + $0x1]]
    %v97 = vstv %s96
    %v98 = vmul.f32 %v91, %v97
    %v99 = vadd.f32 %v98, 0.0
    %s100 = sld [smem:[#allocation6 + $0x2]]
    %v101 = vstv %s100
    %v102 = vmul.f32 %v91, %v101
    %v103 = vadd.f32 %v102, 0.0
    %s104 = sld [smem:[#allocation6 + $0x3]]
    %v105 = vstv %s104
    %v106 = vmul.f32 %v91, %v105
    %v107 = vadd.f32 %v106, 0.0
    %v108 = vunpack.c.l.bf16 %v87
    %s109 = sld [smem:[#allocation6 + $0x4]]
    %v110 = vstv %s109
    %v111 = vmul.f32 %v108, %v110
    %v112 = vadd.f32 %v95, %v111
    %s113 = sld [smem:[#allocation6 + $0x5]]
    %v114 = vstv %s113
    %v115 = vmul.f32 %v108, %v114
    %v116 = vadd.f32 %v99, %v115
    %s117 = sld [smem:[#allocation6 + $0x6]]
    %v118 = vstv %s117
    %v119 = vmul.f32 %v108, %v118
    %v120 = vadd.f32 %v103, %v119
    %s121 = sld [smem:[#allocation6 + $0x7]]
    %v122 = vstv %s121
    %v123 = vmul.f32 %v108, %v122
    %v124 = vadd.f32 %v107, %v123
    %v125 = vunpack.c.l.bf16 %v88
    %s126 = sld [smem:[#allocation6 + $0x8]]
    %v127 = vstv %s126
    %v128 = vmul.f32 %v125, %v127
    %v129 = vadd.f32 %v112, %v128
    %s130 = sld [smem:[#allocation6 + $0x9]]
    %v131 = vstv %s130
    %v132 = vmul.f32 %v125, %v131
    %v133 = vadd.f32 %v116, %v132
    %s134 = sld [smem:[#allocation6 + $0xa]]
    %v135 = vstv %s134
    %v136 = vmul.f32 %v125, %v135
    %v137 = vadd.f32 %v120, %v136
    %s138 = sld [smem:[#allocation6 + $0xb]]
    %v139 = vstv %s138
    %v140 = vmul.f32 %v125, %v139
    %v141 = vadd.f32 %v124, %v140
    %v142 = vunpack.c.l.bf16 %v89
    %s143 = sld [smem:[#allocation6 + $0xc]]
    %v144 = vstv %s143
    %v145 = vmul.f32 %v142, %v144
    %v146 = vadd.f32 %v129, %v145
    %s147 = sld [smem:[#allocation6 + $0xd]]
    %v148 = vstv %s147
    %v149 = vmul.f32 %v142, %v148
    %v150 = vadd.f32 %v133, %v149
    %s151 = sld [smem:[#allocation6 + $0xe]]
    %v152 = vstv %s151
    %v153 = vmul.f32 %v142, %v152
    %v154 = vadd.f32 %v137, %v153
    %s155 = sld [smem:[#allocation6 + $0xf]]
    %v156 = vstv %s155
    %v157 = vmul.f32 %v142, %v156
    %v158 = vadd.f32 %v141, %v157
    %s159 = sld [smem:[#allocation6 + $0x10]]
    %v160 = vstv %s159
    %v161 = vmul.f32 %v91, %v160
    %163 = vrot.lane.b32.xlu0 %v161, 127
    %v164 = vpop.permute.xlu0 %163
    %v165 = vrot.slane %v164, 2
    %vm166 = vcmask 1039360
    %v167 = vsel %vm166, %v164, %v165
    %v169 = vadd.f32 %v146, %v167
    %s170 = sld [smem:[#allocation6 + $0x11]]
    %v171 = vstv %s170
    %v172 = vmul.f32 %v91, %v171
    %174 = vrot.lane.b32.xlu0 %v172, 127
    %v175 = vpop.permute.xlu0 %174
    %v176 = vrot.slane %v175, 2
    %v177 = vsel %vm166, %v175, %v176
    %v179 = vadd.f32 %v150, %v177
    %s180 = sld [smem:[#allocation6 + $0x12]]
    %v181 = vstv %s180
    %v182 = vmul.f32 %v91, %v181
    %184 = vrot.lane.b32.xlu0 %v182, 127
    %v185 = vpop.permute.xlu0 %184
    %v186 = vrot.slane %v185, 2
    %v187 = vsel %vm166, %v185, %v186
    %v189 = vadd.f32 %v154, %v187
    %s190 = sld [smem:[#allocation6 + $0x13]]
    %v191 = vstv %s190
    %v192 = vmul.f32 %v91, %v191
    %194 = vrot.lane.b32.xlu0 %v192, 127
    %v195 = vpop.permute.xlu0 %194
    %v196 = vrot.slane %v195, 2
    %v197 = vsel %vm166, %v195, %v196
    %v199 = vadd.f32 %v158, %v197
    %s200 = sld [smem:[#allocation6 + $0x14]]
    %v201 = vstv %s200
    %v202 = vmul.f32 %v108, %v201
    %204 = vrot.lane.b32.xlu0 %v202, 127
    %v205 = vpop.permute.xlu0 %204
    %v206 = vrot.slane %v205, 2
    %v207 = vsel %vm166, %v205, %v206
    %v209 = vadd.f32 %v169, %v207
    %s210 = sld [smem:[#allocation6 + $0x15]]
    %v211 = vstv %s210
    %v212 = vmul.f32 %v108, %v211
    %214 = vrot.lane.b32.xlu0 %v212, 127
    %v215 = vpop.permute.xlu0 %214
    %v216 = vrot.slane %v215, 2
    %v217 = vsel %vm166, %v215, %v216
    %v219 = vadd.f32 %v179, %v217
    %s220 = sld [smem:[#allocation6 + $0x16]]
    %v221 = vstv %s220
    %v222 = vmul.f32 %v108, %v221
    %224 = vrot.lane.b32.xlu0 %v222, 127
    %v225 = vpop.permute.xlu0 %224
    %v226 = vrot.slane %v225, 2
    %v227 = vsel %vm166, %v225, %v226
    %v229 = vadd.f32 %v189, %v227
    %s230 = sld [smem:[#allocation6 + $0x17]]
    %v231 = vstv %s230
    %v232 = vmul.f32 %v108, %v231
    %234 = vrot.lane.b32.xlu0 %v232, 127
    %v235 = vpop.permute.xlu0 %234
    %v236 = vrot.slane %v235, 2
    %v237 = vsel %vm166, %v235, %v236
    %v239 = vadd.f32 %v199, %v237
    %s240 = sld [smem:[#allocation6 + $0x18]]
    %v241 = vstv %s240
    %v242 = vmul.f32 %v125, %v241
    %244 = vrot.lane.b32.xlu0 %v242, 127
    %v245 = vpop.permute.xlu0 %244
    %v246 = vrot.slane %v245, 2
    %v247 = vsel %vm166, %v245, %v246
    %v249 = vadd.f32 %v209, %v247
    %s250 = sld [smem:[#allocation6 + $0x19]]
    %v251 = vstv %s250
    %v252 = vmul.f32 %v125, %v251
    %254 = vrot.lane.b32.xlu0 %v252, 127
    %v255 = vpop.permute.xlu0 %254
    %v256 = vrot.slane %v255, 2
    %v257 = vsel %vm166, %v255, %v256
    %v259 = vadd.f32 %v219, %v257
    %s260 = sld [smem:[#allocation6 + $0x1a]]
    %v261 = vstv %s260
    %v262 = vmul.f32 %v125, %v261
    %264 = vrot.lane.b32.xlu0 %v262, 127
    %v265 = vpop.permute.xlu0 %264
    %v266 = vrot.slane %v265, 2
    %v267 = vsel %vm166, %v265, %v266
    %v269 = vadd.f32 %v229, %v267
    %s270 = sld [smem:[#allocation6 + $0x1b]]
    %v271 = vstv %s270
    %v272 = vmul.f32 %v125, %v271
    %274 = vrot.lane.b32.xlu0 %v272, 127
    %v275 = vpop.permute.xlu0 %274
    %v276 = vrot.slane %v275, 2
    %v277 = vsel %vm166, %v275, %v276
    %v279 = vadd.f32 %v239, %v277
    %s280 = sld [smem:[#allocation6 + $0x1c]]
    %v281 = vstv %s280
    %v282 = vmul.f32 %v142, %v281
    %284 = vrot.lane.b32.xlu0 %v282, 127
    %v285 = vpop.permute.xlu0 %284
    %v286 = vrot.slane %v285, 2
    %v287 = vsel %vm166, %v285, %v286
    %v289 = vadd.f32 %v249, %v287
    %s290 = sld [smem:[#allocation6 + $0x1d]]
    %v291 = vstv %s290
    %v292 = vmul.f32 %v142, %v291
    %294 = vrot.lane.b32.xlu0 %v292, 127
    %v295 = vpop.permute.xlu0 %294
    %v296 = vrot.slane %v295, 2
    %v297 = vsel %vm166, %v295, %v296
    %v299 = vadd.f32 %v259, %v297
    %s300 = sld [smem:[#allocation6 + $0x1e]]
    %v301 = vstv %s300
    %v302 = vmul.f32 %v142, %v301
    %304 = vrot.lane.b32.xlu0 %v302, 127
    %v305 = vpop.permute.xlu0 %304
    %v306 = vrot.slane %v305, 2
    %v307 = vsel %vm166, %v305, %v306
    %v309 = vadd.f32 %v269, %v307
    %s310 = sld [smem:[#allocation6 + $0x1f]]
    %v311 = vstv %s310
    %v312 = vmul.f32 %v142, %v311
    %314 = vrot.lane.b32.xlu0 %v312, 127
    %v315 = vpop.permute.xlu0 %314
    %v316 = vrot.slane %v315, 2
    %v317 = vsel %vm166, %v315, %v316
    %v319 = vadd.f32 %v279, %v317
    %s320 = sld [smem:[#allocation6 + $0x20]]
    %v321 = vstv %s320
    %v322 = vmul.f32 %v91, %v321
    %324 = vrot.lane.b32.xlu0 %v322, 126
    %v325 = vpop.permute.xlu0 %324
    %v326 = vrot.slane %v325, 2
    %vm327 = vcmask 1031168
    %v328 = vsel %vm327, %v325, %v326
    %v330 = vadd.f32 %v289, %v328
    %s331 = sld [smem:[#allocation6 + $0x21]]
    %v332 = vstv %s331
    %v333 = vmul.f32 %v91, %v332
    %335 = vrot.lane.b32.xlu0 %v333, 126
    %v336 = vpop.permute.xlu0 %335
    %v337 = vrot.slane %v336, 2
    %v338 = vsel %vm327, %v336, %v337
    %v340 = vadd.f32 %v299, %v338
    %s341 = sld [smem:[#allocation6 + $0x22]]
    %v342 = vstv %s341
    %v343 = vmul.f32 %v91, %v342
    %345 = vrot.lane.b32.xlu0 %v343, 126
    %v346 = vpop.permute.xlu0 %345
    %v347 = vrot.slane %v346, 2
    %v348 = vsel %vm327, %v346, %v347
    %v350 = vadd.f32 %v309, %v348
    %s351 = sld [smem:[#allocation6 + $0x23]]
    %v352 = vstv %s351
    %v353 = vmul.f32 %v91, %v352
    %355 = vrot.lane.b32.xlu0 %v353, 126
    %v356 = vpop.permute.xlu0 %355
    %v357 = vrot.slane %v356, 2
    %v358 = vsel %vm327, %v356, %v357
    %v360 = vadd.f32 %v319, %v358
    %s361 = sld [smem:[#allocation6 + $0x24]]
    %v362 = vstv %s361
    %v363 = vmul.f32 %v108, %v362
    %365 = vrot.lane.b32.xlu0 %v363, 126
    %v366 = vpop.permute.xlu0 %365
    %v367 = vrot.slane %v366, 2
    %v368 = vsel %vm327, %v366, %v367
    %v370 = vadd.f32 %v330, %v368
    %s371 = sld [smem:[#allocation6 + $0x25]]
    %v372 = vstv %s371
    %v373 = vmul.f32 %v108, %v372
    %375 = vrot.lane.b32.xlu0 %v373, 126
    %v376 = vpop.permute.xlu0 %375
    %v377 = vrot.slane %v376, 2
    %v378 = vsel %vm327, %v376, %v377
    %v380 = vadd.f32 %v340, %v378
    %s381 = sld [smem:[#allocation6 + $0x26]]
    %v382 = vstv %s381
    %v383 = vmul.f32 %v108, %v382
    %385 = vrot.lane.b32.xlu0 %v383, 126
    %v386 = vpop.permute.xlu0 %385
    %v387 = vrot.slane %v386, 2
    %v388 = vsel %vm327, %v386, %v387
    %v390 = vadd.f32 %v350, %v388
    %s391 = sld [smem:[#allocation6 + $0x27]]
    %v392 = vstv %s391
    %v393 = vmul.f32 %v108, %v392
    %395 = vrot.lane.b32.xlu0 %v393, 126
    %v396 = vpop.permute.xlu0 %395
    %v397 = vrot.slane %v396, 2
    %v398 = vsel %vm327, %v396, %v397
    %v400 = vadd.f32 %v360, %v398
    %s401 = sld [smem:[#allocation6 + $0x28]]
    %v402 = vstv %s401
    %v403 = vmul.f32 %v125, %v402
    %405 = vrot.lane.b32.xlu0 %v403, 126
    %v406 = vpop.permute.xlu0 %405
    %v407 = vrot.slane %v406, 2
    %v408 = vsel %vm327, %v406, %v407
    %v410 = vadd.f32 %v370, %v408
    %s411 = sld [smem:[#allocation6 + $0x29]]
    %v412 = vstv %s411
    %v413 = vmul.f32 %v125, %v412
    %415 = vrot.lane.b32.xlu0 %v413, 126
    %v416 = vpop.permute.xlu0 %415
    %v417 = vrot.slane %v416, 2
    %v418 = vsel %vm327, %v416, %v417
    %v420 = vadd.f32 %v380, %v418
    %s421 = sld [smem:[#allocation6 + $0x2a]]
    %v422 = vstv %s421
    %v423 = vmul.f32 %v125, %v422
    %425 = vrot.lane.b32.xlu0 %v423, 126
    %v426 = vpop.permute.xlu0 %425
    %v427 = vrot.slane %v426, 2
    %v428 = vsel %vm327, %v426, %v427
    %v430 = vadd.f32 %v390, %v428
    %s431 = sld [smem:[#allocation6 + $0x2b]]
    %v432 = vstv %s431
    %v433 = vmul.f32 %v125, %v432
    %435 = vrot.lane.b32.xlu0 %v433, 126
    %v436 = vpop.permute.xlu0 %435
    %v437 = vrot.slane %v436, 2
    %v438 = vsel %vm327, %v436, %v437
    %v440 = vadd.f32 %v400, %v438
    %s441 = sld [smem:[#allocation6 + $0x2c]]
    %v442 = vstv %s441
    %v443 = vmul.f32 %v142, %v442
    %445 = vrot.lane.b32.xlu0 %v443, 126
    %v446 = vpop.permute.xlu0 %445
    %v447 = vrot.slane %v446, 2
    %v448 = vsel %vm327, %v446, %v447
    %v450 = vadd.f32 %v410, %v448
    %s451 = sld [smem:[#allocation6 + $0x2d]]
    %v452 = vstv %s451
    %v453 = vmul.f32 %v142, %v452
    %455 = vrot.lane.b32.xlu0 %v453, 126
    %v456 = vpop.permute.xlu0 %455
    %v457 = vrot.slane %v456, 2
    %v458 = vsel %vm327, %v456, %v457
    %v460 = vadd.f32 %v420, %v458
    %s461 = sld [smem:[#allocation6 + $0x2e]]
    %v462 = vstv %s461
    %v463 = vmul.f32 %v142, %v462
    %465 = vrot.lane.b32.xlu0 %v463, 126
    %v466 = vpop.permute.xlu0 %465
    %v467 = vrot.slane %v466, 2
    %v468 = vsel %vm327, %v466, %v467
    %v470 = vadd.f32 %v430, %v468
    %s471 = sld [smem:[#allocation6 + $0x2f]]
    %v472 = vstv %s471
    %v473 = vmul.f32 %v142, %v472
    %475 = vrot.lane.b32.xlu0 %v473, 126
    %v476 = vpop.permute.xlu0 %475
    %v477 = vrot.slane %v476, 2
    %v478 = vsel %vm327, %v476, %v477
    %v480 = vadd.f32 %v440, %v478
    %s481 = sld [smem:[#allocation6 + $0x30]]
    %v482 = vstv %s481
    %v483 = vmul.f32 %v91, %v482
    %485 = vrot.lane.b32.xlu0 %v483, 110
    %v486 = vpop.permute.xlu0 %485
    %v487 = vrot.slane %v486, 2
    %vm488 = vcmask 900096
    %v489 = vsel %vm488, %v486, %v487
    %v491 = vadd.f32 %v450, %v489
    %s492 = sld [smem:[#allocation6 + $0x31]]
    %v493 = vstv %s492
    %v494 = vmul.f32 %v91, %v493
    %496 = vrot.lane.b32.xlu0 %v494, 110
    %v497 = vpop.permute.xlu0 %496
    %v498 = vrot.slane %v497, 2
    %v499 = vsel %vm488, %v497, %v498
    %v501 = vadd.f32 %v460, %v499
    %s502 = sld [smem:[#allocation6 + $0x32]]
    %v503 = vstv %s502
    %v504 = vmul.f32 %v91, %v503
    %506 = vrot.lane.b32.xlu0 %v504, 110
    %v507 = vpop.permute.xlu0 %506
    %v508 = vrot.slane %v507, 2
    %v509 = vsel %vm488, %v507, %v508
    %v511 = vadd.f32 %v470, %v509
    %s512 = sld [smem:[#allocation6 + $0x33]]
    %v513 = vstv %s512
    %v514 = vmul.f32 %v91, %v513
    %516 = vrot.lane.b32.xlu0 %v514, 110
    %v517 = vpop.permute.xlu0 %516
    %v518 = vrot.slane %v517, 2
    %v519 = vsel %vm488, %v517, %v518
    %v521 = vadd.f32 %v480, %v519
    %s522 = sld [smem:[#allocation6 + $0x34]]
    %v523 = vstv %s522
    %v524 = vmul.f32 %v108, %v523
    %526 = vrot.lane.b32.xlu0 %v524, 110
    %v527 = vpop.permute.xlu0 %526
    %v528 = vrot.slane %v527, 2
    %v529 = vsel %vm488, %v527, %v528
    %v531 = vadd.f32 %v491, %v529
    %s532 = sld [smem:[#allocation6 + $0x35]]
    %v533 = vstv %s532
    %v534 = vmul.f32 %v108, %v533
    %536 = vrot.lane.b32.xlu0 %v534, 110
    %v537 = vpop.permute.xlu0 %536
    %v538 = vrot.slane %v537, 2
    %v539 = vsel %vm488, %v537, %v538
    %v541 = vadd.f32 %v501, %v539
    %s542 = sld [smem:[#allocation6 + $0x36]]
    %v543 = vstv %s542
    %v544 = vmul.f32 %v108, %v543
    %546 = vrot.lane.b32.xlu0 %v544, 110
    %v547 = vpop.permute.xlu0 %546
    %v548 = vrot.slane %v547, 2
    %v549 = vsel %vm488, %v547, %v548
    %v551 = vadd.f32 %v511, %v549
    %s552 = sld [smem:[#allocation6 + $0x37]]
    %v553 = vstv %s552
    %v554 = vmul.f32 %v108, %v553
    %556 = vrot.lane.b32.xlu0 %v554, 110
    %v557 = vpop.permute.xlu0 %556
    %v558 = vrot.slane %v557, 2
    %v559 = vsel %vm488, %v557, %v558
    %v561 = vadd.f32 %v521, %v559
    %s562 = sld [smem:[#allocation6 + $0x38]]
    %v563 = vstv %s562
    %v564 = vmul.f32 %v125, %v563
    %566 = vrot.lane.b32.xlu0 %v564, 110
    %v567 = vpop.permute.xlu0 %566
    %v568 = vrot.slane %v567, 2
    %v569 = vsel %vm488, %v567, %v568
    %v571 = vadd.f32 %v531, %v569
    %s572 = sld [smem:[#allocation6 + $0x39]]
    %v573 = vstv %s572
    %v574 = vmul.f32 %v125, %v573
    %576 = vrot.lane.b32.xlu0 %v574, 110
    %v577 = vpop.permute.xlu0 %576
    %v578 = vrot.slane %v577, 2
    %v579 = vsel %vm488, %v577, %v578
    %v581 = vadd.f32 %v541, %v579
    %s582 = sld [smem:[#allocation6 + $0x3a]]
    %v583 = vstv %s582
    %v584 = vmul.f32 %v125, %v583
    %586 = vrot.lane.b32.xlu0 %v584, 110
    %v587 = vpop.permute.xlu0 %586
    %v588 = vrot.slane %v587, 2
    %v589 = vsel %vm488, %v587, %v588
    %v591 = vadd.f32 %v551, %v589
    %s592 = sld [smem:[#allocation6 + $0x3b]]
    %v593 = vstv %s592
    %v594 = vmul.f32 %v125, %v593
    %596 = vrot.lane.b32.xlu0 %v594, 110
    %v597 = vpop.permute.xlu0 %596
    %v598 = vrot.slane %v597, 2
    %v599 = vsel %vm488, %v597, %v598
    %v601 = vadd.f32 %v561, %v599
    %s602 = sld [smem:[#allocation6 + $0x3c]]
    %v603 = vstv %s602
    %v604 = vmul.f32 %v142, %v603
    %606 = vrot.lane.b32.xlu0 %v604, 110
    %v607 = vpop.permute.xlu0 %606
    %v608 = vrot.slane %v607, 2
    %v609 = vsel %vm488, %v607, %v608
    %v611 = vadd.f32 %v571, %v609
    %s612 = sld [smem:[#allocation6 + $0x3d]]
    %v613 = vstv %s612
    %v614 = vmul.f32 %v142, %v613
    %616 = vrot.lane.b32.xlu0 %v614, 110
    %v617 = vpop.permute.xlu0 %616
    %v618 = vrot.slane %v617, 2
    %v619 = vsel %vm488, %v617, %v618
    %v621 = vadd.f32 %v581, %v619
    %s622 = sld [smem:[#allocation6 + $0x3e]]
    %v623 = vstv %s622
    %v624 = vmul.f32 %v142, %v623
    %626 = vrot.lane.b32.xlu0 %v624, 110
    %v627 = vpop.permute.xlu0 %626
    %v628 = vrot.slane %v627, 2
    %v629 = vsel %vm488, %v627, %v628
    %v631 = vadd.f32 %v591, %v629
    %s632 = sld [smem:[#allocation6 + $0x3f]]
    %v633 = vstv %s632
    %v634 = vmul.f32 %v142, %v633
    %636 = vrot.lane.b32.xlu0 %v634, 110
    %v637 = vpop.permute.xlu0 %636
    %v638 = vrot.slane %v637, 2
    %v639 = vsel %vm488, %v637, %v638
    %v641 = vadd.f32 %v601, %v639
    %s642 = sld [smem:[#allocation6 + $0x40]]
    %v643 = vstv %s642
    %v644 = vmul.f32 %v91, %v643
    %646 = vrot.lane.b32.xlu0 %v644, 109
    %v647 = vpop.permute.xlu0 %646
    %v648 = vrot.slane %v647, 2
    %vm649 = vcmask 891904
    %v650 = vsel %vm649, %v647, %v648
    %v652 = vadd.f32 %v611, %v650
    %s653 = sld [smem:[#allocation6 + $0x41]]
    %v654 = vstv %s653
    %v655 = vmul.f32 %v91, %v654
    %657 = vrot.lane.b32.xlu0 %v655, 109
    %v658 = vpop.permute.xlu0 %657
    %v659 = vrot.slane %v658, 2
    %v660 = vsel %vm649, %v658, %v659
    %v662 = vadd.f32 %v621, %v660
    %s663 = sld [smem:[#allocation6 + $0x42]]
    %v664 = vstv %s663
    %v665 = vmul.f32 %v91, %v664
    %667 = vrot.lane.b32.xlu0 %v665, 109
    %v668 = vpop.permute.xlu0 %667
    %v669 = vrot.slane %v668, 2
    %v670 = vsel %vm649, %v668, %v669
    %v672 = vadd.f32 %v631, %v670
    %s673 = sld [smem:[#allocation6 + $0x43]]
    %v674 = vstv %s673
    %v675 = vmul.f32 %v91, %v674
    %677 = vrot.lane.b32.xlu0 %v675, 109
    %v678 = vpop.permute.xlu0 %677
    %v679 = vrot.slane %v678, 2
    %v680 = vsel %vm649, %v678, %v679
    %v682 = vadd.f32 %v641, %v680
    %s683 = sld [smem:[#allocation6 + $0x44]]
    %v684 = vstv %s683
    %v685 = vmul.f32 %v108, %v684
    %687 = vrot.lane.b32.xlu0 %v685, 109
    %v688 = vpop.permute.xlu0 %687
    %v689 = vrot.slane %v688, 2
    %v690 = vsel %vm649, %v688, %v689
    %v692 = vadd.f32 %v652, %v690
    %s693 = sld [smem:[#allocation6 + $0x45]]
    %v694 = vstv %s693
    %v695 = vmul.f32 %v108, %v694
    %697 = vrot.lane.b32.xlu0 %v695, 109
    %v698 = vpop.permute.xlu0 %697
    %v699 = vrot.slane %v698, 2
    %v700 = vsel %vm649, %v698, %v699
    %v702 = vadd.f32 %v662, %v700
    %s703 = sld [smem:[#allocation6 + $0x46]]
    %v704 = vstv %s703
    %v705 = vmul.f32 %v108, %v704
    %707 = vrot.lane.b32.xlu0 %v705, 109
    %v708 = vpop.permute.xlu0 %707
    %v709 = vrot.slane %v708, 2
    %v710 = vsel %vm649, %v708, %v709
    %v712 = vadd.f32 %v672, %v710
    %s713 = sld [smem:[#allocation6 + $0x47]]
    %v714 = vstv %s713
    %v715 = vmul.f32 %v108, %v714
    %717 = vrot.lane.b32.xlu0 %v715, 109
    %v718 = vpop.permute.xlu0 %717
    %v719 = vrot.slane %v718, 2
    %v720 = vsel %vm649, %v718, %v719
    %v722 = vadd.f32 %v682, %v720
    %s723 = sld [smem:[#allocation6 + $0x48]]
    %v724 = vstv %s723
    %v725 = vmul.f32 %v125, %v724
    %727 = vrot.lane.b32.xlu0 %v725, 109
    %v728 = vpop.permute.xlu0 %727
    %v729 = vrot.slane %v728, 2
    %v730 = vsel %vm649, %v728, %v729
    %v732 = vadd.f32 %v692, %v730
    %s733 = sld [smem:[#allocation6 + $0x49]]
    %v734 = vstv %s733
    %v735 = vmul.f32 %v125, %v734
    %737 = vrot.lane.b32.xlu0 %v735, 109
    %v738 = vpop.permute.xlu0 %737
    %v739 = vrot.slane %v738, 2
    %v740 = vsel %vm649, %v738, %v739
    %v742 = vadd.f32 %v702, %v740
    %s743 = sld [smem:[#allocation6 + $0x4a]]
    %v744 = vstv %s743
    %v745 = vmul.f32 %v125, %v744
    %747 = vrot.lane.b32.xlu0 %v745, 109
    %v748 = vpop.permute.xlu0 %747
    %v749 = vrot.slane %v748, 2
    %v750 = vsel %vm649, %v748, %v749
    %v752 = vadd.f32 %v712, %v750
    %s753 = sld [smem:[#allocation6 + $0x4b]]
    %v754 = vstv %s753
    %v755 = vmul.f32 %v125, %v754
    %757 = vrot.lane.b32.xlu0 %v755, 109
    %v758 = vpop.permute.xlu0 %757
    %v759 = vrot.slane %v758, 2
    %v760 = vsel %vm649, %v758, %v759
    %v762 = vadd.f32 %v722, %v760
    %s763 = sld [smem:[#allocation6 + $0x4c]]
    %v764 = vstv %s763
    %v765 = vmul.f32 %v142, %v764
    %767 = vrot.lane.b32.xlu0 %v765, 109
    %v768 = vpop.permute.xlu0 %767
    %v769 = vrot.slane %v768, 2
    %v770 = vsel %vm649, %v768, %v769
    %v772 = vadd.f32 %v732, %v770
    %s773 = sld [smem:[#allocation6 + $0x4d]]
    %v774 = vstv %s773
    %v775 = vmul.f32 %v142, %v774
    %777 = vrot.lane.b32.xlu0 %v775, 109
    %v778 = vpop.permute.xlu0 %777
    %v779 = vrot.slane %v778, 2
    %v780 = vsel %vm649, %v778, %v779
    %v782 = vadd.f32 %v742, %v780
    %s783 = sld [smem:[#allocation6 + $0x4e]]
    %v784 = vstv %s783
    %v785 = vmul.f32 %v142, %v784
    %787 = vrot.lane.b32.xlu0 %v785, 109
    %v788 = vpop.permute.xlu0 %787
    %v789 = vrot.slane %v788, 2
    %v790 = vsel %vm649, %v788, %v789
    %v792 = vadd.f32 %v752, %v790
    %s793 = sld [smem:[#allocation6 + $0x4f]]
    %v794 = vstv %s793
    %v795 = vmul.f32 %v142, %v794
    %797 = vrot.lane.b32.xlu0 %v795, 109
    %v798 = vpop.permute.xlu0 %797
    %v799 = vrot.slane %v798, 2
    %v800 = vsel %vm649, %v798, %v799
    %v802 = vadd.f32 %v762, %v800
    %s803 = sld [smem:[#allocation6 + $0x50]]
    %v804 = vstv %s803
    %v805 = vmul.f32 %v91, %v804
    %807 = vrot.lane.b32.xlu0 %v805, 108
    %v808 = vpop.permute.xlu0 %807
    %v809 = vrot.slane %v808, 2
    %vm810 = vcmask 883712
    %v811 = vsel %vm810, %v808, %v809
    %v813 = vadd.f32 %v772, %v811
    %s814 = sld [smem:[#allocation6 + $0x51]]
    %v815 = vstv %s814
    %v816 = vmul.f32 %v91, %v815
    %818 = vrot.lane.b32.xlu0 %v816, 108
    %v819 = vpop.permute.xlu0 %818
    %v820 = vrot.slane %v819, 2
    %v821 = vsel %vm810, %v819, %v820
    %v823 = vadd.f32 %v782, %v821
    %s824 = sld [smem:[#allocation6 + $0x52]]
    %v825 = vstv %s824
    %v826 = vmul.f32 %v91, %v825
    %828 = vrot.lane.b32.xlu0 %v826, 108
    %v829 = vpop.permute.xlu0 %828
    %v830 = vrot.slane %v829, 2
    %v831 = vsel %vm810, %v829, %v830
    %v833 = vadd.f32 %v792, %v831
    %s834 = sld [smem:[#allocation6 + $0x53]]
    %v835 = vstv %s834
    %v836 = vmul.f32 %v91, %v835
    %838 = vrot.lane.b32.xlu0 %v836, 108
    %v839 = vpop.permute.xlu0 %838
    %v840 = vrot.slane %v839, 2
    %v841 = vsel %vm810, %v839, %v840
    %v843 = vadd.f32 %v802, %v841
    %s844 = sld [smem:[#allocation6 + $0x54]]
    %v845 = vstv %s844
    %v846 = vmul.f32 %v108, %v845
    %848 = vrot.lane.b32.xlu0 %v846, 108
    %v849 = vpop.permute.xlu0 %848
    %v850 = vrot.slane %v849, 2
    %v851 = vsel %vm810, %v849, %v850
    %v853 = vadd.f32 %v813, %v851
    %s854 = sld [smem:[#allocation6 + $0x55]]
    %v855 = vstv %s854
    %v856 = vmul.f32 %v108, %v855
    %858 = vrot.lane.b32.xlu0 %v856, 108
    %v859 = vpop.permute.xlu0 %858
    %v860 = vrot.slane %v859, 2
    %v861 = vsel %vm810, %v859, %v860
    %v863 = vadd.f32 %v823, %v861
    %s864 = sld [smem:[#allocation6 + $0x56]]
    %v865 = vstv %s864
    %v866 = vmul.f32 %v108, %v865
    %868 = vrot.lane.b32.xlu0 %v866, 108
    %v869 = vpop.permute.xlu0 %868
    %v870 = vrot.slane %v869, 2
    %v871 = vsel %vm810, %v869, %v870
    %v873 = vadd.f32 %v833, %v871
    %s874 = sld [smem:[#allocation6 + $0x57]]
    %v875 = vstv %s874
    %v876 = vmul.f32 %v108, %v875
    %878 = vrot.lane.b32.xlu0 %v876, 108
    %v879 = vpop.permute.xlu0 %878
    %v880 = vrot.slane %v879, 2
    %v881 = vsel %vm810, %v879, %v880
    %v883 = vadd.f32 %v843, %v881
    %s884 = sld [smem:[#allocation6 + $0x58]]
    %v885 = vstv %s884
    %v886 = vmul.f32 %v125, %v885
    %888 = vrot.lane.b32.xlu0 %v886, 108
    %v889 = vpop.permute.xlu0 %888
    %v890 = vrot.slane %v889, 2
    %v891 = vsel %vm810, %v889, %v890
    %v893 = vadd.f32 %v853, %v891
    %s894 = sld [smem:[#allocation6 + $0x59]]
    %v895 = vstv %s894
    %v896 = vmul.f32 %v125, %v895
    %898 = vrot.lane.b32.xlu0 %v896, 108
    %v899 = vpop.permute.xlu0 %898
    %v900 = vrot.slane %v899, 2
    %v901 = vsel %vm810, %v899, %v900
    %v903 = vadd.f32 %v863, %v901
    %s904 = sld [smem:[#allocation6 + $0x5a]]
    %v905 = vstv %s904
    %v906 = vmul.f32 %v125, %v905
    %908 = vrot.lane.b32.xlu0 %v906, 108
    %v909 = vpop.permute.xlu0 %908
    %v910 = vrot.slane %v909, 2
    %v911 = vsel %vm810, %v909, %v910
    %v913 = vadd.f32 %v873, %v911
    %s914 = sld [smem:[#allocation6 + $0x5b]]
    %v915 = vstv %s914
    %v916 = vmul.f32 %v125, %v915
    %918 = vrot.lane.b32.xlu0 %v916, 108
    %v919 = vpop.permute.xlu0 %918
    %v920 = vrot.slane %v919, 2
    %v921 = vsel %vm810, %v919, %v920
    %v923 = vadd.f32 %v883, %v921
    %s924 = sld [smem:[#allocation6 + $0x5c]]
    %v925 = vstv %s924
    %v926 = vmul.f32 %v142, %v925
    %928 = vrot.lane.b32.xlu0 %v926, 108
    %v929 = vpop.permute.xlu0 %928
    %v930 = vrot.slane %v929, 2
    %v931 = vsel %vm810, %v929, %v930
    %v933 = vadd.f32 %v893, %v931
    %s934 = sld [smem:[#allocation6 + $0x5d]]
    %v935 = vstv %s934
    %v936 = vmul.f32 %v142, %v935
    %938 = vrot.lane.b32.xlu0 %v936, 108
    %v939 = vpop.permute.xlu0 %938
    %v940 = vrot.slane %v939, 2
    %v941 = vsel %vm810, %v939, %v940
    %v943 = vadd.f32 %v903, %v941
    %s944 = sld [smem:[#allocation6 + $0x5e]]
    %v945 = vstv %s944
    %v946 = vmul.f32 %v142, %v945
    %948 = vrot.lane.b32.xlu0 %v946, 108
    %v949 = vpop.permute.xlu0 %948
    %v950 = vrot.slane %v949, 2
    %v951 = vsel %vm810, %v949, %v950
    %v953 = vadd.f32 %v913, %v951
    %s954 = sld [smem:[#allocation6 + $0x5f]]
    %v955 = vstv %s954
    %v956 = vmul.f32 %v142, %v955
    %958 = vrot.lane.b32.xlu0 %v956, 108
    %v959 = vpop.permute.xlu0 %958
    %v960 = vrot.slane %v959, 2
    %v961 = vsel %vm810, %v959, %v960
    %v963 = vadd.f32 %v923, %v961
    %s964 = sld [smem:[#allocation6 + $0x60]]
    %v965 = vstv %s964
    %v966 = vmul.f32 %v91, %v965
    %968 = vrot.lane.b32.xlu0 %v966, 92
    %v969 = vpop.permute.xlu0 %968
    %v970 = vrot.slane %v969, 2
    %vm971 = vcmask 752640
    %v972 = vsel %vm971, %v969, %v970
    %v974 = vadd.f32 %v933, %v972
    %s975 = sld [smem:[#allocation6 + $0x61]]
    %v976 = vstv %s975
    %v977 = vmul.f32 %v91, %v976
    %979 = vrot.lane.b32.xlu0 %v977, 92
    %v980 = vpop.permute.xlu0 %979
    %v981 = vrot.slane %v980, 2
    %v982 = vsel %vm971, %v980, %v981
    %v984 = vadd.f32 %v943, %v982
    %s985 = sld [smem:[#allocation6 + $0x62]]
    %v986 = vstv %s985
    %v987 = vmul.f32 %v91, %v986
    %989 = vrot.lane.b32.xlu0 %v987, 92
    %v990 = vpop.permute.xlu0 %989
    %v991 = vrot.slane %v990, 2
    %v992 = vsel %vm971, %v990, %v991
    %v994 = vadd.f32 %v953, %v992
    %s995 = sld [smem:[#allocation6 + $0x63]]
    %v996 = vstv %s995
    %v997 = vmul.f32 %v91, %v996
    %999 = vrot.lane.b32.xlu0 %v997, 92
    %v1000 = vpop.permute.xlu0 %999
    %v1001 = vrot.slane %v1000, 2
    %v1002 = vsel %vm971, %v1000, %v1001
    %v1004 = vadd.f32 %v963, %v1002
    %s1005 = sld [smem:[#allocation6 + $0x64]]
    %v1006 = vstv %s1005
    %v1007 = vmul.f32 %v108, %v1006
    %1009 = vrot.lane.b32.xlu0 %v1007, 92
    %v1010 = vpop.permute.xlu0 %1009
    %v1011 = vrot.slane %v1010, 2
    %v1012 = vsel %vm971, %v1010, %v1011
    %v1014 = vadd.f32 %v974, %v1012
    %s1015 = sld [smem:[#allocation6 + $0x65]]
    %v1016 = vstv %s1015
    %v1017 = vmul.f32 %v108, %v1016
    %1019 = vrot.lane.b32.xlu0 %v1017, 92
    %v1020 = vpop.permute.xlu0 %1019
    %v1021 = vrot.slane %v1020, 2
    %v1022 = vsel %vm971, %v1020, %v1021
    %v1024 = vadd.f32 %v984, %v1022
    %s1025 = sld [smem:[#allocation6 + $0x66]]
    %v1026 = vstv %s1025
    %v1027 = vmul.f32 %v108, %v1026
    %1029 = vrot.lane.b32.xlu0 %v1027, 92
    %v1030 = vpop.permute.xlu0 %1029
    %v1031 = vrot.slane %v1030, 2
    %v1032 = vsel %vm971, %v1030, %v1031
    %v1034 = vadd.f32 %v994, %v1032
    %s1035 = sld [smem:[#allocation6 + $0x67]]
    %v1036 = vstv %s1035
    %v1037 = vmul.f32 %v108, %v1036
    %1039 = vrot.lane.b32.xlu0 %v1037, 92
    %v1040 = vpop.permute.xlu0 %1039
    %v1041 = vrot.slane %v1040, 2
    %v1042 = vsel %vm971, %v1040, %v1041
    %v1044 = vadd.f32 %v1004, %v1042
    %s1045 = sld [smem:[#allocation6 + $0x68]]
    %v1046 = vstv %s1045
    %v1047 = vmul.f32 %v125, %v1046
    %1049 = vrot.lane.b32.xlu0 %v1047, 92
    %v1050 = vpop.permute.xlu0 %1049
    %v1051 = vrot.slane %v1050, 2
    %v1052 = vsel %vm971, %v1050, %v1051
    %v1054 = vadd.f32 %v1014, %v1052
    %s1055 = sld [smem:[#allocation6 + $0x69]]
    %v1056 = vstv %s1055
    %v1057 = vmul.f32 %v125, %v1056
    %1059 = vrot.lane.b32.xlu0 %v1057, 92
    %v1060 = vpop.permute.xlu0 %1059
    %v1061 = vrot.slane %v1060, 2
    %v1062 = vsel %vm971, %v1060, %v1061
    %v1064 = vadd.f32 %v1024, %v1062
    %s1065 = sld [smem:[#allocation6 + $0x6a]]
    %v1066 = vstv %s1065
    %v1067 = vmul.f32 %v125, %v1066
    %1069 = vrot.lane.b32.xlu0 %v1067, 92
    %v1070 = vpop.permute.xlu0 %1069
    %v1071 = vrot.slane %v1070, 2
    %v1072 = vsel %vm971, %v1070, %v1071
    %v1074 = vadd.f32 %v1034, %v1072
    %s1075 = sld [smem:[#allocation6 + $0x6b]]
    %v1076 = vstv %s1075
    %v1077 = vmul.f32 %v125, %v1076
    %1079 = vrot.lane.b32.xlu0 %v1077, 92
    %v1080 = vpop.permute.xlu0 %1079
    %v1081 = vrot.slane %v1080, 2
    %v1082 = vsel %vm971, %v1080, %v1081
    %v1084 = vadd.f32 %v1044, %v1082
    %s1085 = sld [smem:[#allocation6 + $0x6c]]
    %v1086 = vstv %s1085
    %v1087 = vmul.f32 %v142, %v1086
    %1089 = vrot.lane.b32.xlu0 %v1087, 92
    %v1090 = vpop.permute.xlu0 %1089
    %v1091 = vrot.slane %v1090, 2
    %v1092 = vsel %vm971, %v1090, %v1091
    %v1094 = vadd.f32 %v1054, %v1092
    %s1095 = sld [smem:[#allocation6 + $0x6d]]
    %v1096 = vstv %s1095
    %v1097 = vmul.f32 %v142, %v1096
    %1099 = vrot.lane.b32.xlu0 %v1097, 92
    %v1100 = vpop.permute.xlu0 %1099
    %v1101 = vrot.slane %v1100, 2
    %v1102 = vsel %vm971, %v1100, %v1101
    %v1104 = vadd.f32 %v1064, %v1102
    %s1105 = sld [smem:[#allocation6 + $0x6e]]
    %v1106 = vstv %s1105
    %v1107 = vmul.f32 %v142, %v1106
    %1109 = vrot.lane.b32.xlu0 %v1107, 92
    %v1110 = vpop.permute.xlu0 %1109
    %v1111 = vrot.slane %v1110, 2
    %v1112 = vsel %vm971, %v1110, %v1111
    %v1114 = vadd.f32 %v1074, %v1112
    %s1115 = sld [smem:[#allocation6 + $0x6f]]
    %v1116 = vstv %s1115
    %v1117 = vmul.f32 %v142, %v1116
    %1119 = vrot.lane.b32.xlu0 %v1117, 92
    %v1120 = vpop.permute.xlu0 %1119
    %v1121 = vrot.slane %v1120, 2
    %v1122 = vsel %vm971, %v1120, %v1121
    %v1124 = vadd.f32 %v1084, %v1122
    %s1125 = sld [smem:[#allocation6 + $0x70]]
    %v1126 = vstv %s1125
    %v1127 = vmul.f32 %v91, %v1126
    %1129 = vrot.lane.b32.xlu0 %v1127, 91
    %v1130 = vpop.permute.xlu0 %1129
    %v1131 = vrot.slane %v1130, 2
    %vm1132 = vcmask 744448
    %v1133 = vsel %vm1132, %v1130, %v1131
    %v1135 = vadd.f32 %v1094, %v1133
    %s1136 = sld [smem:[#allocation6 + $0x71]]
    %v1137 = vstv %s1136
    %v1138 = vmul.f32 %v91, %v1137
    %1140 = vrot.lane.b32.xlu0 %v1138, 91
    %v1141 = vpop.permute.xlu0 %1140
    %v1142 = vrot.slane %v1141, 2
    %v1143 = vsel %vm1132, %v1141, %v1142
    %v1145 = vadd.f32 %v1104, %v1143
    %s1146 = sld [smem:[#allocation6 + $0x72]]
    %v1147 = vstv %s1146
    %v1148 = vmul.f32 %v91, %v1147
    %1150 = vrot.lane.b32.xlu0 %v1148, 91
    %v1151 = vpop.permute.xlu0 %1150
    %v1152 = vrot.slane %v1151, 2
    %v1153 = vsel %vm1132, %v1151, %v1152
    %v1155 = vadd.f32 %v1114, %v1153
    %s1156 = sld [smem:[#allocation6 + $0x73]]
    %v1157 = vstv %s1156
    %v1158 = vmul.f32 %v91, %v1157
    %1160 = vrot.lane.b32.xlu0 %v1158, 91
    %v1161 = vpop.permute.xlu0 %1160
    %v1162 = vrot.slane %v1161, 2
    %v1163 = vsel %vm1132, %v1161, %v1162
    %v1165 = vadd.f32 %v1124, %v1163
    %s1166 = sld [smem:[#allocation6 + $0x74]]
    %v1167 = vstv %s1166
    %v1168 = vmul.f32 %v108, %v1167
    %1170 = vrot.lane.b32.xlu0 %v1168, 91
    %v1171 = vpop.permute.xlu0 %1170
    %v1172 = vrot.slane %v1171, 2
    %v1173 = vsel %vm1132, %v1171, %v1172
    %v1175 = vadd.f32 %v1135, %v1173
    %s1176 = sld [smem:[#allocation6 + $0x75]]
    %v1177 = vstv %s1176
    %v1178 = vmul.f32 %v108, %v1177
    %1180 = vrot.lane.b32.xlu0 %v1178, 91
    %v1181 = vpop.permute.xlu0 %1180
    %v1182 = vrot.slane %v1181, 2
    %v1183 = vsel %vm1132, %v1181, %v1182
    %v1185 = vadd.f32 %v1145, %v1183
    %s1186 = sld [smem:[#allocation6 + $0x76]]
    %v1187 = vstv %s1186
    %v1188 = vmul.f32 %v108, %v1187
    %1190 = vrot.lane.b32.xlu0 %v1188, 91
    %v1191 = vpop.permute.xlu0 %1190
    %v1192 = vrot.slane %v1191, 2
    %v1193 = vsel %vm1132, %v1191, %v1192
    %v1195 = vadd.f32 %v1155, %v1193
    %s1196 = sld [smem:[#allocation6 + $0x77]]
    %v1197 = vstv %s1196
    %v1198 = vmul.f32 %v108, %v1197
    %1200 = vrot.lane.b32.xlu0 %v1198, 91
    %v1201 = vpop.permute.xlu0 %1200
    %v1202 = vrot.slane %v1201, 2
    %v1203 = vsel %vm1132, %v1201, %v1202
    %v1205 = vadd.f32 %v1165, %v1203
    %s1206 = sld [smem:[#allocation6 + $0x78]]
    %v1207 = vstv %s1206
    %v1208 = vmul.f32 %v125, %v1207
    %1210 = vrot.lane.b32.xlu0 %v1208, 91
    %v1211 = vpop.permute.xlu0 %1210
    %v1212 = vrot.slane %v1211, 2
    %v1213 = vsel %vm1132, %v1211, %v1212
    %v1215 = vadd.f32 %v1175, %v1213
    %s1216 = sld [smem:[#allocation6 + $0x79]]
    %v1217 = vstv %s1216
    %v1218 = vmul.f32 %v125, %v1217
    %1220 = vrot.lane.b32.xlu0 %v1218, 91
    %v1221 = vpop.permute.xlu0 %1220
    %v1222 = vrot.slane %v1221, 2
    %v1223 = vsel %vm1132, %v1221, %v1222
    %v1225 = vadd.f32 %v1185, %v1223
    %s1226 = sld [smem:[#allocation6 + $0x7a]]
    %v1227 = vstv %s1226
    %v1228 = vmul.f32 %v125, %v1227
    %1230 = vrot.lane.b32.xlu0 %v1228, 91
    %v1231 = vpop.permute.xlu0 %1230
    %v1232 = vrot.slane %v1231, 2
    %v1233 = vsel %vm1132, %v1231, %v1232
    %v1235 = vadd.f32 %v1195, %v1233
    %s1236 = sld [smem:[#allocation6 + $0x7b]]
    %v1237 = vstv %s1236
    %v1238 = vmul.f32 %v125, %v1237
    %1240 = vrot.lane.b32.xlu0 %v1238, 91
    %v1241 = vpop.permute.xlu0 %1240
    %v1242 = vrot.slane %v1241, 2
    %v1243 = vsel %vm1132, %v1241, %v1242
    %v1245 = vadd.f32 %v1205, %v1243
    %s1246 = sld [smem:[#allocation6 + $0x7c]]
    %v1247 = vstv %s1246
    %v1248 = vmul.f32 %v142, %v1247
    %1250 = vrot.lane.b32.xlu0 %v1248, 91
    %v1251 = vpop.permute.xlu0 %1250
    %v1252 = vrot.slane %v1251, 2
    %v1253 = vsel %vm1132, %v1251, %v1252
    %v1255 = vadd.f32 %v1215, %v1253
    %s1256 = sld [smem:[#allocation6 + $0x7d]]
    %v1257 = vstv %s1256
    %v1258 = vmul.f32 %v142, %v1257
    %1260 = vrot.lane.b32.xlu0 %v1258, 91
    %v1261 = vpop.permute.xlu0 %1260
    %v1262 = vrot.slane %v1261, 2
    %v1263 = vsel %vm1132, %v1261, %v1262
    %v1265 = vadd.f32 %v1225, %v1263
    %s1266 = sld [smem:[#allocation6 + $0x7e]]
    %v1267 = vstv %s1266
    %v1268 = vmul.f32 %v142, %v1267
    %1270 = vrot.lane.b32.xlu0 %v1268, 91
    %v1271 = vpop.permute.xlu0 %1270
    %v1272 = vrot.slane %v1271, 2
    %v1273 = vsel %vm1132, %v1271, %v1272
    %v1275 = vadd.f32 %v1235, %v1273
    %s1276 = sld [smem:[#allocation6 + $0x7f]]
    %v1277 = vstv %s1276
    %v1278 = vmul.f32 %v142, %v1277
    %1280 = vrot.lane.b32.xlu0 %v1278, 91
    %v1281 = vpop.permute.xlu0 %1280
    %v1282 = vrot.slane %v1281, 2
    %v1283 = vsel %vm1132, %v1281, %v1282
    %v1285 = vadd.f32 %v1245, %v1283
    %s1286 = sld [smem:[#allocation6 + $0x80]]
    %v1287 = vstv %s1286
    %v1288 = vmul.f32 %v91, %v1287
    %1290 = vrot.lane.b32.xlu0 %v1288, 90
    %v1291 = vpop.permute.xlu0 %1290
    %v1292 = vrot.slane %v1291, 2
    %vm1293 = vcmask 736256
    %v1294 = vsel %vm1293, %v1291, %v1292
    %v1296 = vadd.f32 %v1255, %v1294
    %s1297 = sld [smem:[#allocation6 + $0x81]]
    %v1298 = vstv %s1297
    %v1299 = vmul.f32 %v91, %v1298
    %1301 = vrot.lane.b32.xlu0 %v1299, 90
    %v1302 = vpop.permute.xlu0 %1301
    %v1303 = vrot.slane %v1302, 2
    %v1304 = vsel %vm1293, %v1302, %v1303
    %v1306 = vadd.f32 %v1265, %v1304
    %s1307 = sld [smem:[#allocation6 + $0x82]]
    %v1308 = vstv %s1307
    %v1309 = vmul.f32 %v91, %v1308
    %1311 = vrot.lane.b32.xlu0 %v1309, 90
    %v1312 = vpop.permute.xlu0 %1311
    %v1313 = vrot.slane %v1312, 2
    %v1314 = vsel %vm1293, %v1312, %v1313
    %v1316 = vadd.f32 %v1275, %v1314
    %s1317 = sld [smem:[#allocation6 + $0x83]]
    %v1318 = vstv %s1317
    %v1319 = vmul.f32 %v91, %v1318
    %1321 = vrot.lane.b32.xlu0 %v1319, 90
    %v1322 = vpop.permute.xlu0 %1321
    %v1323 = vrot.slane %v1322, 2
    %v1324 = vsel %vm1293, %v1322, %v1323
    %v1326 = vadd.f32 %v1285, %v1324
    %s1327 = sld [smem:[#allocation6 + $0x84]]
    %v1328 = vstv %s1327
    %v1329 = vmul.f32 %v108, %v1328
    %1331 = vrot.lane.b32.xlu0 %v1329, 90
    %v1332 = vpop.permute.xlu0 %1331
    %v1333 = vrot.slane %v1332, 2
    %v1334 = vsel %vm1293, %v1332, %v1333
    %v1336 = vadd.f32 %v1296, %v1334
    %s1337 = sld [smem:[#allocation6 + $0x85]]
    %v1338 = vstv %s1337
    %v1339 = vmul.f32 %v108, %v1338
    %1341 = vrot.lane.b32.xlu0 %v1339, 90
    %v1342 = vpop.permute.xlu0 %1341
    %v1343 = vrot.slane %v1342, 2
    %v1344 = vsel %vm1293, %v1342, %v1343
    %v1346 = vadd.f32 %v1306, %v1344
    %s1347 = sld [smem:[#allocation6 + $0x86]]
    %v1348 = vstv %s1347
    %v1349 = vmul.f32 %v108, %v1348
    %1351 = vrot.lane.b32.xlu0 %v1349, 90
    %v1352 = vpop.permute.xlu0 %1351
    %v1353 = vrot.slane %v1352, 2
    %v1354 = vsel %vm1293, %v1352, %v1353
    %v1356 = vadd.f32 %v1316, %v1354
    %s1357 = sld [smem:[#allocation6 + $0x87]]
    %v1358 = vstv %s1357
    %v1359 = vmul.f32 %v108, %v1358
    %1361 = vrot.lane.b32.xlu0 %v1359, 90
    %v1362 = vpop.permute.xlu0 %1361
    %v1363 = vrot.slane %v1362, 2
    %v1364 = vsel %vm1293, %v1362, %v1363
    %v1366 = vadd.f32 %v1326, %v1364
    %s1367 = sld [smem:[#allocation6 + $0x88]]
    %v1368 = vstv %s1367
    %v1369 = vmul.f32 %v125, %v1368
    %1371 = vrot.lane.b32.xlu0 %v1369, 90
    %v1372 = vpop.permute.xlu0 %1371
    %v1373 = vrot.slane %v1372, 2
    %v1374 = vsel %vm1293, %v1372, %v1373
    %v1376 = vadd.f32 %v1336, %v1374
    %s1377 = sld [smem:[#allocation6 + $0x89]]
    %v1378 = vstv %s1377
    %v1379 = vmul.f32 %v125, %v1378
    %1381 = vrot.lane.b32.xlu0 %v1379, 90
    %v1382 = vpop.permute.xlu0 %1381
    %v1383 = vrot.slane %v1382, 2
    %v1384 = vsel %vm1293, %v1382, %v1383
    %v1386 = vadd.f32 %v1346, %v1384
    %s1387 = sld [smem:[#allocation6 + $0x8a]]
    %v1388 = vstv %s1387
    %v1389 = vmul.f32 %v125, %v1388
    %1391 = vrot.lane.b32.xlu0 %v1389, 90
    %v1392 = vpop.permute.xlu0 %1391
    %v1393 = vrot.slane %v1392, 2
    %v1394 = vsel %vm1293, %v1392, %v1393
    %v1396 = vadd.f32 %v1356, %v1394
    %s1397 = sld [smem:[#allocation6 + $0x8b]]
    %v1398 = vstv %s1397
    %v1399 = vmul.f32 %v125, %v1398
    %1401 = vrot.lane.b32.xlu0 %v1399, 90
    %v1402 = vpop.permute.xlu0 %1401
    %v1403 = vrot.slane %v1402, 2
    %v1404 = vsel %vm1293, %v1402, %v1403
    %v1406 = vadd.f32 %v1366, %v1404
    %s1407 = sld [smem:[#allocation6 + $0x8c]]
    %v1408 = vstv %s1407
    %v1409 = vmul.f32 %v142, %v1408
    %1411 = vrot.lane.b32.xlu0 %v1409, 90
    %v1412 = vpop.permute.xlu0 %1411
    %v1413 = vrot.slane %v1412, 2
    %v1414 = vsel %vm1293, %v1412, %v1413
    %v1416 = vadd.f32 %v1376, %v1414
    %s1417 = sld [smem:[#allocation6 + $0x8d]]
    %v1418 = vstv %s1417
    %v1419 = vmul.f32 %v142, %v1418
    %1421 = vrot.lane.b32.xlu0 %v1419, 90
    %v1422 = vpop.permute.xlu0 %1421
    %v1423 = vrot.slane %v1422, 2
    %v1424 = vsel %vm1293, %v1422, %v1423
    %v1426 = vadd.f32 %v1386, %v1424
    %s1427 = sld [smem:[#allocation6 + $0x8e]]
    %v1428 = vstv %s1427
    %v1429 = vmul.f32 %v142, %v1428
    %1431 = vrot.lane.b32.xlu0 %v1429, 90
    %v1432 = vpop.permute.xlu0 %1431
    %v1433 = vrot.slane %v1432, 2
    %v1434 = vsel %vm1293, %v1432, %v1433
    %v1436 = vadd.f32 %v1396, %v1434
    %s1437 = sld [smem:[#allocation6 + $0x8f]]
    %v1438 = vstv %s1437
    %v1439 = vmul.f32 %v142, %v1438
    %1441 = vrot.lane.b32.xlu0 %v1439, 90
    %v1442 = vpop.permute.xlu0 %1441
    %v1443 = vrot.slane %v1442, 2
    %v1444 = vsel %vm1293, %v1442, %v1443
    %v1446 = vadd.f32 %v1406, %v1444
    %s1447 = sld [smem:[#allocation7]]
    %v1448 = vstv %s1447
    %v1449 = vadd.f32 %v1416, %v1448
    %v1450 = vmax.f32 %v1449, 0.0
    %v1452 = vlaneseq
    %v1453 = vshrl.u32 %v1452, 7
    %v1454 = vsub.s32 0, %v1453
    %v1455 = vrot.slane %v90, %v1454
    %v1456 = vlaneseq
    %v1457 = vshrl.u32 %v1456, 7
    %v1458 = vsub.s32 1, %v1457
    %v1459 = vrot.slane %v90, %v1458
    %v1460 = vlaneseq
    %v1461 = vshrl.u32 %v1460, 7
    %v1462 = vsub.s32 2, %v1461
    %v1463 = vrot.slane %v90, %v1462
    %v1464 = vcombine.low %v1455, %v1459
    %v1466 = vunpack.c.l.s4 1983009808
    %v1467 = vunpack.c.0.s8 %v1466
    %v1468 = vlaneseq
    %v1469 = vshrl.u32 %v1468, 7
    %v1470 = vsub.s32 %v1467, %v1469
    %v1471 = vrot.slane %v1464, %v1470
    %v1473 = vunpack.c.l.s4 1983009808
    %v1474 = vunpack.c.0.s8 %v1473
    %v1475 = vlaneseq
    %v1476 = vshrl.u32 %v1475, 7
    %v1477 = vsub.s32 %v1474, %v1476
    %v1478 = vrot.slane %v1463, %v1477
    %v1479 = vcombine.low %v1471, %v1478
    %v1481 = vmul.f32 %v1450, %v1479
    %s1482 = sld [smem:[#allocation7 + $0x1]]
    %v1483 = vstv %s1482
    %v1484 = vadd.f32 %v1426, %v1483
    %v1485 = vmax.f32 %v1484, 0.0
    %v1486 = vmul.f32 %v1485, %v1479
    %s1487 = sld [smem:[#allocation7 + $0x2]]
    %v1488 = vstv %s1487
    %v1489 = vadd.f32 %v1436, %v1488
    %v1490 = vmax.f32 %v1489, 0.0
    %v1491 = vmul.f32 %v1490, %v1479
    %s1492 = sld [smem:[#allocation7 + $0x3]]
    %v1493 = vstv %s1492
    %v1494 = vadd.f32 %v1446, %v1493
    %v1495 = vmax.f32 %v1494, 0.0
    %v1496 = vmul.f32 %v1495, %v1479
    %s1497 = sld [smem:[#allocation9]]
    %v1498 = vstv %s1497
    %v1499 = vmul.f32 %v1481, %v1498
    %v1500 = vadd.f32 %v1499, 0.0
    %s1501 = sld [smem:[#allocation9 + $0x1]]
    %v1502 = vstv %s1501
    %v1503 = vmul.f32 %v1481, %v1502
    %v1504 = vadd.f32 %v1503, 0.0
    %s1505 = sld [smem:[#allocation9 + $0x2]]
    %v1506 = vstv %s1505
    %v1507 = vmul.f32 %v1481, %v1506
    %v1508 = vadd.f32 %v1507, 0.0
    %s1509 = sld [smem:[#allocation9 + $0x3]]
    %v1510 = vstv %s1509
    %v1511 = vmul.f32 %v1481, %v1510
    %v1512 = vadd.f32 %v1511, 0.0
    %s1513 = sld [smem:[#allocation9 + $0x4]]
    %v1514 = vstv %s1513
    %v1515 = vmul.f32 %v1486, %v1514
    %v1516 = vadd.f32 %v1500, %v1515
    %s1517 = sld [smem:[#allocation9 + $0x5]]
    %v1518 = vstv %s1517
    %v1519 = vmul.f32 %v1486, %v1518
    %v1520 = vadd.f32 %v1504, %v1519
    %s1521 = sld [smem:[#allocation9 + $0x6]]
    %v1522 = vstv %s1521
    %v1523 = vmul.f32 %v1486, %v1522
    %v1524 = vadd.f32 %v1508, %v1523
    %s1525 = sld [smem:[#allocation9 + $0x7]]
    %v1526 = vstv %s1525
    %v1527 = vmul.f32 %v1486, %v1526
    %v1528 = vadd.f32 %v1512, %v1527
    %s1529 = sld [smem:[#allocation9 + $0x8]]
    %v1530 = vstv %s1529
    %v1531 = vmul.f32 %v1491, %v1530
    %v1532 = vadd.f32 %v1516, %v1531
    %s1533 = sld [smem:[#allocation9 + $0x9]]
    %v1534 = vstv %s1533
    %v1535 = vmul.f32 %v1491, %v1534
    %v1536 = vadd.f32 %v1520, %v1535
    %s1537 = sld [smem:[#allocation9 + $0xa]]
    %v1538 = vstv %s1537
    %v1539 = vmul.f32 %v1491, %v1538
    %v1540 = vadd.f32 %v1524, %v1539
    %s1541 = sld [smem:[#allocation9 + $0xb]]
    %v1542 = vstv %s1541
    %v1543 = vmul.f32 %v1491, %v1542
    %v1544 = vadd.f32 %v1528, %v1543
    %s1545 = sld [smem:[#allocation9 + $0xc]]
    %v1546 = vstv %s1545
    %v1547 = vmul.f32 %v1496, %v1546
    %v1548 = vadd.f32 %v1532, %v1547
    %s1549 = sld [smem:[#allocation9 + $0xd]]
    %v1550 = vstv %s1549
    %v1551 = vmul.f32 %v1496, %v1550
    %v1552 = vadd.f32 %v1536, %v1551
    %s1553 = sld [smem:[#allocation9 + $0xe]]
    %v1554 = vstv %s1553
    %v1555 = vmul.f32 %v1496, %v1554
    %v1556 = vadd.f32 %v1540, %v1555
    %s1557 = sld [smem:[#allocation9 + $0xf]]
    %v1558 = vstv %s1557
    %v1559 = vmul.f32 %v1496, %v1558
    %v1560 = vadd.f32 %v1544, %v1559
    %s1561 = sld [smem:[#allocation9 + $0x10]]
    %v1562 = vstv %s1561
    %v1563 = vmul.f32 %v1481, %v1562
    %1565 = vrot.lane.b32.xlu0 %v1563, 127
    %v1566 = vpop.permute.xlu0 %1565
    %v1567 = vrot.slane %v1566, 2
    %v1568 = vsel %vm166, %v1566, %v1567
    %v1570 = vadd.f32 %v1548, %v1568
    %s1571 = sld [smem:[#allocation9 + $0x11]]
    %v1572 = vstv %s1571
    %v1573 = vmul.f32 %v1481, %v1572
    %1575 = vrot.lane.b32.xlu0 %v1573, 127
    %v1576 = vpop.permute.xlu0 %1575
    %v1577 = vrot.slane %v1576, 2
    %v1578 = vsel %vm166, %v1576, %v1577
    %v1580 = vadd.f32 %v1552, %v1578
    %s1581 = sld [smem:[#allocation9 + $0x12]]
    %v1582 = vstv %s1581
    %v1583 = vmul.f32 %v1481, %v1582
    %1585 = vrot.lane.b32.xlu0 %v1583, 127
    %v1586 = vpop.permute.xlu0 %1585
    %v1587 = vrot.slane %v1586, 2
    %v1588 = vsel %vm166, %v1586, %v1587
    %v1590 = vadd.f32 %v1556, %v1588
    %s1591 = sld [smem:[#allocation9 + $0x13]]
    %v1592 = vstv %s1591
    %v1593 = vmul.f32 %v1481, %v1592
    %1595 = vrot.lane.b32.xlu0 %v1593, 127
    %v1596 = vpop.permute.xlu0 %1595
    %v1597 = vrot.slane %v1596, 2
    %v1598 = vsel %vm166, %v1596, %v1597
    %v1600 = vadd.f32 %v1560, %v1598
    %s1601 = sld [smem:[#allocation9 + $0x14]]
    %v1602 = vstv %s1601
    %v1603 = vmul.f32 %v1486, %v1602
    %1605 = vrot.lane.b32.xlu0 %v1603, 127
    %v1606 = vpop.permute.xlu0 %1605
    %v1607 = vrot.slane %v1606, 2
    %v1608 = vsel %vm166, %v1606, %v1607
    %v1610 = vadd.f32 %v1570, %v1608
    %s1611 = sld [smem:[#allocation9 + $0x15]]
    %v1612 = vstv %s1611
    %v1613 = vmul.f32 %v1486, %v1612
    %1615 = vrot.lane.b32.xlu0 %v1613, 127
    %v1616 = vpop.permute.xlu0 %1615
    %v1617 = vrot.slane %v1616, 2
    %v1618 = vsel %vm166, %v1616, %v1617
    %v1620 = vadd.f32 %v1580, %v1618
    %s1621 = sld [smem:[#allocation9 + $0x16]]
    %v1622 = vstv %s1621
    %v1623 = vmul.f32 %v1486, %v1622
    %1625 = vrot.lane.b32.xlu0 %v1623, 127
    %v1626 = vpop.permute.xlu0 %1625
    %v1627 = vrot.slane %v1626, 2
    %v1628 = vsel %vm166, %v1626, %v1627
    %v1630 = vadd.f32 %v1590, %v1628
    %s1631 = sld [smem:[#allocation9 + $0x17]]
    %v1632 = vstv %s1631
    %v1633 = vmul.f32 %v1486, %v1632
    %1635 = vrot.lane.b32.xlu0 %v1633, 127
    %v1636 = vpop.permute.xlu0 %1635
    %v1637 = vrot.slane %v1636, 2
    %v1638 = vsel %vm166, %v1636, %v1637
    %v1640 = vadd.f32 %v1600, %v1638
    %s1641 = sld [smem:[#allocation9 + $0x18]]
    %v1642 = vstv %s1641
    %v1643 = vmul.f32 %v1491, %v1642
    %1645 = vrot.lane.b32.xlu0 %v1643, 127
    %v1646 = vpop.permute.xlu0 %1645
    %v1647 = vrot.slane %v1646, 2
    %v1648 = vsel %vm166, %v1646, %v1647
    %v1650 = vadd.f32 %v1610, %v1648
    %s1651 = sld [smem:[#allocation9 + $0x19]]
    %v1652 = vstv %s1651
    %v1653 = vmul.f32 %v1491, %v1652
    %1655 = vrot.lane.b32.xlu0 %v1653, 127
    %v1656 = vpop.permute.xlu0 %1655
    %v1657 = vrot.slane %v1656, 2
    %v1658 = vsel %vm166, %v1656, %v1657
    %v1660 = vadd.f32 %v1620, %v1658
    %s1661 = sld [smem:[#allocation9 + $0x1a]]
    %v1662 = vstv %s1661
    %v1663 = vmul.f32 %v1491, %v1662
    %1665 = vrot.lane.b32.xlu0 %v1663, 127
    %v1666 = vpop.permute.xlu0 %1665
    %v1667 = vrot.slane %v1666, 2
    %v1668 = vsel %vm166, %v1666, %v1667
    %v1670 = vadd.f32 %v1630, %v1668
    %s1671 = sld [smem:[#allocation9 + $0x1b]]
    %v1672 = vstv %s1671
    %v1673 = vmul.f32 %v1491, %v1672
    %1675 = vrot.lane.b32.xlu0 %v1673, 127
    %v1676 = vpop.permute.xlu0 %1675
    %v1677 = vrot.slane %v1676, 2
    %v1678 = vsel %vm166, %v1676, %v1677
    %v1680 = vadd.f32 %v1640, %v1678
    %s1681 = sld [smem:[#allocation9 + $0x1c]]
    %v1682 = vstv %s1681
    %v1683 = vmul.f32 %v1496, %v1682
    %1685 = vrot.lane.b32.xlu0 %v1683, 127
    %v1686 = vpop.permute.xlu0 %1685
    %v1687 = vrot.slane %v1686, 2
    %v1688 = vsel %vm166, %v1686, %v1687
    %v1690 = vadd.f32 %v1650, %v1688
    %s1691 = sld [smem:[#allocation9 + $0x1d]]
    %v1692 = vstv %s1691
    %v1693 = vmul.f32 %v1496, %v1692
    %1695 = vrot.lane.b32.xlu0 %v1693, 127
    %v1696 = vpop.permute.xlu0 %1695
    %v1697 = vrot.slane %v1696, 2
    %v1698 = vsel %vm166, %v1696, %v1697
    %v1700 = vadd.f32 %v1660, %v1698
    %s1701 = sld [smem:[#allocation9 + $0x1e]]
    %v1702 = vstv %s1701
    %v1703 = vmul.f32 %v1496, %v1702
    %1705 = vrot.lane.b32.xlu0 %v1703, 127
    %v1706 = vpop.permute.xlu0 %1705
    %v1707 = vrot.slane %v1706, 2
    %v1708 = vsel %vm166, %v1706, %v1707
    %v1710 = vadd.f32 %v1670, %v1708
    %s1711 = sld [smem:[#allocation9 + $0x1f]]
    %v1712 = vstv %s1711
    %v1713 = vmul.f32 %v1496, %v1712
    %1715 = vrot.lane.b32.xlu0 %v1713, 127
    %v1716 = vpop.permute.xlu0 %1715
    %v1717 = vrot.slane %v1716, 2
    %v1718 = vsel %vm166, %v1716, %v1717
    %v1720 = vadd.f32 %v1680, %v1718
    %s1721 = sld [smem:[#allocation9 + $0x20]]
    %v1722 = vstv %s1721
    %v1723 = vmul.f32 %v1481, %v1722
    %1725 = vrot.lane.b32.xlu0 %v1723, 126
    %v1726 = vpop.permute.xlu0 %1725
    %v1727 = vrot.slane %v1726, 2
    %v1728 = vsel %vm327, %v1726, %v1727
    %v1730 = vadd.f32 %v1690, %v1728
    %s1731 = sld [smem:[#allocation9 + $0x21]]
    %v1732 = vstv %s1731
    %v1733 = vmul.f32 %v1481, %v1732
    %1735 = vrot.lane.b32.xlu0 %v1733, 126
    %v1736 = vpop.permute.xlu0 %1735
    %v1737 = vrot.slane %v1736, 2
    %v1738 = vsel %vm327, %v1736, %v1737
    %v1740 = vadd.f32 %v1700, %v1738
    %s1741 = sld [smem:[#allocation9 + $0x22]]
    %v1742 = vstv %s1741
    %v1743 = vmul.f32 %v1481, %v1742
    %1745 = vrot.lane.b32.xlu0 %v1743, 126
    %v1746 = vpop.permute.xlu0 %1745
    %v1747 = vrot.slane %v1746, 2
    %v1748 = vsel %vm327, %v1746, %v1747
    %v1750 = vadd.f32 %v1710, %v1748
    %s1751 = sld [smem:[#allocation9 + $0x23]]
    %v1752 = vstv %s1751
    %v1753 = vmul.f32 %v1481, %v1752
    %1755 = vrot.lane.b32.xlu0 %v1753, 126
    %v1756 = vpop.permute.xlu0 %1755
    %v1757 = vrot.slane %v1756, 2
    %v1758 = vsel %vm327, %v1756, %v1757
    %v1760 = vadd.f32 %v1720, %v1758
    %s1761 = sld [smem:[#allocation9 + $0x24]]
    %v1762 = vstv %s1761
    %v1763 = vmul.f32 %v1486, %v1762
    %1765 = vrot.lane.b32.xlu0 %v1763, 126
    %v1766 = vpop.permute.xlu0 %1765
    %v1767 = vrot.slane %v1766, 2
    %v1768 = vsel %vm327, %v1766, %v1767
    %v1770 = vadd.f32 %v1730, %v1768
    %s1771 = sld [smem:[#allocation9 + $0x25]]
    %v1772 = vstv %s1771
    %v1773 = vmul.f32 %v1486, %v1772
    %1775 = vrot.lane.b32.xlu0 %v1773, 126
    %v1776 = vpop.permute.xlu0 %1775
    %v1777 = vrot.slane %v1776, 2
    %v1778 = vsel %vm327, %v1776, %v1777
    %v1780 = vadd.f32 %v1740, %v1778
    %s1781 = sld [smem:[#allocation9 + $0x26]]
    %v1782 = vstv %s1781
    %v1783 = vmul.f32 %v1486, %v1782
    %1785 = vrot.lane.b32.xlu0 %v1783, 126
    %v1786 = vpop.permute.xlu0 %1785
    %v1787 = vrot.slane %v1786, 2
    %v1788 = vsel %vm327, %v1786, %v1787
    %v1790 = vadd.f32 %v1750, %v1788
    %s1791 = sld [smem:[#allocation9 + $0x27]]
    %v1792 = vstv %s1791
    %v1793 = vmul.f32 %v1486, %v1792
    %1795 = vrot.lane.b32.xlu0 %v1793, 126
    %v1796 = vpop.permute.xlu0 %1795
    %v1797 = vrot.slane %v1796, 2
    %v1798 = vsel %vm327, %v1796, %v1797
    %v1800 = vadd.f32 %v1760, %v1798
    %s1801 = sld [smem:[#allocation9 + $0x28]]
    %v1802 = vstv %s1801
    %v1803 = vmul.f32 %v1491, %v1802
    %1805 = vrot.lane.b32.xlu0 %v1803, 126
    %v1806 = vpop.permute.xlu0 %1805
    %v1807 = vrot.slane %v1806, 2
    %v1808 = vsel %vm327, %v1806, %v1807
    %v1810 = vadd.f32 %v1770, %v1808
    %s1811 = sld [smem:[#allocation9 + $0x29]]
    %v1812 = vstv %s1811
    %v1813 = vmul.f32 %v1491, %v1812
    %1815 = vrot.lane.b32.xlu0 %v1813, 126
    %v1816 = vpop.permute.xlu0 %1815
    %v1817 = vrot.slane %v1816, 2
    %v1818 = vsel %vm327, %v1816, %v1817
    %v1820 = vadd.f32 %v1780, %v1818
    %s1821 = sld [smem:[#allocation9 + $0x2a]]
    %v1822 = vstv %s1821
    %v1823 = vmul.f32 %v1491, %v1822
    %1825 = vrot.lane.b32.xlu0 %v1823, 126
    %v1826 = vpop.permute.xlu0 %1825
    %v1827 = vrot.slane %v1826, 2
    %v1828 = vsel %vm327, %v1826, %v1827
    %v1830 = vadd.f32 %v1790, %v1828
    %s1831 = sld [smem:[#allocation9 + $0x2b]]
    %v1832 = vstv %s1831
    %v1833 = vmul.f32 %v1491, %v1832
    %1835 = vrot.lane.b32.xlu0 %v1833, 126
    %v1836 = vpop.permute.xlu0 %1835
    %v1837 = vrot.slane %v1836, 2
    %v1838 = vsel %vm327, %v1836, %v1837
    %v1840 = vadd.f32 %v1800, %v1838
    %s1841 = sld [smem:[#allocation9 + $0x2c]]
    %v1842 = vstv %s1841
    %v1843 = vmul.f32 %v1496, %v1842
    %1845 = vrot.lane.b32.xlu0 %v1843, 126
    %v1846 = vpop.permute.xlu0 %1845
    %v1847 = vrot.slane %v1846, 2
    %v1848 = vsel %vm327, %v1846, %v1847
    %v1850 = vadd.f32 %v1810, %v1848
    %s1851 = sld [smem:[#allocation9 + $0x2d]]
    %v1852 = vstv %s1851
    %v1853 = vmul.f32 %v1496, %v1852
    %1855 = vrot.lane.b32.xlu0 %v1853, 126
    %v1856 = vpop.permute.xlu0 %1855
    %v1857 = vrot.slane %v1856, 2
    %v1858 = vsel %vm327, %v1856, %v1857
    %v1860 = vadd.f32 %v1820, %v1858
    %s1861 = sld [smem:[#allocation9 + $0x2e]]
    %v1862 = vstv %s1861
    %v1863 = vmul.f32 %v1496, %v1862
    %1865 = vrot.lane.b32.xlu0 %v1863, 126
    %v1866 = vpop.permute.xlu0 %1865
    %v1867 = vrot.slane %v1866, 2
    %v1868 = vsel %vm327, %v1866, %v1867
    %v1870 = vadd.f32 %v1830, %v1868
    %s1871 = sld [smem:[#allocation9 + $0x2f]]
    %v1872 = vstv %s1871
    %v1873 = vmul.f32 %v1496, %v1872
    %1875 = vrot.lane.b32.xlu0 %v1873, 126
    %v1876 = vpop.permute.xlu0 %1875
    %v1877 = vrot.slane %v1876, 2
    %v1878 = vsel %vm327, %v1876, %v1877
    %v1880 = vadd.f32 %v1840, %v1878
    %s1881 = sld [smem:[#allocation9 + $0x30]]
    %v1882 = vstv %s1881
    %v1883 = vmul.f32 %v1481, %v1882
    %1885 = vrot.lane.b32.xlu0 %v1883, 110
    %v1886 = vpop.permute.xlu0 %1885
    %v1887 = vrot.slane %v1886, 2
    %v1888 = vsel %vm488, %v1886, %v1887
    %v1890 = vadd.f32 %v1850, %v1888
    %s1891 = sld [smem:[#allocation9 + $0x31]]
    %v1892 = vstv %s1891
    %v1893 = vmul.f32 %v1481, %v1892
    %1895 = vrot.lane.b32.xlu0 %v1893, 110
    %v1896 = vpop.permute.xlu0 %1895
    %v1897 = vrot.slane %v1896, 2
    %v1898 = vsel %vm488, %v1896, %v1897
    %v1900 = vadd.f32 %v1860, %v1898
    %s1901 = sld [smem:[#allocation9 + $0x32]]
    %v1902 = vstv %s1901
    %v1903 = vmul.f32 %v1481, %v1902
    %1905 = vrot.lane.b32.xlu0 %v1903, 110
    %v1906 = vpop.permute.xlu0 %1905
    %v1907 = vrot.slane %v1906, 2
    %v1908 = vsel %vm488, %v1906, %v1907
    %v1910 = vadd.f32 %v1870, %v1908
    %s1911 = sld [smem:[#allocation9 + $0x33]]
    %v1912 = vstv %s1911
    %v1913 = vmul.f32 %v1481, %v1912
    %1915 = vrot.lane.b32.xlu0 %v1913, 110
    %v1916 = vpop.permute.xlu0 %1915
    %v1917 = vrot.slane %v1916, 2
    %v1918 = vsel %vm488, %v1916, %v1917
    %v1920 = vadd.f32 %v1880, %v1918
    %s1921 = sld [smem:[#allocation9 + $0x34]]
    %v1922 = vstv %s1921
    %v1923 = vmul.f32 %v1486, %v1922
    %1925 = vrot.lane.b32.xlu0 %v1923, 110
    %v1926 = vpop.permute.xlu0 %1925
    %v1927 = vrot.slane %v1926, 2
    %v1928 = vsel %vm488, %v1926, %v1927
    %v1930 = vadd.f32 %v1890, %v1928
    %s1931 = sld [smem:[#allocation9 + $0x35]]
    %v1932 = vstv %s1931
    %v1933 = vmul.f32 %v1486, %v1932
    %1935 = vrot.lane.b32.xlu0 %v1933, 110
    %v1936 = vpop.permute.xlu0 %1935
    %v1937 = vrot.slane %v1936, 2
    %v1938 = vsel %vm488, %v1936, %v1937
    %v1940 = vadd.f32 %v1900, %v1938
    %s1941 = sld [smem:[#allocation9 + $0x36]]
    %v1942 = vstv %s1941
    %v1943 = vmul.f32 %v1486, %v1942
    %1945 = vrot.lane.b32.xlu0 %v1943, 110
    %v1946 = vpop.permute.xlu0 %1945
    %v1947 = vrot.slane %v1946, 2
    %v1948 = vsel %vm488, %v1946, %v1947
    %v1950 = vadd.f32 %v1910, %v1948
    %s1951 = sld [smem:[#allocation9 + $0x37]]
    %v1952 = vstv %s1951
    %v1953 = vmul.f32 %v1486, %v1952
    %1955 = vrot.lane.b32.xlu0 %v1953, 110
    %v1956 = vpop.permute.xlu0 %1955
    %v1957 = vrot.slane %v1956, 2
    %v1958 = vsel %vm488, %v1956, %v1957
    %v1960 = vadd.f32 %v1920, %v1958
    %s1961 = sld [smem:[#allocation9 + $0x38]]
    %v1962 = vstv %s1961
    %v1963 = vmul.f32 %v1491, %v1962
    %1965 = vrot.lane.b32.xlu0 %v1963, 110
    %v1966 = vpop.permute.xlu0 %1965
    %v1967 = vrot.slane %v1966, 2
    %v1968 = vsel %vm488, %v1966, %v1967
    %v1970 = vadd.f32 %v1930, %v1968
    %s1971 = sld [smem:[#allocation9 + $0x39]]
    %v1972 = vstv %s1971
    %v1973 = vmul.f32 %v1491, %v1972
    %1975 = vrot.lane.b32.xlu0 %v1973, 110
    %v1976 = vpop.permute.xlu0 %1975
    %v1977 = vrot.slane %v1976, 2
    %v1978 = vsel %vm488, %v1976, %v1977
    %v1980 = vadd.f32 %v1940, %v1978
    %s1981 = sld [smem:[#allocation9 + $0x3a]]
    %v1982 = vstv %s1981
    %v1983 = vmul.f32 %v1491, %v1982
    %1985 = vrot.lane.b32.xlu0 %v1983, 110
    %v1986 = vpop.permute.xlu0 %1985
    %v1987 = vrot.slane %v1986, 2
    %v1988 = vsel %vm488, %v1986, %v1987
    %v1990 = vadd.f32 %v1950, %v1988
    %s1991 = sld [smem:[#allocation9 + $0x3b]]
    %v1992 = vstv %s1991
    %v1993 = vmul.f32 %v1491, %v1992
    %1995 = vrot.lane.b32.xlu0 %v1993, 110
    %v1996 = vpop.permute.xlu0 %1995
    %v1997 = vrot.slane %v1996, 2
    %v1998 = vsel %vm488, %v1996, %v1997
    %v2000 = vadd.f32 %v1960, %v1998
    %s2001 = sld [smem:[#allocation9 + $0x3c]]
    %v2002 = vstv %s2001
    %v2003 = vmul.f32 %v1496, %v2002
    %2005 = vrot.lane.b32.xlu0 %v2003, 110
    %v2006 = vpop.permute.xlu0 %2005
    %v2007 = vrot.slane %v2006, 2
    %v2008 = vsel %vm488, %v2006, %v2007
    %v2010 = vadd.f32 %v1970, %v2008
    %s2011 = sld [smem:[#allocation9 + $0x3d]]
    %v2012 = vstv %s2011
    %v2013 = vmul.f32 %v1496, %v2012
    %2015 = vrot.lane.b32.xlu0 %v2013, 110
    %v2016 = vpop.permute.xlu0 %2015
    %v2017 = vrot.slane %v2016, 2
    %v2018 = vsel %vm488, %v2016, %v2017
    %v2020 = vadd.f32 %v1980, %v2018
    %s2021 = sld [smem:[#allocation9 + $0x3e]]
    %v2022 = vstv %s2021
    %v2023 = vmul.f32 %v1496, %v2022
    %2025 = vrot.lane.b32.xlu0 %v2023, 110
    %v2026 = vpop.permute.xlu0 %2025
    %v2027 = vrot.slane %v2026, 2
    %v2028 = vsel %vm488, %v2026, %v2027
    %v2030 = vadd.f32 %v1990, %v2028
    %s2031 = sld [smem:[#allocation9 + $0x3f]]
    %v2032 = vstv %s2031
    %v2033 = vmul.f32 %v1496, %v2032
    %2035 = vrot.lane.b32.xlu0 %v2033, 110
    %v2036 = vpop.permute.xlu0 %2035
    %v2037 = vrot.slane %v2036, 2
    %v2038 = vsel %vm488, %v2036, %v2037
    %v2040 = vadd.f32 %v2000, %v2038
    %s2041 = sld [smem:[#allocation9 + $0x40]]
    %v2042 = vstv %s2041
    %v2043 = vmul.f32 %v1481, %v2042
    %2045 = vrot.lane.b32.xlu0 %v2043, 109
    %v2046 = vpop.permute.xlu0 %2045
    %v2047 = vrot.slane %v2046, 2
    %v2048 = vsel %vm649, %v2046, %v2047
    %v2050 = vadd.f32 %v2010, %v2048
    %s2051 = sld [smem:[#allocation9 + $0x41]]
    %v2052 = vstv %s2051
    %v2053 = vmul.f32 %v1481, %v2052
    %2055 = vrot.lane.b32.xlu0 %v2053, 109
    %v2056 = vpop.permute.xlu0 %2055
    %v2057 = vrot.slane %v2056, 2
    %v2058 = vsel %vm649, %v2056, %v2057
    %v2060 = vadd.f32 %v2020, %v2058
    %s2061 = sld [smem:[#allocation9 + $0x42]]
    %v2062 = vstv %s2061
    %v2063 = vmul.f32 %v1481, %v2062
    %2065 = vrot.lane.b32.xlu0 %v2063, 109
    %v2066 = vpop.permute.xlu0 %2065
    %v2067 = vrot.slane %v2066, 2
    %v2068 = vsel %vm649, %v2066, %v2067
    %v2070 = vadd.f32 %v2030, %v2068
    %s2071 = sld [smem:[#allocation9 + $0x43]]
    %v2072 = vstv %s2071
    %v2073 = vmul.f32 %v1481, %v2072
    %2075 = vrot.lane.b32.xlu0 %v2073, 109
    %v2076 = vpop.permute.xlu0 %2075
    %v2077 = vrot.slane %v2076, 2
    %v2078 = vsel %vm649, %v2076, %v2077
    %v2080 = vadd.f32 %v2040, %v2078
    %s2081 = sld [smem:[#allocation9 + $0x44]]
    %v2082 = vstv %s2081
    %v2083 = vmul.f32 %v1486, %v2082
    %2085 = vrot.lane.b32.xlu0 %v2083, 109
    %v2086 = vpop.permute.xlu0 %2085
    %v2087 = vrot.slane %v2086, 2
    %v2088 = vsel %vm649, %v2086, %v2087
    %v2090 = vadd.f32 %v2050, %v2088
    %s2091 = sld [smem:[#allocation9 + $0x45]]
    %v2092 = vstv %s2091
    %v2093 = vmul.f32 %v1486, %v2092
    %2095 = vrot.lane.b32.xlu0 %v2093, 109
    %v2096 = vpop.permute.xlu0 %2095
    %v2097 = vrot.slane %v2096, 2
    %v2098 = vsel %vm649, %v2096, %v2097
    %v2100 = vadd.f32 %v2060, %v2098
    %s2101 = sld [smem:[#allocation9 + $0x46]]
    %v2102 = vstv %s2101
    %v2103 = vmul.f32 %v1486, %v2102
    %2105 = vrot.lane.b32.xlu0 %v2103, 109
    %v2106 = vpop.permute.xlu0 %2105
    %v2107 = vrot.slane %v2106, 2
    %v2108 = vsel %vm649, %v2106, %v2107
    %v2110 = vadd.f32 %v2070, %v2108
    %s2111 = sld [smem:[#allocation9 + $0x47]]
    %v2112 = vstv %s2111
    %v2113 = vmul.f32 %v1486, %v2112
    %2115 = vrot.lane.b32.xlu0 %v2113, 109
    %v2116 = vpop.permute.xlu0 %2115
    %v2117 = vrot.slane %v2116, 2
    %v2118 = vsel %vm649, %v2116, %v2117
    %v2120 = vadd.f32 %v2080, %v2118
    %s2121 = sld [smem:[#allocation9 + $0x48]]
    %v2122 = vstv %s2121
    %v2123 = vmul.f32 %v1491, %v2122
    %2125 = vrot.lane.b32.xlu0 %v2123, 109
    %v2126 = vpop.permute.xlu0 %2125
    %v2127 = vrot.slane %v2126, 2
    %v2128 = vsel %vm649, %v2126, %v2127
    %v2130 = vadd.f32 %v2090, %v2128
    %s2131 = sld [smem:[#allocation9 + $0x49]]
    %v2132 = vstv %s2131
    %v2133 = vmul.f32 %v1491, %v2132
    %2135 = vrot.lane.b32.xlu0 %v2133, 109
    %v2136 = vpop.permute.xlu0 %2135
    %v2137 = vrot.slane %v2136, 2
    %v2138 = vsel %vm649, %v2136, %v2137
    %v2140 = vadd.f32 %v2100, %v2138
    %s2141 = sld [smem:[#allocation9 + $0x4a]]
    %v2142 = vstv %s2141
    %v2143 = vmul.f32 %v1491, %v2142
    %2145 = vrot.lane.b32.xlu0 %v2143, 109
    %v2146 = vpop.permute.xlu0 %2145
    %v2147 = vrot.slane %v2146, 2
    %v2148 = vsel %vm649, %v2146, %v2147
    %v2150 = vadd.f32 %v2110, %v2148
    %s2151 = sld [smem:[#allocation9 + $0x4b]]
    %v2152 = vstv %s2151
    %v2153 = vmul.f32 %v1491, %v2152
    %2155 = vrot.lane.b32.xlu0 %v2153, 109
    %v2156 = vpop.permute.xlu0 %2155
    %v2157 = vrot.slane %v2156, 2
    %v2158 = vsel %vm649, %v2156, %v2157
    %v2160 = vadd.f32 %v2120, %v2158
    %s2161 = sld [smem:[#allocation9 + $0x4c]]
    %v2162 = vstv %s2161
    %v2163 = vmul.f32 %v1496, %v2162
    %2165 = vrot.lane.b32.xlu0 %v2163, 109
    %v2166 = vpop.permute.xlu0 %2165
    %v2167 = vrot.slane %v2166, 2
    %v2168 = vsel %vm649, %v2166, %v2167
    %v2170 = vadd.f32 %v2130, %v2168
    %s2171 = sld [smem:[#allocation9 + $0x4d]]
    %v2172 = vstv %s2171
    %v2173 = vmul.f32 %v1496, %v2172
    %2175 = vrot.lane.b32.xlu0 %v2173, 109
    %v2176 = vpop.permute.xlu0 %2175
    %v2177 = vrot.slane %v2176, 2
    %v2178 = vsel %vm649, %v2176, %v2177
    %v2180 = vadd.f32 %v2140, %v2178
    %s2181 = sld [smem:[#allocation9 + $0x4e]]
    %v2182 = vstv %s2181
    %v2183 = vmul.f32 %v1496, %v2182
    %2185 = vrot.lane.b32.xlu0 %v2183, 109
    %v2186 = vpop.permute.xlu0 %2185
    %v2187 = vrot.slane %v2186, 2
    %v2188 = vsel %vm649, %v2186, %v2187
    %v2190 = vadd.f32 %v2150, %v2188
    %s2191 = sld [smem:[#allocation9 + $0x4f]]
    %v2192 = vstv %s2191
    %v2193 = vmul.f32 %v1496, %v2192
    %2195 = vrot.lane.b32.xlu0 %v2193, 109
    %v2196 = vpop.permute.xlu0 %2195
    %v2197 = vrot.slane %v2196, 2
    %v2198 = vsel %vm649, %v2196, %v2197
    %v2200 = vadd.f32 %v2160, %v2198
    %s2201 = sld [smem:[#allocation9 + $0x50]]
    %v2202 = vstv %s2201
    %v2203 = vmul.f32 %v1481, %v2202
    %2205 = vrot.lane.b32.xlu0 %v2203, 108
    %v2206 = vpop.permute.xlu0 %2205
    %v2207 = vrot.slane %v2206, 2
    %v2208 = vsel %vm810, %v2206, %v2207
    %v2210 = vadd.f32 %v2170, %v2208
    %s2211 = sld [smem:[#allocation9 + $0x51]]
    %v2212 = vstv %s2211
    %v2213 = vmul.f32 %v1481, %v2212
    %2215 = vrot.lane.b32.xlu0 %v2213, 108
    %v2216 = vpop.permute.xlu0 %2215
    %v2217 = vrot.slane %v2216, 2
    %v2218 = vsel %vm810, %v2216, %v2217
    %v2220 = vadd.f32 %v2180, %v2218
    %s2221 = sld [smem:[#allocation9 + $0x52]]
    %v2222 = vstv %s2221
    %v2223 = vmul.f32 %v1481, %v2222
    %2225 = vrot.lane.b32.xlu0 %v2223, 108
    %v2226 = vpop.permute.xlu0 %2225
    %v2227 = vrot.slane %v2226, 2
    %v2228 = vsel %vm810, %v2226, %v2227
    %v2230 = vadd.f32 %v2190, %v2228
    %s2231 = sld [smem:[#allocation9 + $0x53]]
    %v2232 = vstv %s2231
    %v2233 = vmul.f32 %v1481, %v2232
    %2235 = vrot.lane.b32.xlu0 %v2233, 108
    %v2236 = vpop.permute.xlu0 %2235
    %v2237 = vrot.slane %v2236, 2
    %v2238 = vsel %vm810, %v2236, %v2237
    %v2240 = vadd.f32 %v2200, %v2238
    %s2241 = sld [smem:[#allocation9 + $0x54]]
    %v2242 = vstv %s2241
    %v2243 = vmul.f32 %v1486, %v2242
    %2245 = vrot.lane.b32.xlu0 %v2243, 108
    %v2246 = vpop.permute.xlu0 %2245
    %v2247 = vrot.slane %v2246, 2
    %v2248 = vsel %vm810, %v2246, %v2247
    %v2250 = vadd.f32 %v2210, %v2248
    %s2251 = sld [smem:[#allocation9 + $0x55]]
    %v2252 = vstv %s2251
    %v2253 = vmul.f32 %v1486, %v2252
    %2255 = vrot.lane.b32.xlu0 %v2253, 108
    %v2256 = vpop.permute.xlu0 %2255
    %v2257 = vrot.slane %v2256, 2
    %v2258 = vsel %vm810, %v2256, %v2257
    %v2260 = vadd.f32 %v2220, %v2258
    %s2261 = sld [smem:[#allocation9 + $0x56]]
    %v2262 = vstv %s2261
    %v2263 = vmul.f32 %v1486, %v2262
    %2265 = vrot.lane.b32.xlu0 %v2263, 108
    %v2266 = vpop.permute.xlu0 %2265
    %v2267 = vrot.slane %v2266, 2
    %v2268 = vsel %vm810, %v2266, %v2267
    %v2270 = vadd.f32 %v2230, %v2268
    %s2271 = sld [smem:[#allocation9 + $0x57]]
    %v2272 = vstv %s2271
    %v2273 = vmul.f32 %v1486, %v2272
    %2275 = vrot.lane.b32.xlu0 %v2273, 108
    %v2276 = vpop.permute.xlu0 %2275
    %v2277 = vrot.slane %v2276, 2
    %v2278 = vsel %vm810, %v2276, %v2277
    %v2280 = vadd.f32 %v2240, %v2278
    %s2281 = sld [smem:[#allocation9 + $0x58]]
    %v2282 = vstv %s2281
    %v2283 = vmul.f32 %v1491, %v2282
    %2285 = vrot.lane.b32.xlu0 %v2283, 108
    %v2286 = vpop.permute.xlu0 %2285
    %v2287 = vrot.slane %v2286, 2
    %v2288 = vsel %vm810, %v2286, %v2287
    %v2290 = vadd.f32 %v2250, %v2288
    %s2291 = sld [smem:[#allocation9 + $0x59]]
    %v2292 = vstv %s2291
    %v2293 = vmul.f32 %v1491, %v2292
    %2295 = vrot.lane.b32.xlu0 %v2293, 108
    %v2296 = vpop.permute.xlu0 %2295
    %v2297 = vrot.slane %v2296, 2
    %v2298 = vsel %vm810, %v2296, %v2297
    %v2300 = vadd.f32 %v2260, %v2298
    %s2301 = sld [smem:[#allocation9 + $0x5a]]
    %v2302 = vstv %s2301
    %v2303 = vmul.f32 %v1491, %v2302
    %2305 = vrot.lane.b32.xlu0 %v2303, 108
    %v2306 = vpop.permute.xlu0 %2305
    %v2307 = vrot.slane %v2306, 2
    %v2308 = vsel %vm810, %v2306, %v2307
    %v2310 = vadd.f32 %v2270, %v2308
    %s2311 = sld [smem:[#allocation9 + $0x5b]]
    %v2312 = vstv %s2311
    %v2313 = vmul.f32 %v1491, %v2312
    %2315 = vrot.lane.b32.xlu0 %v2313, 108
    %v2316 = vpop.permute.xlu0 %2315
    %v2317 = vrot.slane %v2316, 2
    %v2318 = vsel %vm810, %v2316, %v2317
    %v2320 = vadd.f32 %v2280, %v2318
    %s2321 = sld [smem:[#allocation9 + $0x5c]]
    %v2322 = vstv %s2321
    %v2323 = vmul.f32 %v1496, %v2322
    %2325 = vrot.lane.b32.xlu0 %v2323, 108
    %v2326 = vpop.permute.xlu0 %2325
    %v2327 = vrot.slane %v2326, 2
    %v2328 = vsel %vm810, %v2326, %v2327
    %v2330 = vadd.f32 %v2290, %v2328
    %s2331 = sld [smem:[#allocation9 + $0x5d]]
    %v2332 = vstv %s2331
    %v2333 = vmul.f32 %v1496, %v2332
    %2335 = vrot.lane.b32.xlu0 %v2333, 108
    %v2336 = vpop.permute.xlu0 %2335
    %v2337 = vrot.slane %v2336, 2
    %v2338 = vsel %vm810, %v2336, %v2337
    %v2340 = vadd.f32 %v2300, %v2338
    %s2341 = sld [smem:[#allocation9 + $0x5e]]
    %v2342 = vstv %s2341
    %v2343 = vmul.f32 %v1496, %v2342
    %2345 = vrot.lane.b32.xlu0 %v2343, 108
    %v2346 = vpop.permute.xlu0 %2345
    %v2347 = vrot.slane %v2346, 2
    %v2348 = vsel %vm810, %v2346, %v2347
    %v2350 = vadd.f32 %v2310, %v2348
    %s2351 = sld [smem:[#allocation9 + $0x5f]]
    %v2352 = vstv %s2351
    %v2353 = vmul.f32 %v1496, %v2352
    %2355 = vrot.lane.b32.xlu0 %v2353, 108
    %v2356 = vpop.permute.xlu0 %2355
    %v2357 = vrot.slane %v2356, 2
    %v2358 = vsel %vm810, %v2356, %v2357
    %v2360 = vadd.f32 %v2320, %v2358
    %s2361 = sld [smem:[#allocation9 + $0x60]]
    %v2362 = vstv %s2361
    %v2363 = vmul.f32 %v1481, %v2362
    %2365 = vrot.lane.b32.xlu0 %v2363, 92
    %v2366 = vpop.permute.xlu0 %2365
    %v2367 = vrot.slane %v2366, 2
    %v2368 = vsel %vm971, %v2366, %v2367
    %v2370 = vadd.f32 %v2330, %v2368
    %s2371 = sld [smem:[#allocation9 + $0x61]]
    %v2372 = vstv %s2371
    %v2373 = vmul.f32 %v1481, %v2372
    %2375 = vrot.lane.b32.xlu0 %v2373, 92
    %v2376 = vpop.permute.xlu0 %2375
    %v2377 = vrot.slane %v2376, 2
    %v2378 = vsel %vm971, %v2376, %v2377
    %v2380 = vadd.f32 %v2340, %v2378
    %s2381 = sld [smem:[#allocation9 + $0x62]]
    %v2382 = vstv %s2381
    %v2383 = vmul.f32 %v1481, %v2382
    %2385 = vrot.lane.b32.xlu0 %v2383, 92
    %v2386 = vpop.permute.xlu0 %2385
    %v2387 = vrot.slane %v2386, 2
    %v2388 = vsel %vm971, %v2386, %v2387
    %v2390 = vadd.f32 %v2350, %v2388
    %s2391 = sld [smem:[#allocation9 + $0x63]]
    %v2392 = vstv %s2391
    %v2393 = vmul.f32 %v1481, %v2392
    %2395 = vrot.lane.b32.xlu0 %v2393, 92
    %v2396 = vpop.permute.xlu0 %2395
    %v2397 = vrot.slane %v2396, 2
    %v2398 = vsel %vm971, %v2396, %v2397
    %v2400 = vadd.f32 %v2360, %v2398
    %s2401 = sld [smem:[#allocation9 + $0x64]]
    %v2402 = vstv %s2401
    %v2403 = vmul.f32 %v1486, %v2402
    %2405 = vrot.lane.b32.xlu0 %v2403, 92
    %v2406 = vpop.permute.xlu0 %2405
    %v2407 = vrot.slane %v2406, 2
    %v2408 = vsel %vm971, %v2406, %v2407
    %v2410 = vadd.f32 %v2370, %v2408
    %s2411 = sld [smem:[#allocation9 + $0x65]]
    %v2412 = vstv %s2411
    %v2413 = vmul.f32 %v1486, %v2412
    %2415 = vrot.lane.b32.xlu0 %v2413, 92
    %v2416 = vpop.permute.xlu0 %2415
    %v2417 = vrot.slane %v2416, 2
    %v2418 = vsel %vm971, %v2416, %v2417
    %v2420 = vadd.f32 %v2380, %v2418
    %s2421 = sld [smem:[#allocation9 + $0x66]]
    %v2422 = vstv %s2421
    %v2423 = vmul.f32 %v1486, %v2422
    %2425 = vrot.lane.b32.xlu0 %v2423, 92
    %v2426 = vpop.permute.xlu0 %2425
    %v2427 = vrot.slane %v2426, 2
    %v2428 = vsel %vm971, %v2426, %v2427
    %v2430 = vadd.f32 %v2390, %v2428
    %s2431 = sld [smem:[#allocation9 + $0x67]]
    %v2432 = vstv %s2431
    %v2433 = vmul.f32 %v1486, %v2432
    %2435 = vrot.lane.b32.xlu0 %v2433, 92
    %v2436 = vpop.permute.xlu0 %2435
    %v2437 = vrot.slane %v2436, 2
    %v2438 = vsel %vm971, %v2436, %v2437
    %v2440 = vadd.f32 %v2400, %v2438
    %s2441 = sld [smem:[#allocation9 + $0x68]]
    %v2442 = vstv %s2441
    %v2443 = vmul.f32 %v1491, %v2442
    %2445 = vrot.lane.b32.xlu0 %v2443, 92
    %v2446 = vpop.permute.xlu0 %2445
    %v2447 = vrot.slane %v2446, 2
    %v2448 = vsel %vm971, %v2446, %v2447
    %v2450 = vadd.f32 %v2410, %v2448
    %s2451 = sld [smem:[#allocation9 + $0x69]]
    %v2452 = vstv %s2451
    %v2453 = vmul.f32 %v1491, %v2452
    %2455 = vrot.lane.b32.xlu0 %v2453, 92
    %v2456 = vpop.permute.xlu0 %2455
    %v2457 = vrot.slane %v2456, 2
    %v2458 = vsel %vm971, %v2456, %v2457
    %v2460 = vadd.f32 %v2420, %v2458
    %s2461 = sld [smem:[#allocation9 + $0x6a]]
    %v2462 = vstv %s2461
    %v2463 = vmul.f32 %v1491, %v2462
    %2465 = vrot.lane.b32.xlu0 %v2463, 92
    %v2466 = vpop.permute.xlu0 %2465
    %v2467 = vrot.slane %v2466, 2
    %v2468 = vsel %vm971, %v2466, %v2467
    %v2470 = vadd.f32 %v2430, %v2468
    %s2471 = sld [smem:[#allocation9 + $0x6b]]
    %v2472 = vstv %s2471
    %v2473 = vmul.f32 %v1491, %v2472
    %2475 = vrot.lane.b32.xlu0 %v2473, 92
    %v2476 = vpop.permute.xlu0 %2475
    %v2477 = vrot.slane %v2476, 2
    %v2478 = vsel %vm971, %v2476, %v2477
    %v2480 = vadd.f32 %v2440, %v2478
    %s2481 = sld [smem:[#allocation9 + $0x6c]]
    %v2482 = vstv %s2481
    %v2483 = vmul.f32 %v1496, %v2482
    %2485 = vrot.lane.b32.xlu0 %v2483, 92
    %v2486 = vpop.permute.xlu0 %2485
    %v2487 = vrot.slane %v2486, 2
    %v2488 = vsel %vm971, %v2486, %v2487
    %v2490 = vadd.f32 %v2450, %v2488
    %s2491 = sld [smem:[#allocation9 + $0x6d]]
    %v2492 = vstv %s2491
    %v2493 = vmul.f32 %v1496, %v2492
    %2495 = vrot.lane.b32.xlu0 %v2493, 92
    %v2496 = vpop.permute.xlu0 %2495
    %v2497 = vrot.slane %v2496, 2
    %v2498 = vsel %vm971, %v2496, %v2497
    %v2500 = vadd.f32 %v2460, %v2498
    %s2501 = sld [smem:[#allocation9 + $0x6e]]
    %v2502 = vstv %s2501
    %v2503 = vmul.f32 %v1496, %v2502
    %2505 = vrot.lane.b32.xlu0 %v2503, 92
    %v2506 = vpop.permute.xlu0 %2505
    %v2507 = vrot.slane %v2506, 2
    %v2508 = vsel %vm971, %v2506, %v2507
    %v2510 = vadd.f32 %v2470, %v2508
    %s2511 = sld [smem:[#allocation9 + $0x6f]]
    %v2512 = vstv %s2511
    %v2513 = vmul.f32 %v1496, %v2512
    %2515 = vrot.lane.b32.xlu0 %v2513, 92
    %v2516 = vpop.permute.xlu0 %2515
    %v2517 = vrot.slane %v2516, 2
    %v2518 = vsel %vm971, %v2516, %v2517
    %v2520 = vadd.f32 %v2480, %v2518
    %s2521 = sld [smem:[#allocation9 + $0x70]]
    %v2522 = vstv %s2521
    %v2523 = vmul.f32 %v1481, %v2522
    %2525 = vrot.lane.b32.xlu0 %v2523, 91
    %v2526 = vpop.permute.xlu0 %2525
    %v2527 = vrot.slane %v2526, 2
    %v2528 = vsel %vm1132, %v2526, %v2527
    %v2530 = vadd.f32 %v2490, %v2528
    %s2531 = sld [smem:[#allocation9 + $0x71]]
    %v2532 = vstv %s2531
    %v2533 = vmul.f32 %v1481, %v2532
    %2535 = vrot.lane.b32.xlu0 %v2533, 91
    %v2536 = vpop.permute.xlu0 %2535
    %v2537 = vrot.slane %v2536, 2
    %v2538 = vsel %vm1132, %v2536, %v2537
    %v2540 = vadd.f32 %v2500, %v2538
    %s2541 = sld [smem:[#allocation9 + $0x72]]
    %v2542 = vstv %s2541
    %v2543 = vmul.f32 %v1481, %v2542
    %2545 = vrot.lane.b32.xlu0 %v2543, 91
    %v2546 = vpop.permute.xlu0 %2545
    %v2547 = vrot.slane %v2546, 2
    %v2548 = vsel %vm1132, %v2546, %v2547
    %v2550 = vadd.f32 %v2510, %v2548
    %s2551 = sld [smem:[#allocation9 + $0x73]]
    %v2552 = vstv %s2551
    %v2553 = vmul.f32 %v1481, %v2552
    %2555 = vrot.lane.b32.xlu0 %v2553, 91
    %v2556 = vpop.permute.xlu0 %2555
    %v2557 = vrot.slane %v2556, 2
    %v2558 = vsel %vm1132, %v2556, %v2557
    %v2560 = vadd.f32 %v2520, %v2558
    %s2561 = sld [smem:[#allocation9 + $0x74]]
    %v2562 = vstv %s2561
    %v2563 = vmul.f32 %v1486, %v2562
    %2565 = vrot.lane.b32.xlu0 %v2563, 91
    %v2566 = vpop.permute.xlu0 %2565
    %v2567 = vrot.slane %v2566, 2
    %v2568 = vsel %vm1132, %v2566, %v2567
    %v2570 = vadd.f32 %v2530, %v2568
    %s2571 = sld [smem:[#allocation9 + $0x75]]
    %v2572 = vstv %s2571
    %v2573 = vmul.f32 %v1486, %v2572
    %2575 = vrot.lane.b32.xlu0 %v2573, 91
    %v2576 = vpop.permute.xlu0 %2575
    %v2577 = vrot.slane %v2576, 2
    %v2578 = vsel %vm1132, %v2576, %v2577
    %v2580 = vadd.f32 %v2540, %v2578
    %s2581 = sld [smem:[#allocation9 + $0x76]]
    %v2582 = vstv %s2581
    %v2583 = vmul.f32 %v1486, %v2582
    %2585 = vrot.lane.b32.xlu0 %v2583, 91
    %v2586 = vpop.permute.xlu0 %2585
    %v2587 = vrot.slane %v2586, 2
    %v2588 = vsel %vm1132, %v2586, %v2587
    %v2590 = vadd.f32 %v2550, %v2588
    %s2591 = sld [smem:[#allocation9 + $0x77]]
    %v2592 = vstv %s2591
    %v2593 = vmul.f32 %v1486, %v2592
    %2595 = vrot.lane.b32.xlu0 %v2593, 91
    %v2596 = vpop.permute.xlu0 %2595
    %v2597 = vrot.slane %v2596, 2
    %v2598 = vsel %vm1132, %v2596, %v2597
    %v2600 = vadd.f32 %v2560, %v2598
    %s2601 = sld [smem:[#allocation9 + $0x78]]
    %v2602 = vstv %s2601
    %v2603 = vmul.f32 %v1491, %v2602
    %2605 = vrot.lane.b32.xlu0 %v2603, 91
    %v2606 = vpop.permute.xlu0 %2605
    %v2607 = vrot.slane %v2606, 2
    %v2608 = vsel %vm1132, %v2606, %v2607
    %v2610 = vadd.f32 %v2570, %v2608
    %s2611 = sld [smem:[#allocation9 + $0x79]]
    %v2612 = vstv %s2611
    %v2613 = vmul.f32 %v1491, %v2612
    %2615 = vrot.lane.b32.xlu0 %v2613, 91
    %v2616 = vpop.permute.xlu0 %2615
    %v2617 = vrot.slane %v2616, 2
    %v2618 = vsel %vm1132, %v2616, %v2617
    %v2620 = vadd.f32 %v2580, %v2618
    %s2621 = sld [smem:[#allocation9 + $0x7a]]
    %v2622 = vstv %s2621
    %v2623 = vmul.f32 %v1491, %v2622
    %2625 = vrot.lane.b32.xlu0 %v2623, 91
    %v2626 = vpop.permute.xlu0 %2625
    %v2627 = vrot.slane %v2626, 2
    %v2628 = vsel %vm1132, %v2626, %v2627
    %v2630 = vadd.f32 %v2590, %v2628
    %s2631 = sld [smem:[#allocation9 + $0x7b]]
    %v2632 = vstv %s2631
    %v2633 = vmul.f32 %v1491, %v2632
    %2635 = vrot.lane.b32.xlu0 %v2633, 91
    %v2636 = vpop.permute.xlu0 %2635
    %v2637 = vrot.slane %v2636, 2
    %v2638 = vsel %vm1132, %v2636, %v2637
    %v2640 = vadd.f32 %v2600, %v2638
    %s2641 = sld [smem:[#allocation9 + $0x7c]]
    %v2642 = vstv %s2641
    %v2643 = vmul.f32 %v1496, %v2642
    %2645 = vrot.lane.b32.xlu0 %v2643, 91
    %v2646 = vpop.permute.xlu0 %2645
    %v2647 = vrot.slane %v2646, 2
    %v2648 = vsel %vm1132, %v2646, %v2647
    %v2650 = vadd.f32 %v2610, %v2648
    %s2651 = sld [smem:[#allocation9 + $0x7d]]
    %v2652 = vstv %s2651
    %v2653 = vmul.f32 %v1496, %v2652
    %2655 = vrot.lane.b32.xlu0 %v2653, 91
    %v2656 = vpop.permute.xlu0 %2655
    %v2657 = vrot.slane %v2656, 2
    %v2658 = vsel %vm1132, %v2656, %v2657
    %v2660 = vadd.f32 %v2620, %v2658
    %s2661 = sld [smem:[#allocation9 + $0x7e]]
    %v2662 = vstv %s2661
    %v2663 = vmul.f32 %v1496, %v2662
    %2665 = vrot.lane.b32.xlu0 %v2663, 91
    %v2666 = vpop.permute.xlu0 %2665
    %v2667 = vrot.slane %v2666, 2
    %v2668 = vsel %vm1132, %v2666, %v2667
    %v2670 = vadd.f32 %v2630, %v2668
    %s2671 = sld [smem:[#allocation9 + $0x7f]]
    %v2672 = vstv %s2671
    %v2673 = vmul.f32 %v1496, %v2672
    %2675 = vrot.lane.b32.xlu0 %v2673, 91
    %v2676 = vpop.permute.xlu0 %2675
    %v2677 = vrot.slane %v2676, 2
    %v2678 = vsel %vm1132, %v2676, %v2677
    %v2680 = vadd.f32 %v2640, %v2678
    %s2681 = sld [smem:[#allocation9 + $0x80]]
    %v2682 = vstv %s2681
    %v2683 = vmul.f32 %v1481, %v2682
    %2685 = vrot.lane.b32.xlu0 %v2683, 90
    %v2686 = vpop.permute.xlu0 %2685
    %v2687 = vrot.slane %v2686, 2
    %v2688 = vsel %vm1293, %v2686, %v2687
    %v2690 = vadd.f32 %v2650, %v2688
    %s2691 = sld [smem:[#allocation9 + $0x81]]
    %v2692 = vstv %s2691
    %v2693 = vmul.f32 %v1481, %v2692
    %2695 = vrot.lane.b32.xlu0 %v2693, 90
    %v2696 = vpop.permute.xlu0 %2695
    %v2697 = vrot.slane %v2696, 2
    %v2698 = vsel %vm1293, %v2696, %v2697
    %v2700 = vadd.f32 %v2660, %v2698
    %s2701 = sld [smem:[#allocation9 + $0x82]]
    %v2702 = vstv %s2701
    %v2703 = vmul.f32 %v1481, %v2702
    %2705 = vrot.lane.b32.xlu0 %v2703, 90
    %v2706 = vpop.permute.xlu0 %2705
    %v2707 = vrot.slane %v2706, 2
    %v2708 = vsel %vm1293, %v2706, %v2707
    %v2710 = vadd.f32 %v2670, %v2708
    %s2711 = sld [smem:[#allocation9 + $0x83]]
    %v2712 = vstv %s2711
    %v2713 = vmul.f32 %v1481, %v2712
    %2715 = vrot.lane.b32.xlu0 %v2713, 90
    %v2716 = vpop.permute.xlu0 %2715
    %v2717 = vrot.slane %v2716, 2
    %v2718 = vsel %vm1293, %v2716, %v2717
    %v2720 = vadd.f32 %v2680, %v2718
    %s2721 = sld [smem:[#allocation9 + $0x84]]
    %v2722 = vstv %s2721
    %v2723 = vmul.f32 %v1486, %v2722
    %2725 = vrot.lane.b32.xlu0 %v2723, 90
    %v2726 = vpop.permute.xlu0 %2725
    %v2727 = vrot.slane %v2726, 2
    %v2728 = vsel %vm1293, %v2726, %v2727
    %v2730 = vadd.f32 %v2690, %v2728
    %s2731 = sld [smem:[#allocation9 + $0x85]]
    %v2732 = vstv %s2731
    %v2733 = vmul.f32 %v1486, %v2732
    %2735 = vrot.lane.b32.xlu0 %v2733, 90
    %v2736 = vpop.permute.xlu0 %2735
    %v2737 = vrot.slane %v2736, 2
    %v2738 = vsel %vm1293, %v2736, %v2737
    %v2740 = vadd.f32 %v2700, %v2738
    %s2741 = sld [smem:[#allocation9 + $0x86]]
    %v2742 = vstv %s2741
    %v2743 = vmul.f32 %v1486, %v2742
    %2745 = vrot.lane.b32.xlu0 %v2743, 90
    %v2746 = vpop.permute.xlu0 %2745
    %v2747 = vrot.slane %v2746, 2
    %v2748 = vsel %vm1293, %v2746, %v2747
    %v2750 = vadd.f32 %v2710, %v2748
    %s2751 = sld [smem:[#allocation9 + $0x87]]
    %v2752 = vstv %s2751
    %v2753 = vmul.f32 %v1486, %v2752
    %2755 = vrot.lane.b32.xlu0 %v2753, 90
    %v2756 = vpop.permute.xlu0 %2755
    %v2757 = vrot.slane %v2756, 2
    %v2758 = vsel %vm1293, %v2756, %v2757
    %v2760 = vadd.f32 %v2720, %v2758
    %s2761 = sld [smem:[#allocation9 + $0x88]]
    %v2762 = vstv %s2761
    %v2763 = vmul.f32 %v1491, %v2762
    %2765 = vrot.lane.b32.xlu0 %v2763, 90
    %v2766 = vpop.permute.xlu0 %2765
    %v2767 = vrot.slane %v2766, 2
    %v2768 = vsel %vm1293, %v2766, %v2767
    %v2770 = vadd.f32 %v2730, %v2768
    %s2771 = sld [smem:[#allocation9 + $0x89]]
    %v2772 = vstv %s2771
    %v2773 = vmul.f32 %v1491, %v2772
    %2775 = vrot.lane.b32.xlu0 %v2773, 90
    %v2776 = vpop.permute.xlu0 %2775
    %v2777 = vrot.slane %v2776, 2
    %v2778 = vsel %vm1293, %v2776, %v2777
    %v2780 = vadd.f32 %v2740, %v2778
    %s2781 = sld [smem:[#allocation9 + $0x8a]]
    %v2782 = vstv %s2781
    %v2783 = vmul.f32 %v1491, %v2782
    %2785 = vrot.lane.b32.xlu0 %v2783, 90
    %v2786 = vpop.permute.xlu0 %2785
    %v2787 = vrot.slane %v2786, 2
    %v2788 = vsel %vm1293, %v2786, %v2787
    %v2790 = vadd.f32 %v2750, %v2788
    %s2791 = sld [smem:[#allocation9 + $0x8b]]
    %v2792 = vstv %s2791
    %v2793 = vmul.f32 %v1491, %v2792
    %2795 = vrot.lane.b32.xlu0 %v2793, 90
    %v2796 = vpop.permute.xlu0 %2795
    %v2797 = vrot.slane %v2796, 2
    %v2798 = vsel %vm1293, %v2796, %v2797
    %v2800 = vadd.f32 %v2760, %v2798
    %s2801 = sld [smem:[#allocation9 + $0x8c]]
    %v2802 = vstv %s2801
    %v2803 = vmul.f32 %v1496, %v2802
    %2805 = vrot.lane.b32.xlu0 %v2803, 90
    %v2806 = vpop.permute.xlu0 %2805
    %v2807 = vrot.slane %v2806, 2
    %v2808 = vsel %vm1293, %v2806, %v2807
    %v2810 = vadd.f32 %v2770, %v2808
    %s2811 = sld [smem:[#allocation9 + $0x8d]]
    %v2812 = vstv %s2811
    %v2813 = vmul.f32 %v1496, %v2812
    %2815 = vrot.lane.b32.xlu0 %v2813, 90
    %v2816 = vpop.permute.xlu0 %2815
    %v2817 = vrot.slane %v2816, 2
    %v2818 = vsel %vm1293, %v2816, %v2817
    %v2820 = vadd.f32 %v2780, %v2818
    %s2821 = sld [smem:[#allocation9 + $0x8e]]
    %v2822 = vstv %s2821
    %v2823 = vmul.f32 %v1496, %v2822
    %2825 = vrot.lane.b32.xlu0 %v2823, 90
    %v2826 = vpop.permute.xlu0 %2825
    %v2827 = vrot.slane %v2826, 2
    %v2828 = vsel %vm1293, %v2826, %v2827
    %v2830 = vadd.f32 %v2790, %v2828
    %s2831 = sld [smem:[#allocation9 + $0x8f]]
    %v2832 = vstv %s2831
    %v2833 = vmul.f32 %v1496, %v2832
    %2835 = vrot.lane.b32.xlu0 %v2833, 90
    %v2836 = vpop.permute.xlu0 %2835
    %v2837 = vrot.slane %v2836, 2
    %v2838 = vsel %vm1293, %v2836, %v2837
    %v2840 = vadd.f32 %v2800, %v2838
    %s2841 = sld [smem:[#allocation10]]
    %v2842 = vstv %s2841
    %v2843 = vadd.f32 %v2810, %v2842
    %2845 = vrot.lane.b32.xlu0 %v91, 90
    %v2846 = vpop.permute.xlu0 %2845
    %v2847 = vrot.slane %v2846, 2
    %v2848 = vsel %vm1293, %v2846, %v2847
    %v2850 = vadd.f32 %v2843, %v2848
    %v2851 = vmax.f32 %v2850, 0.0
    %2852 = vrot.lane.b32.xlu0 %v1479, 109
    %v2853 = vpop.permute.xlu0 %2852
    %v2854 = vrot.slane %v2853, 2
    %v2855 = vsel %vm649, %v2853, %v2854
    %v2857 = vmul.f32 %v2851, %v2855
    %vm2858 = vcmask 1041408
    %vm2859 = vcmask 1043458
    %vm2860 = vmor %vm2859, %vm2858
    %vm2861 = vcmask 553988
    %vm2862 = vmor %vm2861, %vm2860
    %2863 = vst.msk [vmem:[#allocation12] sm:$0x3f] %vm2862, %v2857
    %s2864 = sld [smem:[#allocation10 + $0x1]]
    %v2865 = vstv %s2864
    %v2866 = vadd.f32 %v2820, %v2865
    %2868 = vrot.lane.b32.xlu0 %v108, 90
    %v2869 = vpop.permute.xlu0 %2868
    %v2870 = vrot.slane %v2869, 2
    %v2871 = vsel %vm1293, %v2869, %v2870
    %v2873 = vadd.f32 %v2866, %v2871
    %v2874 = vmax.f32 %v2873, 0.0
    %v2875 = vmul.f32 %v2874, %v2855
    %s2876 = scalar_lea.vmem [#allocation12], 6
    %2877 = vst.msk [vmem:[%s2876] sm:$0x3f] %vm2862, %v2875
    %s2878 = sld [smem:[#allocation10 + $0x2]]
    %v2879 = vstv %s2878
    %v2880 = vadd.f32 %v2830, %v2879
    %2882 = vrot.lane.b32.xlu0 %v125, 90
    %v2883 = vpop.permute.xlu0 %2882
    %v2884 = vrot.slane %v2883, 2
    %v2885 = vsel %vm1293, %v2883, %v2884
    %v2887 = vadd.f32 %v2880, %v2885
    %v2888 = vmax.f32 %v2887, 0.0
    %v2889 = vmul.f32 %v2888, %v2855
    %s2890 = scalar_lea.vmem [#allocation12], 12
    %2891 = vst.msk [vmem:[%s2890] sm:$0x3f] %vm2862, %v2889
    %s2892 = sld [smem:[#allocation10 + $0x3]]
    %v2893 = vstv %s2892
    %v2894 = vadd.f32 %v2840, %v2893
    %2896 = vrot.lane.b32.xlu0 %v142, 90
    %v2897 = vpop.permute.xlu0 %2896
    %v2898 = vrot.slane %v2897, 2
    %v2899 = vsel %vm1293, %v2897, %v2898
    %v2901 = vadd.f32 %v2894, %v2899
    %v2902 = vmax.f32 %v2901, 0.0
    %v2903 = vmul.f32 %v2902, %v2855
    %s2904 = scalar_lea.vmem [#allocation12], 18
    %2905 = vst.msk [vmem:[%s2904] sm:$0x3f] %vm2862, %v2903
    // Predicated region
    $region46: #{tpu_custom_call.1} parent=1 // pred_check
      _
    $region47: #{tpu_custom_call.1} parent=1 // pred_check_branch
      %2907 = sbr.rel (0) target = $region49
    $region48: #{tpu_custom_call.1} parent=1 // pred_region
      %s2909 = ssub.s32 384, 384
      %2910 = vsyncadd [#allocation4], %s2909
      %s2911 = sshll.u32 [#allocation12], 4
      %s2912 = int_to_ptr.vmem [resolvable:$true] %s2911
      %2917 = dma.vmem_to_hbm [thread:$0]  %s2912, 384, %s6, [#allocation4], 96, 96, 6
    $region49: #{tpu_custom_call.1} parent=1 // pred_fallthru
      _
    // Predicated region
    $region50: #{tpu_custom_call.1} parent=1 // pred_check
      _
    $region51: #{tpu_custom_call.1} parent=1 // pred_check_branch
      %2919 = sbr.rel (0) target = $region53
    $region52: #{tpu_custom_call.1} parent=1 // pred_region
      %2920 = dma.done [#allocation4], 384
    $region53: #{tpu_custom_call.1} parent=1 // pred_fallthru
      _
    %2921 = vsyncpa [#allocation3], 1
    %2922 = vsyncpa [#allocation4], 1
    %2923 = vsyncpa [#allocation5], 1
    %2924 = vsyncpa [#allocation8], 1
    %2925 = vsyncpa [#allocation11], 1

</llo_original>
